<compile_context>
chip_gen: v7x
topology: tpu7x:2x2x1
jax: 0.10.0
libtpu: 0.0.40
codegen_flags: <defaults>
</compile_context>

<pallas_src>
import functools

import jax
import jax.numpy as jnp
from jax.experimental import pallas as pl
from jax.experimental.pallas import tpu as pltpu

DROPOUT_P = 0.1  # matches Dropout(p=0.1) in the module


def _uniform_from_index(seed_scalar, row0, shape, n_cols):
    """Counter-based uniform [0,1) field from (seed, absolute element index).

    Uses the lowbias32 integer finalizer -- only 32-bit VPU ops (iota, mul,
    xor, shift, convert), so it works on real TPUs and in interpret mode, and
    the randomness is independent of how the array is tiled across the grid.
    """
    rows = jax.lax.broadcasted_iota(jnp.int32, shape, 0) + row0
    cols = jax.lax.broadcasted_iota(jnp.int32, shape, 1)
    idx = (rows * jnp.int32(n_cols) + cols).astype(jnp.uint32)
    x = idx ^ (seed_scalar.astype(jnp.uint32) * jnp.uint32(0x9E3779B9))
    x = x ^ (x >> 16)
    x = x * jnp.uint32(0x7FEB352D)
    x = x ^ (x >> 15)
    x = x * jnp.uint32(0x846CA68B)
    x = x ^ (x >> 16)
    # Top 24 bits -> exact float32 uniform in [0, 1).  (p is quantized to a
    # 2^-24 grid -> bias ~1e-8 on the drop rate, negligible.)
    u24 = (x >> 8).astype(jnp.int32)
    return u24.astype(jnp.float32) * jnp.float32(1.0 / (1 << 24))


def _dropout_add_kernel(seed_ref, x_ref, y_ref, o_ref, *, p, rows_per_tile, n_cols):
    # x_ref: (rows_per_tile, H) block of the dropout input
    # y_ref: matching block of the residual
    row0 = pl.program_id(0) * rows_per_tile            # absolute row offset
    u = _uniform_from_index(seed_ref[0], row0, x_ref.shape, n_cols)
    keep = u >= jnp.float32(p)                          # keep prob = 1 - p
    scale = jnp.float32(1.0 / (1.0 - p))
    o_ref[...] = jnp.where(keep, x_ref[...] * scale, jnp.float32(0.0)) + y_ref[...]


def _add_kernel(x_ref, y_ref, o_ref):
    # Eval-mode dropout is identity -> pure streaming add, no PRNG work.
    o_ref[...] = x_ref[...] + y_ref[...]


def dropout_add(x145, x112, seed=0, *, p=DROPOUT_P, training=True):
    """Computes Dropout(p)(x145) + x112, like the PyTorch module."""
    assert x145.shape == x112.shape and x145.dtype == x112.dtype
    B, S, H = x145.shape
    rows = B * S
    x2 = x145.reshape(rows, H)   # drop the size-1 batch dim -> clean 2-D tiles
    y2 = x112.reshape(rows, H)

    # Kernel is purely HBM-bound (~3 operands * rows*H*4 bytes): collapse the
    # grid to at most 2 parallel tiles so v7x's two TensorCores can each take
    # half, while single-TC chips pay at most one extra ~0.35us grid step.
    num_tiles = 2 if (rows % 2 == 0 and (rows // 2) % 8 == 0) else 1
    rows_per_tile = rows // num_tiles

    cost = pl.CostEstimate(
        flops=2 * rows * H,
        transcendentals=0,
        bytes_accessed=3 * rows * H * x145.dtype.itemsize,
    )
    cparams = pltpu.CompilerParams(dimension_semantics=("parallel",))
    blk = (rows_per_tile, H)

    if (not training) or p == 0.0:
        out2 = pl.pallas_call(
            _add_kernel,
            out_shape=jax.ShapeDtypeStruct((rows, H), x145.dtype),
            grid=(num_tiles,),
            in_specs=[
                pl.BlockSpec(blk, lambda i: (i, 0)),
                pl.BlockSpec(blk, lambda i: (i, 0)),
            ],
            out_specs=pl.BlockSpec(blk, lambda i: (i, 0)),
            compiler_params=cparams,
            cost_estimate=cost,
        )(x2, y2)
        return out2.reshape(B, S, H)

    kernel = functools.partial(
        _dropout_add_kernel, p=p, rows_per_tile=rows_per_tile, n_cols=H
    )
    seed_arr = jnp.asarray([seed], dtype=jnp.int32)
    idx = lambda i, seed_ref: (i, 0)

    out2 = pl.pallas_call(
        kernel,
        out_shape=jax.ShapeDtypeStruct((rows, H), x145.dtype),
        grid_spec=pltpu.PrefetchScalarGridSpec(
            num_scalar_prefetch=1,
            grid=(num_tiles,),
            in_specs=[pl.BlockSpec(blk, idx), pl.BlockSpec(blk, idx)],
            out_specs=pl.BlockSpec(blk, idx),
        ),
        compiler_params=cparams,
        cost_estimate=cost,
    )(seed_arr, x2, y2)
    return out2.reshape(B, S, H)


if __name__ == "__main__":
    key = jax.random.PRNGKey(0)
    k1, k2 = jax.random.split(key)
    # Same shapes the module uses: [1, 384, 768] (float32, ~1.2 MB each).
    x145 = jax.random.normal(k1, (1, 384, 768), dtype=jnp.float32)
    x112 = jax.random.normal(k2, (1, 384, 768), dtype=jnp.float32)

    # Training mode: dropout mask generated in-kernel, scaled by 1/(1-p).
    out = dropout_add(x145, x112, seed=1234, training=True)
    out = jax.block_until_ready(out)
    assert out.shape == (1, 384, 768)
    assert out.dtype == jnp.float32

    resid = out - x112
    # Every element is either exactly dropped (resid == 0) or kept and scaled.
    is_drop = jnp.abs(resid) < 1e-6
    is_keep = jnp.abs(resid - x145 / 0.9) < 1e-4
    assert bool(jnp.all(is_drop | is_keep)), "dropout+add values inconsistent"
    drop_frac = float(jnp.mean(is_drop.astype(jnp.float32)))
    assert 0.05 < drop_frac < 0.15, f"unexpected drop fraction {drop_frac}"

    # Eval mode: identity dropout -> plain add kernel.
    out_eval = dropout_add(x145, x112, seed=1234, training=False)
    out_eval = jax.block_until_ready(out_eval)
    assert bool(jnp.allclose(out_eval, x145 + x112, atol=1e-6))

    print("KERNEL_OK")
</pallas_src>

<mosaic_0001>
module attributes {stable_mosaic.version = 11 : i64} {
  func.func @_dropout_add_kernel(%arg0: i32, %arg1: memref<1xi32, #tpu.memory_space<smem>>, %arg2: memref<192x768xf32, #tpu.memory_space<vmem>>, %arg3: memref<192x768xf32, #tpu.memory_space<vmem>>, %arg4: memref<192x768xf32, #tpu.memory_space<vmem>>) attributes {dimension_semantics = [#tpu.dimension_semantics<parallel>], iteration_bounds = array<i64: 2>, scalar_prefetch = 1 : i64, scratch_operands = 0 : i64, tpu.core_type = #tpu.core_type<tc>, window_params = [{transform_indices = @transform_0, window_bounds = array<i64: 192, 768>}, {transform_indices = @transform_1, window_bounds = array<i64: 192, 768>}, {transform_indices = @transform_2, window_bounds = array<i64: 192, 768>}]} {
    %c192_i32 = arith.constant 192 : i32
    %0 = arith.muli %arg0, %c192_i32 : i32
    %c0 = arith.constant 0 : index
    %1 = memref.load %arg1[%c0] : memref<1xi32, #tpu.memory_space<smem>>
    %2 = tpu.iota {dimensions = array<i32: 0>} : vector<192x768xi32>
    %3 = vector.broadcast %0 : i32 to vector<192x768xi32>
    %4 = arith.addi %2, %3 : vector<192x768xi32>
    %5 = tpu.iota {dimensions = array<i32: 1>} : vector<192x768xi32>
    %c768_i32 = arith.constant 768 : i32
    %6 = vector.broadcast %c768_i32 : i32 to vector<192x768xi32>
    %7 = arith.muli %4, %6 : vector<192x768xi32>
    %8 = arith.addi %7, %5 : vector<192x768xi32>
    %c-1640531527_i32 = arith.constant -1640531527 : i32
    %9 = arith.muli %1, %c-1640531527_i32 : i32
    %10 = vector.broadcast %9 : i32 to vector<192x768xi32>
    %11 = arith.xori %8, %10 : vector<192x768xi32>
    %c16_i32 = arith.constant 16 : i32
    %12 = vector.broadcast %c16_i32 : i32 to vector<192x768xi32>
    %13 = arith.shrui %11, %12 : vector<192x768xi32>
    %14 = arith.xori %11, %13 : vector<192x768xi32>
    %c2146121005_i32 = arith.constant 2146121005 : i32
    %15 = vector.broadcast %c2146121005_i32 : i32 to vector<192x768xi32>
    %16 = arith.muli %14, %15 : vector<192x768xi32>
    %c15_i32 = arith.constant 15 : i32
    %17 = vector.broadcast %c15_i32 : i32 to vector<192x768xi32>
    %18 = arith.shrui %16, %17 : vector<192x768xi32>
    %19 = arith.xori %16, %18 : vector<192x768xi32>
    %c-2073254261_i32 = arith.constant -2073254261 : i32
    %20 = vector.broadcast %c-2073254261_i32 : i32 to vector<192x768xi32>
    %21 = arith.muli %19, %20 : vector<192x768xi32>
    %c16_i32_0 = arith.constant 16 : i32
    %22 = vector.broadcast %c16_i32_0 : i32 to vector<192x768xi32>
    %23 = arith.shrui %21, %22 : vector<192x768xi32>
    %24 = arith.xori %21, %23 : vector<192x768xi32>
    %c8_i32 = arith.constant 8 : i32
    %25 = vector.broadcast %c8_i32 : i32 to vector<192x768xi32>
    %26 = arith.shrui %24, %25 : vector<192x768xi32>
    %27 = arith.sitofp %26 : vector<192x768xi32> to vector<192x768xf32>
    %cst = arith.constant 5.96046448E-8 : f32
    %28 = vector.broadcast %cst : f32 to vector<192x768xf32>
    %29 = arith.mulf %27, %28 : vector<192x768xf32>
    %cst_1 = arith.constant 1.000000e-01 : f32
    %30 = vector.broadcast %cst_1 : f32 to vector<192x768xf32>
    %31 = arith.cmpf oge, %29, %30 : vector<192x768xf32>
    %c0_2 = arith.constant 0 : index
    %c0_3 = arith.constant 0 : index
    %32 = vector.load %arg2[%c0_2, %c0_3] : memref<192x768xf32, #tpu.memory_space<vmem>>, vector<192x768xf32>
    %cst_4 = arith.constant 1.11111116 : f32
    %33 = vector.broadcast %cst_4 : f32 to vector<192x768xf32>
    %34 = arith.mulf %32, %33 : vector<192x768xf32>
    %cst_5 = arith.constant 0.000000e+00 : f32
    %35 = vector.broadcast %cst_5 : f32 to vector<192x768xf32>
    %36 = arith.select %31, %34, %35 : vector<192x768xi1>, vector<192x768xf32>
    %c0_6 = arith.constant 0 : index
    %c0_7 = arith.constant 0 : index
    %37 = vector.load %arg3[%c0_6, %c0_7] : memref<192x768xf32, #tpu.memory_space<vmem>>, vector<192x768xf32>
    %38 = arith.addf %36, %37 : vector<192x768xf32>
    %c0_8 = arith.constant 0 : index
    %c0_9 = arith.constant 0 : index
    %39 = vector.load %arg4[%c0_8, %c0_9] : memref<192x768xf32, #tpu.memory_space<vmem>>, vector<192x768xf32>
    tpu.vector_store %arg4[%c0_8, %c0_9], %38 {strides = array<i32>} : memref<192x768xf32, #tpu.memory_space<vmem>>, vector<192x768xf32>,
    return
  }
  func.func @transform_0(%arg0: i32, %arg1: memref<1xi32, #tpu.memory_space<smem>>) -> (i32, i32) {
    %c0_i32 = arith.constant 0 : i32
    %c0_i32_0 = arith.constant 0 : i32
    return %arg0, %c0_i32 : i32, i32
  }
  func.func @transform_1(%arg0: i32, %arg1: memref<1xi32, #tpu.memory_space<smem>>) -> (i32, i32) {
    %c0_i32 = arith.constant 0 : i32
    %c0_i32_0 = arith.constant 0 : i32
    return %arg0, %c0_i32 : i32, i32
  }
  func.func @transform_2(%arg0: i32, %arg1: memref<1xi32, #tpu.memory_space<smem>>) -> (i32, i32) {
    %c0_i32 = arith.constant 0 : i32
    %c0_i32_0 = arith.constant 0 : i32
    return %arg0, %c0_i32 : i32, i32
  }
}

</mosaic_0001>

<llo_original>
// kernel: tpu_custom_call.1
$region0: #{tpu_custom_call.1}
  #allocation0 [shape = 'u32[]', space=smem, size = 0x4, offset = 0x4, fixed_abs, tag = 'smem constant byte address 0x4 - core index']
  #allocation1 [shape = 'u32[144,128]{1,0:T(1,128)}', space=vmem, size = 0x12000, scoped, tag = 'internal scratch']
  #allocation2 [shape = 's32[1]{0}', space=sflag, size = 0x4, scoped, tag = 'scoped memory for tpu_custom_call.1']
  #allocation3 [shape = 's32[1]{0:T(128)S(6)}', space=smem, size = 0x200, scoped, tag = 'prefetched SMEM operand 0']
  %s0 = inlined_call_operand.<no memory space> [shape: s32[1], index: 0, kind: input, shape index: {}]
  %s1 = inlined_call_operand.hbm [shape: f32[384,768], index: 1, kind: input, shape index: {}]
  %s2 = inlined_call_operand.hbm [shape: f32[384,768], index: 2, kind: input, shape index: {}]
  %s3 = inlined_call_operand.hbm [shape: f32[384,768], index: 3, kind: output, shape index: {}]
  %s4 = sld [smem:[#allocation0]]
  $region49: #{tpu_custom_call.1} parent=0
    _
  %s6 = ssub.s32 1, %s4
  %s7 = scalar_select 0, %s6, %s4
  %8 = sst [smem:[#allocation3]] %s0
  $region1: #{tpu_custom_call.1} parent=0
    #allocation4 [shape = 'u8[1179648]{0}', space=vmem, size = 0x120000, scoped, tag = 'input window, operand 1']
    #allocation5 [shape = 's32[2]{0}', space=sflag, size = 0x8, scoped, tag = 'scoped memory for tpu_custom_call.1']
    #allocation6 [shape = 's32[2]{0}', space=sflag, size = 0x8, scoped, tag = 'scoped memory for tpu_custom_call.1']
    #allocation7 [shape = 'u8[1179648]{0}', space=vmem, size = 0x120000, scoped, tag = 'input window, operand 2']
    #allocation8 [shape = 's32[2]{0}', space=sflag, size = 0x8, scoped, tag = 'scoped memory for tpu_custom_call.1']
    #allocation9 [shape = 'u8[1179648]{0}', space=vmem, size = 0x120000, scoped, tag = 'output window, operand 0']
    %9 = vsyncpa [#allocation5], 0
    %s10 = scalar_lea.sflag [#allocation5], 1
    %11 = vsyncpa %s10, 0
    %12 = vsyncpa [#allocation8], 0
    %s13 = scalar_lea.sflag [#allocation8], 1
    %14 = vsyncpa %s13, 0
    %15 = vsyncpa [#allocation6], 0
    %s16 = scalar_lea.sflag [#allocation6], 1
    %17 = vsyncpa %s16, 0
    loop: start=0, step=1, limit=4
    $region2: #{tpu_custom_call.1} parent=1 // loop_pre_header
      _
    $region3: #{tpu_custom_call.1} parent=1 // loop_header
      %s19 = sphi 0, %s23
      %p20 = scmp.ge.s32.totalorder %s19, 4
      %s29 = sphi 0, %s31
      %s32 = sphi 0, %s29
      %s33 = sphi 0, %s32
      %s49 = sphi 0, %s33
      %s55 = sphi 0, %s57
      %s58 = sphi 0, %s55
      %s59 = sphi 0, %s58
      %s75 = sphi 0, %s59
      %s81 = sphi 0, %s83
      %s84 = sphi 0, %s81
      %s85 = sphi 0, %s84
      %s101 = sphi 0, %s85
    $region4: #{tpu_custom_call.1} parent=1 // loop_header_branch
      %22 = sbr.rel (%p20) target = $region8
    $region5: #{tpu_custom_call.1} parent=1 // loop_body
      %s24 = ssub.s32 %s19, 1
      %s25 = ssub.s32 %s19, 2
      %s26 = sadd.s32 %s19, 1
      %s27 = ssub.s32 %s19, %s26
      %p28 = scmp.eq.s32.totalorder %s27, 0
      %s30 = sadd.s32 %s29, 1
      %s31 = scalar_select %p28, %s29, %s30
      %p34 = pneg %p28
      %p35 = scmp.eq.s32.totalorder %s19, 1
      %p36 = por %p34, %p35
      %p37 = scmp.ne.s32.totalorder %s29, %s32
      %p38 = scmp.eq.s32.totalorder %s19, 0
      %p39 = por %p37, %p38
      %p40 = scmp.ne.s32.totalorder %s29, %s32
      %p41 = scmp.eq.s32.totalorder %s24, 1
      %p42 = por %p40, %p41
      %p43 = scmp.ne.s32.totalorder %s32, %s33
      %p44 = scmp.eq.s32.totalorder %s24, 0
      %p45 = por %p43, %p44
      %p46 = scmp.ne.s32.totalorder %s32, %s33
      %p47 = scmp.eq.s32.totalorder %s25, 1
      %p48 = por %p46, %p47
      %p50 = scmp.ne.s32.totalorder %s33, %s49
      %p51 = scmp.eq.s32.totalorder %s25, 0
      %p52 = por %p50, %p51
      %s53 = ssub.s32 %s19, %s26
      %p54 = scmp.eq.s32.totalorder %s53, 0
      %s56 = sadd.s32 %s55, 1
      %s57 = scalar_select %p54, %s55, %s56
      %p60 = pneg %p54
      %p61 = scmp.eq.s32.totalorder %s19, 1
      %p62 = por %p60, %p61
      %p63 = scmp.ne.s32.totalorder %s55, %s58
      %p64 = scmp.eq.s32.totalorder %s19, 0
      %p65 = por %p63, %p64
      %p66 = scmp.ne.s32.totalorder %s55, %s58
      %p67 = scmp.eq.s32.totalorder %s24, 1
      %p68 = por %p66, %p67
      %p69 = scmp.ne.s32.totalorder %s58, %s59
      %p70 = scmp.eq.s32.totalorder %s24, 0
      %p71 = por %p69, %p70
      %p72 = scmp.ne.s32.totalorder %s58, %s59
      %p73 = scmp.eq.s32.totalorder %s25, 1
      %p74 = por %p72, %p73
      %p76 = scmp.ne.s32.totalorder %s59, %s75
      %p77 = scmp.eq.s32.totalorder %s25, 0
      %p78 = por %p76, %p77
      %s79 = ssub.s32 %s19, %s26
      %p80 = scmp.eq.s32.totalorder %s79, 0
      %s82 = sadd.s32 %s81, 1
      %s83 = scalar_select %p80, %s81, %s82
      %p86 = pneg %p80
      %p87 = scmp.eq.s32.totalorder %s19, 1
      %p88 = por %p86, %p87
      %p89 = scmp.ne.s32.totalorder %s81, %s84
      %p90 = scmp.eq.s32.totalorder %s19, 0
      %p91 = por %p89, %p90
      %p92 = scmp.ne.s32.totalorder %s81, %s84
      %p93 = scmp.eq.s32.totalorder %s24, 1
      %p94 = por %p92, %p93
      %p95 = scmp.ne.s32.totalorder %s84, %s85
      %p96 = scmp.eq.s32.totalorder %s24, 0
      %p97 = por %p95, %p96
      %p98 = scmp.ne.s32.totalorder %s84, %s85
      %p99 = scmp.eq.s32.totalorder %s25, 1
      %p100 = por %p98, %p99
      %p102 = scmp.ne.s32.totalorder %s85, %s101
      %p103 = scmp.eq.s32.totalorder %s25, 0
      %p104 = por %p102, %p103
      %p105 = scmp.le.s32.totalorder 1, %s19
      %p106 = scmp.lt.s32.totalorder %s19, 3
      %p107 = pnand %p105, %p106
      %p108 = pneg %p107
      // Predicated region
      $region9: #{tpu_custom_call.1} parent=5 // pred_check
        _
      $region10: #{tpu_custom_call.1} parent=5 // pred_check_branch
        %110 = sbr.rel (%p107) target = $region12
      $region11: #{tpu_custom_call.1} parent=5 // pred_region
        %s111 = ssub.s32 %s19, 1
      $region12: #{tpu_custom_call.1} parent=5 // pred_fallthru
        _
      %p112 = scmp.lt.s32.totalorder %s19, 2
      // Predicated region
      $region13: #{tpu_custom_call.1} parent=5 // pred_check
        %p113 = pneg %p112
      $region14: #{tpu_custom_call.1} parent=5 // pred_check_branch
        %115 = sbr.rel (%p113) target = $region16
      $region15: #{tpu_custom_call.1} parent=5 // pred_region
        // Predicated region
        $region17: #{tpu_custom_call.1} parent=15 // pred_check
          %p116 = pneg %p39
        $region18: #{tpu_custom_call.1} parent=15 // pred_check_branch
          %118 = sbr.rel (%p116) target = $region20
        $region19: #{tpu_custom_call.1} parent=15 // pred_region
          %s119 = sand.u32 %s29, 1
          %s120 = scalar_lea.sflag [#allocation5], %s119
          %s121 = sand.u32 %s29, 1
          %s122 = smul.addr %s121, 1152
          %s123 = scalar_lea.vmem [#allocation4], %s122
          %s124 = smul.u32 24, %s19
          %s126 = ssub.s32 18432, 18432
          %127 = vsyncadd %s120, %s126
          %s128 = smul.addr %s124, 6
          %s129 = smul.addr %s128, 128
          %s130 = scalar_lea.hbm %s1, %s129
          %s131 = sshll.u32 %s123, 4
          %s132 = int_to_ptr.vmem [resolvable:$true] %s131
          %137 = dma.hbm_to_vmem [thread:$0]  %s130, 18432, %s132, %s120, 768, 768, 48
        $region20: #{tpu_custom_call.1} parent=15 // pred_fallthru
          _
        // Predicated region
        $region21: #{tpu_custom_call.1} parent=15 // pred_check
          %p138 = pneg %p65
        $region22: #{tpu_custom_call.1} parent=15 // pred_check_branch
          %140 = sbr.rel (%p138) target = $region24
        $region23: #{tpu_custom_call.1} parent=15 // pred_region
          %s141 = sand.u32 %s55, 1
          %s142 = scalar_lea.sflag [#allocation8], %s141
          %s143 = sand.u32 %s55, 1
          %s144 = smul.addr %s143, 1152
          %s145 = scalar_lea.vmem [#allocation7], %s144
          %s146 = smul.u32 24, %s19
          %s148 = ssub.s32 18432, 18432
          %149 = vsyncadd %s142, %s148
          %s150 = smul.addr %s146, 6
          %s151 = smul.addr %s150, 128
          %s152 = scalar_lea.hbm %s2, %s151
          %s153 = sshll.u32 %s145, 4
          %s154 = int_to_ptr.vmem [resolvable:$true] %s153
          %159 = dma.hbm_to_vmem [thread:$0]  %s152, 18432, %s154, %s142, 768, 768, 48
        $region24: #{tpu_custom_call.1} parent=15 // pred_fallthru
          _
      $region16: #{tpu_custom_call.1} parent=5 // pred_fallthru
        _
      %p160 = scmp.le.s32.totalorder 1, %s19
      %p161 = scmp.lt.s32.totalorder %s19, 3
      %p162 = pnand %p160, %p161
      %p163 = pneg %p162
      // Predicated region
      $region25: #{tpu_custom_call.1} parent=5 // pred_check
        _
      $region26: #{tpu_custom_call.1} parent=5 // pred_check_branch
        %165 = sbr.rel (%p162) target = $region28
      $region27: #{tpu_custom_call.1} parent=5 // pred_region
        %s166 = ssub.s32 %s19, 1
        %s167 = sand.u32 %s32, 1
        %s168 = scalar_lea.sflag [#allocation5], %s167
        %s169 = sand.u32 %s32, 1
        %s170 = smul.addr %s169, 1152
        %s171 = scalar_lea.vmem [#allocation4], %s170
        // Predicated region
        $region29: #{tpu_custom_call.1} parent=27 // pred_check
          %p172 = pneg %p45
        $region30: #{tpu_custom_call.1} parent=27 // pred_check_branch
          %174 = sbr.rel (%p172) target = $region32
        $region31: #{tpu_custom_call.1} parent=27 // pred_region
          %175 = dma.done %s168, 18432
        $region32: #{tpu_custom_call.1} parent=27 // pred_fallthru
          _
        %s176 = sand.u32 %s58, 1
        %s177 = scalar_lea.sflag [#allocation8], %s176
        %s178 = sand.u32 %s58, 1
        %s179 = smul.addr %s178, 1152
        %s180 = scalar_lea.vmem [#allocation7], %s179
        // Predicated region
        $region33: #{tpu_custom_call.1} parent=27 // pred_check
          %p181 = pneg %p71
        $region34: #{tpu_custom_call.1} parent=27 // pred_check_branch
          %183 = sbr.rel (%p181) target = $region36
        $region35: #{tpu_custom_call.1} parent=27 // pred_region
          %184 = dma.done %s177, 18432
        $region36: #{tpu_custom_call.1} parent=27 // pred_fallthru
          _
        %s185 = sand.u32 %s32, 1
        %s186 = scalar_lea.sflag [#allocation5], %s185
        %s187 = sand.u32 %s32, 1
        %s188 = smul.addr %s187, 1152
        %s189 = scalar_lea.vmem [#allocation4], %s188
        %p190 = pneg %p45
        %p191 = pneg %p42
        %s192 = sand.u32 %s58, 1
        %s193 = scalar_lea.sflag [#allocation8], %s192
        %s194 = sand.u32 %s58, 1
        %s195 = smul.addr %s194, 1152
        %s196 = scalar_lea.vmem [#allocation7], %s195
        %p197 = pneg %p71
        %p198 = pneg %p68
        %p199 = pneg %p97
        %p200 = pneg %p94
        %s201 = sand.u32 %s84, 1
        %s202 = scalar_lea.sflag [#allocation6], %s201
        %s203 = sand.u32 %s84, 1
        %s204 = smul.addr %s203, 1152
        %s205 = scalar_lea.vmem [#allocation9], %s204
        %s206 = smul.u32 24, %s24
        %s207 = smul.u32 24, %s24
        %s208 = smul.u32 24, %s24
        %s209 = smul.u32 %s24, 192
        %s210 = sld [smem:[#allocation3]]
        %v211 = vlaneseq
        %v212 = vshrl.u32 %v211, 7
        %v213 = vadd.s32 %v212, 8
        %v214 = vadd.s32 %v212, 16
        %v215 = vadd.s32 %v212, 24
        %v216 = vadd.s32 %v212, 32
        %v217 = vadd.s32 %v212, 40
        %v218 = vadd.s32 %v212, 48
        %v219 = vadd.s32 %v212, 56
        %v220 = vadd.s32 %v212, 64
        %v221 = vadd.s32 %v212, 72
        %v222 = vadd.s32 %v212, 80
        %v223 = vadd.s32 %v212, 88
        %v224 = vadd.s32 %v212, 96
        %v225 = vadd.s32 %v212, 104
        %v226 = vadd.s32 %v212, 112
        %v227 = vadd.s32 %v212, 120
        %v228 = vadd.s32 %v212, 128
        %v229 = vadd.s32 %v212, 136
        %v230 = vadd.s32 %v212, 144
        %v231 = vadd.s32 %v212, 152
        %v232 = vadd.s32 %v212, 160
        %v233 = vadd.s32 %v212, 168
        %v234 = vadd.s32 %v212, 176
        %v235 = vadd.s32 %v212, 184
        %v236 = vstv %s209
        %v237 = vadd.s32 %v212, %v236
        %v238 = vadd.s32 %v213, %v236
        %v239 = vadd.s32 %v214, %v236
        %v240 = vadd.s32 %v215, %v236
        %v241 = vadd.s32 %v216, %v236
        %v242 = vadd.s32 %v217, %v236
        %v243 = vadd.s32 %v218, %v236
        %v244 = vadd.s32 %v219, %v236
        %v245 = vadd.s32 %v220, %v236
        %v246 = vadd.s32 %v221, %v236
        %v247 = vadd.s32 %v222, %v236
        %v248 = vadd.s32 %v223, %v236
        %v249 = vadd.s32 %v224, %v236
        %v250 = vadd.s32 %v225, %v236
        %v251 = vadd.s32 %v226, %v236
        %v252 = vadd.s32 %v227, %v236
        %v253 = vadd.s32 %v228, %v236
        %v254 = vadd.s32 %v229, %v236
        %v255 = vadd.s32 %v230, %v236
        %v256 = vadd.s32 %v231, %v236
        %v257 = vadd.s32 %v232, %v236
        %v258 = vadd.s32 %v233, %v236
        %v259 = vadd.s32 %v234, %v236
        %v260 = vadd.s32 %v235, %v236
        %v261 = vlaneseq
        %v262 = vand.u32 %v261, 127
        %v263 = vadd.s32 %v262, 128
        %v264 = vadd.s32 %v262, 256
        %v265 = vadd.s32 %v262, 384
        %v266 = vadd.s32 %v262, 512
        %v267 = vadd.s32 %v262, 640
        %v268 = vmul.u32 %v237, 768
        %v269 = vmul.u32 %v238, 768
        %v270 = vmul.u32 %v239, 768
        %v271 = vmul.u32 %v240, 768
        %v272 = vmul.u32 %v241, 768
        %v273 = vmul.u32 %v242, 768
        %v274 = vmul.u32 %v243, 768
        %v275 = vmul.u32 %v244, 768
        %v276 = vmul.u32 %v245, 768
        %v277 = vmul.u32 %v246, 768
        %v278 = vmul.u32 %v247, 768
        %v279 = vmul.u32 %v248, 768
        %v280 = vmul.u32 %v249, 768
        %v281 = vmul.u32 %v250, 768
        %v282 = vmul.u32 %v251, 768
        %v283 = vmul.u32 %v252, 768
        %v284 = vmul.u32 %v253, 768
        %v285 = vmul.u32 %v254, 768
        %v286 = vmul.u32 %v255, 768
        %v287 = vmul.u32 %v256, 768
        %v288 = vmul.u32 %v257, 768
        %v289 = vmul.u32 %v258, 768
        %v290 = vmul.u32 %v259, 768
        %v291 = vmul.u32 %v260, 768
        %v292 = vadd.s32 %v268, %v262
        %v293 = vadd.s32 %v268, %v263
        %v294 = vadd.s32 %v268, %v264
        %v295 = vadd.s32 %v268, %v265
        %v296 = vadd.s32 %v268, %v266
        %v297 = vadd.s32 %v268, %v267
        %v298 = vadd.s32 %v269, %v262
        %v299 = vadd.s32 %v269, %v263
        %v300 = vadd.s32 %v269, %v264
        %v301 = vadd.s32 %v269, %v265
        %v302 = vadd.s32 %v269, %v266
        %v303 = vadd.s32 %v269, %v267
        %v304 = vadd.s32 %v270, %v262
        %v305 = vadd.s32 %v270, %v263
        %v306 = vadd.s32 %v270, %v264
        %v307 = vadd.s32 %v270, %v265
        %v308 = vadd.s32 %v270, %v266
        %v309 = vadd.s32 %v270, %v267
        %v310 = vadd.s32 %v271, %v262
        %v311 = vadd.s32 %v271, %v263
        %v312 = vadd.s32 %v271, %v264
        %v313 = vadd.s32 %v271, %v265
        %v314 = vadd.s32 %v271, %v266
        %v315 = vadd.s32 %v271, %v267
        %v316 = vadd.s32 %v272, %v262
        %v317 = vadd.s32 %v272, %v263
        %v318 = vadd.s32 %v272, %v264
        %v319 = vadd.s32 %v272, %v265
        %v320 = vadd.s32 %v272, %v266
        %v321 = vadd.s32 %v272, %v267
        %v322 = vadd.s32 %v273, %v262
        %v323 = vadd.s32 %v273, %v263
        %v324 = vadd.s32 %v273, %v264
        %v325 = vadd.s32 %v273, %v265
        %v326 = vadd.s32 %v273, %v266
        %v327 = vadd.s32 %v273, %v267
        %v328 = vadd.s32 %v274, %v262
        %v329 = vadd.s32 %v274, %v263
        %v330 = vadd.s32 %v274, %v264
        %v331 = vadd.s32 %v274, %v265
        %v332 = vadd.s32 %v274, %v266
        %v333 = vadd.s32 %v274, %v267
        %v334 = vadd.s32 %v275, %v262
        %v335 = vadd.s32 %v275, %v263
        %v336 = vadd.s32 %v275, %v264
        %v337 = vadd.s32 %v275, %v265
        %v338 = vadd.s32 %v275, %v266
        %v339 = vadd.s32 %v275, %v267
        %v340 = vadd.s32 %v276, %v262
        %v341 = vadd.s32 %v276, %v263
        %v342 = vadd.s32 %v276, %v264
        %v343 = vadd.s32 %v276, %v265
        %v344 = vadd.s32 %v276, %v266
        %v345 = vadd.s32 %v276, %v267
        %v346 = vadd.s32 %v277, %v262
        %v347 = vadd.s32 %v277, %v263
        %v348 = vadd.s32 %v277, %v264
        %v349 = vadd.s32 %v277, %v265
        %v350 = vadd.s32 %v277, %v266
        %v351 = vadd.s32 %v277, %v267
        %v352 = vadd.s32 %v278, %v262
        %v353 = vadd.s32 %v278, %v263
        %v354 = vadd.s32 %v278, %v264
        %v355 = vadd.s32 %v278, %v265
        %v356 = vadd.s32 %v278, %v266
        %v357 = vadd.s32 %v278, %v267
        %v358 = vadd.s32 %v279, %v262
        %v359 = vadd.s32 %v279, %v263
        %v360 = vadd.s32 %v279, %v264
        %v361 = vadd.s32 %v279, %v265
        %v362 = vadd.s32 %v279, %v266
        %v363 = vadd.s32 %v279, %v267
        %v364 = vadd.s32 %v280, %v262
        %v365 = vadd.s32 %v280, %v263
        %v366 = vadd.s32 %v280, %v264
        %v367 = vadd.s32 %v280, %v265
        %v368 = vadd.s32 %v280, %v266
        %v369 = vadd.s32 %v280, %v267
        %v370 = vadd.s32 %v281, %v262
        %v371 = vadd.s32 %v281, %v263
        %v372 = vadd.s32 %v281, %v264
        %v373 = vadd.s32 %v281, %v265
        %v374 = vadd.s32 %v281, %v266
        %v375 = vadd.s32 %v281, %v267
        %v376 = vadd.s32 %v282, %v262
        %v377 = vadd.s32 %v282, %v263
        %v378 = vadd.s32 %v282, %v264
        %v379 = vadd.s32 %v282, %v265
        %v380 = vadd.s32 %v282, %v266
        %v381 = vadd.s32 %v282, %v267
        %v382 = vadd.s32 %v283, %v262
        %v383 = vadd.s32 %v283, %v263
        %v384 = vadd.s32 %v283, %v264
        %v385 = vadd.s32 %v283, %v265
        %v386 = vadd.s32 %v283, %v266
        %v387 = vadd.s32 %v283, %v267
        %v388 = vadd.s32 %v284, %v262
        %v389 = vadd.s32 %v284, %v263
        %v390 = vadd.s32 %v284, %v264
        %v391 = vadd.s32 %v284, %v265
        %v392 = vadd.s32 %v284, %v266
        %v393 = vadd.s32 %v284, %v267
        %v394 = vadd.s32 %v285, %v262
        %v395 = vadd.s32 %v285, %v263
        %v396 = vadd.s32 %v285, %v264
        %v397 = vadd.s32 %v285, %v265
        %v398 = vadd.s32 %v285, %v266
        %v399 = vadd.s32 %v285, %v267
        %v400 = vadd.s32 %v286, %v262
        %v401 = vadd.s32 %v286, %v263
        %v402 = vadd.s32 %v286, %v264
        %v403 = vadd.s32 %v286, %v265
        %v404 = vadd.s32 %v286, %v266
        %v405 = vadd.s32 %v286, %v267
        %v406 = vadd.s32 %v287, %v262
        %v407 = vadd.s32 %v287, %v263
        %v408 = vadd.s32 %v287, %v264
        %v409 = vadd.s32 %v287, %v265
        %v410 = vadd.s32 %v287, %v266
        %v411 = vadd.s32 %v287, %v267
        %v412 = vadd.s32 %v288, %v262
        %v413 = vadd.s32 %v288, %v263
        %v414 = vadd.s32 %v288, %v264
        %v415 = vadd.s32 %v288, %v265
        %v416 = vadd.s32 %v288, %v266
        %v417 = vadd.s32 %v288, %v267
        %v418 = vadd.s32 %v289, %v262
        %v419 = vadd.s32 %v289, %v263
        %v420 = vadd.s32 %v289, %v264
        %v421 = vadd.s32 %v289, %v265
        %v422 = vadd.s32 %v289, %v266
        %v423 = vadd.s32 %v289, %v267
        %v424 = vadd.s32 %v290, %v262
        %v425 = vadd.s32 %v290, %v263
        %v426 = vadd.s32 %v290, %v264
        %v427 = vadd.s32 %v290, %v265
        %v428 = vadd.s32 %v290, %v266
        %v429 = vadd.s32 %v290, %v267
        %v430 = vadd.s32 %v291, %v262
        %v431 = vadd.s32 %v291, %v263
        %v432 = vadd.s32 %v291, %v264
        %v433 = vadd.s32 %v291, %v265
        %v434 = vadd.s32 %v291, %v266
        %v435 = vadd.s32 %v291, %v267
        %s436 = smul.u32 %s210, 2654435769
        %v437 = vstv %s436
        %v438 = vxor.u32 %v292, %v437
        %v439 = vxor.u32 %v293, %v437
        %v440 = vxor.u32 %v294, %v437
        %v441 = vxor.u32 %v295, %v437
        %v442 = vxor.u32 %v296, %v437
        %v443 = vxor.u32 %v297, %v437
        %v444 = vxor.u32 %v298, %v437
        %v445 = vxor.u32 %v299, %v437
        %v446 = vxor.u32 %v300, %v437
        %v447 = vxor.u32 %v301, %v437
        %v448 = vxor.u32 %v302, %v437
        %v449 = vxor.u32 %v303, %v437
        %v450 = vxor.u32 %v304, %v437
        %v451 = vxor.u32 %v305, %v437
        %v452 = vxor.u32 %v306, %v437
        %v453 = vxor.u32 %v307, %v437
        %v454 = vxor.u32 %v308, %v437
        %v455 = vxor.u32 %v309, %v437
        %v456 = vxor.u32 %v310, %v437
        %v457 = vxor.u32 %v311, %v437
        %v458 = vxor.u32 %v312, %v437
        %v459 = vxor.u32 %v313, %v437
        %v460 = vxor.u32 %v314, %v437
        %v461 = vxor.u32 %v315, %v437
        %v462 = vxor.u32 %v316, %v437
        %v463 = vxor.u32 %v317, %v437
        %v464 = vxor.u32 %v318, %v437
        %v465 = vxor.u32 %v319, %v437
        %v466 = vxor.u32 %v320, %v437
        %v467 = vxor.u32 %v321, %v437
        %v468 = vxor.u32 %v322, %v437
        %v469 = vxor.u32 %v323, %v437
        %v470 = vxor.u32 %v324, %v437
        %v471 = vxor.u32 %v325, %v437
        %v472 = vxor.u32 %v326, %v437
        %v473 = vxor.u32 %v327, %v437
        %v474 = vxor.u32 %v328, %v437
        %v475 = vxor.u32 %v329, %v437
        %v476 = vxor.u32 %v330, %v437
        %v477 = vxor.u32 %v331, %v437
        %v478 = vxor.u32 %v332, %v437
        %v479 = vxor.u32 %v333, %v437
        %v480 = vxor.u32 %v334, %v437
        %v481 = vxor.u32 %v335, %v437
        %v482 = vxor.u32 %v336, %v437
        %v483 = vxor.u32 %v337, %v437
        %v484 = vxor.u32 %v338, %v437
        %v485 = vxor.u32 %v339, %v437
        %v486 = vxor.u32 %v340, %v437
        %v487 = vxor.u32 %v341, %v437
        %v488 = vxor.u32 %v342, %v437
        %v489 = vxor.u32 %v343, %v437
        %v490 = vxor.u32 %v344, %v437
        %v491 = vxor.u32 %v345, %v437
        %v492 = vxor.u32 %v346, %v437
        %v493 = vxor.u32 %v347, %v437
        %v494 = vxor.u32 %v348, %v437
        %v495 = vxor.u32 %v349, %v437
        %v496 = vxor.u32 %v350, %v437
        %v497 = vxor.u32 %v351, %v437
        %v498 = vxor.u32 %v352, %v437
        %v499 = vxor.u32 %v353, %v437
        %v500 = vxor.u32 %v354, %v437
        %v501 = vxor.u32 %v355, %v437
        %v502 = vxor.u32 %v356, %v437
        %v503 = vxor.u32 %v357, %v437
        %v504 = vxor.u32 %v358, %v437
        %v505 = vxor.u32 %v359, %v437
        %v506 = vxor.u32 %v360, %v437
        %v507 = vxor.u32 %v361, %v437
        %v508 = vxor.u32 %v362, %v437
        %v509 = vxor.u32 %v363, %v437
        %v510 = vxor.u32 %v364, %v437
        %v511 = vxor.u32 %v365, %v437
        %v512 = vxor.u32 %v366, %v437
        %v513 = vxor.u32 %v367, %v437
        %v514 = vxor.u32 %v368, %v437
        %v515 = vxor.u32 %v369, %v437
        %v516 = vxor.u32 %v370, %v437
        %v517 = vxor.u32 %v371, %v437
        %v518 = vxor.u32 %v372, %v437
        %v519 = vxor.u32 %v373, %v437
        %v520 = vxor.u32 %v374, %v437
        %v521 = vxor.u32 %v375, %v437
        %v522 = vxor.u32 %v376, %v437
        %v523 = vxor.u32 %v377, %v437
        %v524 = vxor.u32 %v378, %v437
        %v525 = vxor.u32 %v379, %v437
        %v526 = vxor.u32 %v380, %v437
        %v527 = vxor.u32 %v381, %v437
        %v528 = vxor.u32 %v382, %v437
        %v529 = vxor.u32 %v383, %v437
        %v530 = vxor.u32 %v384, %v437
        %v531 = vxor.u32 %v385, %v437
        %v532 = vxor.u32 %v386, %v437
        %v533 = vxor.u32 %v387, %v437
        %v534 = vxor.u32 %v388, %v437
        %v535 = vxor.u32 %v389, %v437
        %v536 = vxor.u32 %v390, %v437
        %v537 = vxor.u32 %v391, %v437
        %v538 = vxor.u32 %v392, %v437
        %v539 = vxor.u32 %v393, %v437
        %v540 = vxor.u32 %v394, %v437
        %v541 = vxor.u32 %v395, %v437
        %v542 = vxor.u32 %v396, %v437
        %v543 = vxor.u32 %v397, %v437
        %v544 = vxor.u32 %v398, %v437
        %v545 = vxor.u32 %v399, %v437
        %v546 = vxor.u32 %v400, %v437
        %v547 = vxor.u32 %v401, %v437
        %v548 = vxor.u32 %v402, %v437
        %v549 = vxor.u32 %v403, %v437
        %v550 = vxor.u32 %v404, %v437
        %v551 = vxor.u32 %v405, %v437
        %v552 = vxor.u32 %v406, %v437
        %v553 = vxor.u32 %v407, %v437
        %v554 = vxor.u32 %v408, %v437
        %v555 = vxor.u32 %v409, %v437
        %v556 = vxor.u32 %v410, %v437
        %v557 = vxor.u32 %v411, %v437
        %v558 = vxor.u32 %v412, %v437
        %v559 = vxor.u32 %v413, %v437
        %v560 = vxor.u32 %v414, %v437
        %v561 = vxor.u32 %v415, %v437
        %v562 = vxor.u32 %v416, %v437
        %v563 = vxor.u32 %v417, %v437
        %v564 = vxor.u32 %v418, %v437
        %v565 = vxor.u32 %v419, %v437
        %v566 = vxor.u32 %v420, %v437
        %v567 = vxor.u32 %v421, %v437
        %v568 = vxor.u32 %v422, %v437
        %v569 = vxor.u32 %v423, %v437
        %v570 = vxor.u32 %v424, %v437
        %v571 = vxor.u32 %v425, %v437
        %v572 = vxor.u32 %v426, %v437
        %v573 = vxor.u32 %v427, %v437
        %v574 = vxor.u32 %v428, %v437
        %v575 = vxor.u32 %v429, %v437
        %v576 = vxor.u32 %v430, %v437
        %v577 = vxor.u32 %v431, %v437
        %v578 = vxor.u32 %v432, %v437
        %v579 = vxor.u32 %v433, %v437
        %v580 = vxor.u32 %v434, %v437
        %v581 = vxor.u32 %v435, %v437
        %v582 = vshrl.u32 %v438, 16
        %v583 = vshrl.u32 %v439, 16
        %v584 = vshrl.u32 %v440, 16
        %v585 = vshrl.u32 %v441, 16
        %v586 = vshrl.u32 %v442, 16
        %v587 = vshrl.u32 %v443, 16
        %v588 = vshrl.u32 %v444, 16
        %v589 = vshrl.u32 %v445, 16
        %v590 = vshrl.u32 %v446, 16
        %v591 = vshrl.u32 %v447, 16
        %v592 = vshrl.u32 %v448, 16
        %v593 = vshrl.u32 %v449, 16
        %v594 = vshrl.u32 %v450, 16
        %v595 = vshrl.u32 %v451, 16
        %v596 = vshrl.u32 %v452, 16
        %v597 = vshrl.u32 %v453, 16
        %v598 = vshrl.u32 %v454, 16
        %v599 = vshrl.u32 %v455, 16
        %v600 = vshrl.u32 %v456, 16
        %v601 = vshrl.u32 %v457, 16
        %v602 = vshrl.u32 %v458, 16
        %v603 = vshrl.u32 %v459, 16
        %v604 = vshrl.u32 %v460, 16
        %v605 = vshrl.u32 %v461, 16
        %v606 = vshrl.u32 %v462, 16
        %v607 = vshrl.u32 %v463, 16
        %v608 = vshrl.u32 %v464, 16
        %v609 = vshrl.u32 %v465, 16
        %v610 = vshrl.u32 %v466, 16
        %v611 = vshrl.u32 %v467, 16
        %v612 = vshrl.u32 %v468, 16
        %v613 = vshrl.u32 %v469, 16
        %v614 = vshrl.u32 %v470, 16
        %v615 = vshrl.u32 %v471, 16
        %v616 = vshrl.u32 %v472, 16
        %v617 = vshrl.u32 %v473, 16
        %v618 = vshrl.u32 %v474, 16
        %v619 = vshrl.u32 %v475, 16
        %v620 = vshrl.u32 %v476, 16
        %v621 = vshrl.u32 %v477, 16
        %v622 = vshrl.u32 %v478, 16
        %v623 = vshrl.u32 %v479, 16
        %v624 = vshrl.u32 %v480, 16
        %v625 = vshrl.u32 %v481, 16
        %v626 = vshrl.u32 %v482, 16
        %v627 = vshrl.u32 %v483, 16
        %v628 = vshrl.u32 %v484, 16
        %v629 = vshrl.u32 %v485, 16
        %v630 = vshrl.u32 %v486, 16
        %v631 = vshrl.u32 %v487, 16
        %v632 = vshrl.u32 %v488, 16
        %v633 = vshrl.u32 %v489, 16
        %v634 = vshrl.u32 %v490, 16
        %v635 = vshrl.u32 %v491, 16
        %v636 = vshrl.u32 %v492, 16
        %v637 = vshrl.u32 %v493, 16
        %v638 = vshrl.u32 %v494, 16
        %v639 = vshrl.u32 %v495, 16
        %v640 = vshrl.u32 %v496, 16
        %v641 = vshrl.u32 %v497, 16
        %v642 = vshrl.u32 %v498, 16
        %v643 = vshrl.u32 %v499, 16
        %v644 = vshrl.u32 %v500, 16
        %v645 = vshrl.u32 %v501, 16
        %v646 = vshrl.u32 %v502, 16
        %v647 = vshrl.u32 %v503, 16
        %v648 = vshrl.u32 %v504, 16
        %v649 = vshrl.u32 %v505, 16
        %v650 = vshrl.u32 %v506, 16
        %v651 = vshrl.u32 %v507, 16
        %v652 = vshrl.u32 %v508, 16
        %v653 = vshrl.u32 %v509, 16
        %v654 = vshrl.u32 %v510, 16
        %v655 = vshrl.u32 %v511, 16
        %v656 = vshrl.u32 %v512, 16
        %v657 = vshrl.u32 %v513, 16
        %v658 = vshrl.u32 %v514, 16
        %v659 = vshrl.u32 %v515, 16
        %v660 = vshrl.u32 %v516, 16
        %v661 = vshrl.u32 %v517, 16
        %v662 = vshrl.u32 %v518, 16
        %v663 = vshrl.u32 %v519, 16
        %v664 = vshrl.u32 %v520, 16
        %v665 = vshrl.u32 %v521, 16
        %v666 = vshrl.u32 %v522, 16
        %v667 = vshrl.u32 %v523, 16
        %v668 = vshrl.u32 %v524, 16
        %v669 = vshrl.u32 %v525, 16
        %v670 = vshrl.u32 %v526, 16
        %v671 = vshrl.u32 %v527, 16
        %v672 = vshrl.u32 %v528, 16
        %v673 = vshrl.u32 %v529, 16
        %v674 = vshrl.u32 %v530, 16
        %v675 = vshrl.u32 %v531, 16
        %v676 = vshrl.u32 %v532, 16
        %v677 = vshrl.u32 %v533, 16
        %v678 = vshrl.u32 %v534, 16
        %v679 = vshrl.u32 %v535, 16
        %v680 = vshrl.u32 %v536, 16
        %v681 = vshrl.u32 %v537, 16
        %v682 = vshrl.u32 %v538, 16
        %v683 = vshrl.u32 %v539, 16
        %v684 = vshrl.u32 %v540, 16
        %v685 = vshrl.u32 %v541, 16
        %v686 = vshrl.u32 %v542, 16
        %v687 = vshrl.u32 %v543, 16
        %v688 = vshrl.u32 %v544, 16
        %v689 = vshrl.u32 %v545, 16
        %v690 = vshrl.u32 %v546, 16
        %v691 = vshrl.u32 %v547, 16
        %v692 = vshrl.u32 %v548, 16
        %v693 = vshrl.u32 %v549, 16
        %v694 = vshrl.u32 %v550, 16
        %v695 = vshrl.u32 %v551, 16
        %v696 = vshrl.u32 %v552, 16
        %v697 = vshrl.u32 %v553, 16
        %v698 = vshrl.u32 %v554, 16
        %v699 = vshrl.u32 %v555, 16
        %v700 = vshrl.u32 %v556, 16
        %v701 = vshrl.u32 %v557, 16
        %v702 = vshrl.u32 %v558, 16
        %v703 = vshrl.u32 %v559, 16
        %v704 = vshrl.u32 %v560, 16
        %v705 = vshrl.u32 %v561, 16
        %v706 = vshrl.u32 %v562, 16
        %v707 = vshrl.u32 %v563, 16
        %v708 = vshrl.u32 %v564, 16
        %v709 = vshrl.u32 %v565, 16
        %v710 = vshrl.u32 %v566, 16
        %v711 = vshrl.u32 %v567, 16
        %v712 = vshrl.u32 %v568, 16
        %v713 = vshrl.u32 %v569, 16
        %v714 = vshrl.u32 %v570, 16
        %v715 = vshrl.u32 %v571, 16
        %v716 = vshrl.u32 %v572, 16
        %v717 = vshrl.u32 %v573, 16
        %v718 = vshrl.u32 %v574, 16
        %v719 = vshrl.u32 %v575, 16
        %v720 = vshrl.u32 %v576, 16
        %v721 = vshrl.u32 %v577, 16
        %v722 = vshrl.u32 %v578, 16
        %v723 = vshrl.u32 %v579, 16
        %v724 = vshrl.u32 %v580, 16
        %v725 = vshrl.u32 %v581, 16
        %v726 = vxor.u32 %v438, %v582
        %v727 = vxor.u32 %v439, %v583
        %v728 = vxor.u32 %v440, %v584
        %v729 = vxor.u32 %v441, %v585
        %v730 = vxor.u32 %v442, %v586
        %v731 = vxor.u32 %v443, %v587
        %v732 = vxor.u32 %v444, %v588
        %v733 = vxor.u32 %v445, %v589
        %v734 = vxor.u32 %v446, %v590
        %v735 = vxor.u32 %v447, %v591
        %v736 = vxor.u32 %v448, %v592
        %v737 = vxor.u32 %v449, %v593
        %v738 = vxor.u32 %v450, %v594
        %v739 = vxor.u32 %v451, %v595
        %v740 = vxor.u32 %v452, %v596
        %v741 = vxor.u32 %v453, %v597
        %v742 = vxor.u32 %v454, %v598
        %v743 = vxor.u32 %v455, %v599
        %v744 = vxor.u32 %v456, %v600
        %v745 = vxor.u32 %v457, %v601
        %v746 = vxor.u32 %v458, %v602
        %v747 = vxor.u32 %v459, %v603
        %v748 = vxor.u32 %v460, %v604
        %v749 = vxor.u32 %v461, %v605
        %v750 = vxor.u32 %v462, %v606
        %v751 = vxor.u32 %v463, %v607
        %v752 = vxor.u32 %v464, %v608
        %v753 = vxor.u32 %v465, %v609
        %v754 = vxor.u32 %v466, %v610
        %v755 = vxor.u32 %v467, %v611
        %v756 = vxor.u32 %v468, %v612
        %v757 = vxor.u32 %v469, %v613
        %v758 = vxor.u32 %v470, %v614
        %v759 = vxor.u32 %v471, %v615
        %v760 = vxor.u32 %v472, %v616
        %v761 = vxor.u32 %v473, %v617
        %v762 = vxor.u32 %v474, %v618
        %v763 = vxor.u32 %v475, %v619
        %v764 = vxor.u32 %v476, %v620
        %v765 = vxor.u32 %v477, %v621
        %v766 = vxor.u32 %v478, %v622
        %v767 = vxor.u32 %v479, %v623
        %v768 = vxor.u32 %v480, %v624
        %v769 = vxor.u32 %v481, %v625
        %v770 = vxor.u32 %v482, %v626
        %v771 = vxor.u32 %v483, %v627
        %v772 = vxor.u32 %v484, %v628
        %v773 = vxor.u32 %v485, %v629
        %v774 = vxor.u32 %v486, %v630
        %v775 = vxor.u32 %v487, %v631
        %v776 = vxor.u32 %v488, %v632
        %v777 = vxor.u32 %v489, %v633
        %v778 = vxor.u32 %v490, %v634
        %v779 = vxor.u32 %v491, %v635
        %v780 = vxor.u32 %v492, %v636
        %v781 = vxor.u32 %v493, %v637
        %v782 = vxor.u32 %v494, %v638
        %v783 = vxor.u32 %v495, %v639
        %v784 = vxor.u32 %v496, %v640
        %v785 = vxor.u32 %v497, %v641
        %v786 = vxor.u32 %v498, %v642
        %v787 = vxor.u32 %v499, %v643
        %v788 = vxor.u32 %v500, %v644
        %v789 = vxor.u32 %v501, %v645
        %v790 = vxor.u32 %v502, %v646
        %v791 = vxor.u32 %v503, %v647
        %v792 = vxor.u32 %v504, %v648
        %v793 = vxor.u32 %v505, %v649
        %v794 = vxor.u32 %v506, %v650
        %v795 = vxor.u32 %v507, %v651
        %v796 = vxor.u32 %v508, %v652
        %v797 = vxor.u32 %v509, %v653
        %v798 = vxor.u32 %v510, %v654
        %v799 = vxor.u32 %v511, %v655
        %v800 = vxor.u32 %v512, %v656
        %v801 = vxor.u32 %v513, %v657
        %v802 = vxor.u32 %v514, %v658
        %v803 = vxor.u32 %v515, %v659
        %v804 = vxor.u32 %v516, %v660
        %v805 = vxor.u32 %v517, %v661
        %v806 = vxor.u32 %v518, %v662
        %v807 = vxor.u32 %v519, %v663
        %v808 = vxor.u32 %v520, %v664
        %v809 = vxor.u32 %v521, %v665
        %v810 = vxor.u32 %v522, %v666
        %v811 = vxor.u32 %v523, %v667
        %v812 = vxor.u32 %v524, %v668
        %v813 = vxor.u32 %v525, %v669
        %v814 = vxor.u32 %v526, %v670
        %v815 = vxor.u32 %v527, %v671
        %v816 = vxor.u32 %v528, %v672
        %v817 = vxor.u32 %v529, %v673
        %v818 = vxor.u32 %v530, %v674
        %v819 = vxor.u32 %v531, %v675
        %v820 = vxor.u32 %v532, %v676
        %v821 = vxor.u32 %v533, %v677
        %v822 = vxor.u32 %v534, %v678
        %v823 = vxor.u32 %v535, %v679
        %v824 = vxor.u32 %v536, %v680
        %v825 = vxor.u32 %v537, %v681
        %v826 = vxor.u32 %v538, %v682
        %v827 = vxor.u32 %v539, %v683
        %v828 = vxor.u32 %v540, %v684
        %v829 = vxor.u32 %v541, %v685
        %v830 = vxor.u32 %v542, %v686
        %v831 = vxor.u32 %v543, %v687
        %v832 = vxor.u32 %v544, %v688
        %v833 = vxor.u32 %v545, %v689
        %v834 = vxor.u32 %v546, %v690
        %v835 = vxor.u32 %v547, %v691
        %v836 = vxor.u32 %v548, %v692
        %v837 = vxor.u32 %v549, %v693
        %v838 = vxor.u32 %v550, %v694
        %v839 = vxor.u32 %v551, %v695
        %v840 = vxor.u32 %v552, %v696
        %v841 = vxor.u32 %v553, %v697
        %v842 = vxor.u32 %v554, %v698
        %v843 = vxor.u32 %v555, %v699
        %v844 = vxor.u32 %v556, %v700
        %v845 = vxor.u32 %v557, %v701
        %v846 = vxor.u32 %v558, %v702
        %v847 = vxor.u32 %v559, %v703
        %v848 = vxor.u32 %v560, %v704
        %v849 = vxor.u32 %v561, %v705
        %v850 = vxor.u32 %v562, %v706
        %v851 = vxor.u32 %v563, %v707
        %v852 = vxor.u32 %v564, %v708
        %v853 = vxor.u32 %v565, %v709
        %v854 = vxor.u32 %v566, %v710
        %v855 = vxor.u32 %v567, %v711
        %v856 = vxor.u32 %v568, %v712
        %v857 = vxor.u32 %v569, %v713
        %v858 = vxor.u32 %v570, %v714
        %v859 = vxor.u32 %v571, %v715
        %v860 = vxor.u32 %v572, %v716
        %v861 = vxor.u32 %v573, %v717
        %v862 = vxor.u32 %v574, %v718
        %v863 = vxor.u32 %v575, %v719
        %v864 = vxor.u32 %v576, %v720
        %v865 = vxor.u32 %v577, %v721
        %v866 = vxor.u32 %v578, %v722
        %v867 = vxor.u32 %v579, %v723
        %v868 = vxor.u32 %v580, %v724
        %v869 = vxor.u32 %v581, %v725
        %v870 = vmul.u32 %v726, 2146121005
        %v871 = vmul.u32 %v727, 2146121005
        %v872 = vmul.u32 %v728, 2146121005
        %v873 = vmul.u32 %v729, 2146121005
        %v874 = vmul.u32 %v730, 2146121005
        %v875 = vmul.u32 %v731, 2146121005
        %v876 = vmul.u32 %v732, 2146121005
        %v877 = vmul.u32 %v733, 2146121005
        %v878 = vmul.u32 %v734, 2146121005
        %v879 = vmul.u32 %v735, 2146121005
        %v880 = vmul.u32 %v736, 2146121005
        %v881 = vmul.u32 %v737, 2146121005
        %v882 = vmul.u32 %v738, 2146121005
        %v883 = vmul.u32 %v739, 2146121005
        %v884 = vmul.u32 %v740, 2146121005
        %v885 = vmul.u32 %v741, 2146121005
        %v886 = vmul.u32 %v742, 2146121005
        %v887 = vmul.u32 %v743, 2146121005
        %v888 = vmul.u32 %v744, 2146121005
        %v889 = vmul.u32 %v745, 2146121005
        %v890 = vmul.u32 %v746, 2146121005
        %v891 = vmul.u32 %v747, 2146121005
        %v892 = vmul.u32 %v748, 2146121005
        %v893 = vmul.u32 %v749, 2146121005
        %v894 = vmul.u32 %v750, 2146121005
        %v895 = vmul.u32 %v751, 2146121005
        %v896 = vmul.u32 %v752, 2146121005
        %v897 = vmul.u32 %v753, 2146121005
        %v898 = vmul.u32 %v754, 2146121005
        %v899 = vmul.u32 %v755, 2146121005
        %v900 = vmul.u32 %v756, 2146121005
        %v901 = vmul.u32 %v757, 2146121005
        %v902 = vmul.u32 %v758, 2146121005
        %v903 = vmul.u32 %v759, 2146121005
        %v904 = vmul.u32 %v760, 2146121005
        %v905 = vmul.u32 %v761, 2146121005
        %v906 = vmul.u32 %v762, 2146121005
        %v907 = vmul.u32 %v763, 2146121005
        %v908 = vmul.u32 %v764, 2146121005
        %v909 = vmul.u32 %v765, 2146121005
        %v910 = vmul.u32 %v766, 2146121005
        %v911 = vmul.u32 %v767, 2146121005
        %v912 = vmul.u32 %v768, 2146121005
        %v913 = vmul.u32 %v769, 2146121005
        %v914 = vmul.u32 %v770, 2146121005
        %v915 = vmul.u32 %v771, 2146121005
        %v916 = vmul.u32 %v772, 2146121005
        %v917 = vmul.u32 %v773, 2146121005
        %v918 = vmul.u32 %v774, 2146121005
        %v919 = vmul.u32 %v775, 2146121005
        %v920 = vmul.u32 %v776, 2146121005
        %v921 = vmul.u32 %v777, 2146121005
        %v922 = vmul.u32 %v778, 2146121005
        %v923 = vmul.u32 %v779, 2146121005
        %v924 = vmul.u32 %v780, 2146121005
        %v925 = vmul.u32 %v781, 2146121005
        %v926 = vmul.u32 %v782, 2146121005
        %v927 = vmul.u32 %v783, 2146121005
        %v928 = vmul.u32 %v784, 2146121005
        %v929 = vmul.u32 %v785, 2146121005
        %v930 = vmul.u32 %v786, 2146121005
        %v931 = vmul.u32 %v787, 2146121005
        %v932 = vmul.u32 %v788, 2146121005
        %v933 = vmul.u32 %v789, 2146121005
        %v934 = vmul.u32 %v790, 2146121005
        %v935 = vmul.u32 %v791, 2146121005
        %v936 = vmul.u32 %v792, 2146121005
        %v937 = vmul.u32 %v793, 2146121005
        %v938 = vmul.u32 %v794, 2146121005
        %v939 = vmul.u32 %v795, 2146121005
        %v940 = vmul.u32 %v796, 2146121005
        %v941 = vmul.u32 %v797, 2146121005
        %v942 = vmul.u32 %v798, 2146121005
        %v943 = vmul.u32 %v799, 2146121005
        %v944 = vmul.u32 %v800, 2146121005
        %v945 = vmul.u32 %v801, 2146121005
        %v946 = vmul.u32 %v802, 2146121005
        %v947 = vmul.u32 %v803, 2146121005
        %v948 = vmul.u32 %v804, 2146121005
        %v949 = vmul.u32 %v805, 2146121005
        %v950 = vmul.u32 %v806, 2146121005
        %v951 = vmul.u32 %v807, 2146121005
        %v952 = vmul.u32 %v808, 2146121005
        %v953 = vmul.u32 %v809, 2146121005
        %v954 = vmul.u32 %v810, 2146121005
        %v955 = vmul.u32 %v811, 2146121005
        %v956 = vmul.u32 %v812, 2146121005
        %v957 = vmul.u32 %v813, 2146121005
        %v958 = vmul.u32 %v814, 2146121005
        %v959 = vmul.u32 %v815, 2146121005
        %v960 = vmul.u32 %v816, 2146121005
        %v961 = vmul.u32 %v817, 2146121005
        %v962 = vmul.u32 %v818, 2146121005
        %v963 = vmul.u32 %v819, 2146121005
        %v964 = vmul.u32 %v820, 2146121005
        %v965 = vmul.u32 %v821, 2146121005
        %v966 = vmul.u32 %v822, 2146121005
        %v967 = vmul.u32 %v823, 2146121005
        %v968 = vmul.u32 %v824, 2146121005
        %v969 = vmul.u32 %v825, 2146121005
        %v970 = vmul.u32 %v826, 2146121005
        %v971 = vmul.u32 %v827, 2146121005
        %v972 = vmul.u32 %v828, 2146121005
        %v973 = vmul.u32 %v829, 2146121005
        %v974 = vmul.u32 %v830, 2146121005
        %v975 = vmul.u32 %v831, 2146121005
        %v976 = vmul.u32 %v832, 2146121005
        %v977 = vmul.u32 %v833, 2146121005
        %v978 = vmul.u32 %v834, 2146121005
        %v979 = vmul.u32 %v835, 2146121005
        %v980 = vmul.u32 %v836, 2146121005
        %v981 = vmul.u32 %v837, 2146121005
        %v982 = vmul.u32 %v838, 2146121005
        %v983 = vmul.u32 %v839, 2146121005
        %v984 = vmul.u32 %v840, 2146121005
        %v985 = vmul.u32 %v841, 2146121005
        %v986 = vmul.u32 %v842, 2146121005
        %v987 = vmul.u32 %v843, 2146121005
        %v988 = vmul.u32 %v844, 2146121005
        %v989 = vmul.u32 %v845, 2146121005
        %v990 = vmul.u32 %v846, 2146121005
        %v991 = vmul.u32 %v847, 2146121005
        %v992 = vmul.u32 %v848, 2146121005
        %v993 = vmul.u32 %v849, 2146121005
        %v994 = vmul.u32 %v850, 2146121005
        %v995 = vmul.u32 %v851, 2146121005
        %v996 = vmul.u32 %v852, 2146121005
        %v997 = vmul.u32 %v853, 2146121005
        %v998 = vmul.u32 %v854, 2146121005
        %v999 = vmul.u32 %v855, 2146121005
        %v1000 = vmul.u32 %v856, 2146121005
        %v1001 = vmul.u32 %v857, 2146121005
        %v1002 = vmul.u32 %v858, 2146121005
        %v1003 = vmul.u32 %v859, 2146121005
        %v1004 = vmul.u32 %v860, 2146121005
        %v1005 = vmul.u32 %v861, 2146121005
        %v1006 = vmul.u32 %v862, 2146121005
        %v1007 = vmul.u32 %v863, 2146121005
        %v1008 = vmul.u32 %v864, 2146121005
        %v1009 = vmul.u32 %v865, 2146121005
        %v1010 = vmul.u32 %v866, 2146121005
        %v1011 = vmul.u32 %v867, 2146121005
        %v1012 = vmul.u32 %v868, 2146121005
        %v1013 = vmul.u32 %v869, 2146121005
        %v1014 = vshrl.u32 %v870, 15
        %v1015 = vshrl.u32 %v871, 15
        %v1016 = vshrl.u32 %v872, 15
        %v1017 = vshrl.u32 %v873, 15
        %v1018 = vshrl.u32 %v874, 15
        %v1019 = vshrl.u32 %v875, 15
        %v1020 = vshrl.u32 %v876, 15
        %v1021 = vshrl.u32 %v877, 15
        %v1022 = vshrl.u32 %v878, 15
        %v1023 = vshrl.u32 %v879, 15
        %v1024 = vshrl.u32 %v880, 15
        %v1025 = vshrl.u32 %v881, 15
        %v1026 = vshrl.u32 %v882, 15
        %v1027 = vshrl.u32 %v883, 15
        %v1028 = vshrl.u32 %v884, 15
        %v1029 = vshrl.u32 %v885, 15
        %v1030 = vshrl.u32 %v886, 15
        %v1031 = vshrl.u32 %v887, 15
        %v1032 = vshrl.u32 %v888, 15
        %v1033 = vshrl.u32 %v889, 15
        %v1034 = vshrl.u32 %v890, 15
        %v1035 = vshrl.u32 %v891, 15
        %v1036 = vshrl.u32 %v892, 15
        %v1037 = vshrl.u32 %v893, 15
        %v1038 = vshrl.u32 %v894, 15
        %v1039 = vshrl.u32 %v895, 15
        %v1040 = vshrl.u32 %v896, 15
        %v1041 = vshrl.u32 %v897, 15
        %v1042 = vshrl.u32 %v898, 15
        %v1043 = vshrl.u32 %v899, 15
        %v1044 = vshrl.u32 %v900, 15
        %v1045 = vshrl.u32 %v901, 15
        %v1046 = vshrl.u32 %v902, 15
        %v1047 = vshrl.u32 %v903, 15
        %v1048 = vshrl.u32 %v904, 15
        %v1049 = vshrl.u32 %v905, 15
        %v1050 = vshrl.u32 %v906, 15
        %v1051 = vshrl.u32 %v907, 15
        %v1052 = vshrl.u32 %v908, 15
        %v1053 = vshrl.u32 %v909, 15
        %v1054 = vshrl.u32 %v910, 15
        %v1055 = vshrl.u32 %v911, 15
        %v1056 = vshrl.u32 %v912, 15
        %v1057 = vshrl.u32 %v913, 15
        %v1058 = vshrl.u32 %v914, 15
        %v1059 = vshrl.u32 %v915, 15
        %v1060 = vshrl.u32 %v916, 15
        %v1061 = vshrl.u32 %v917, 15
        %v1062 = vshrl.u32 %v918, 15
        %v1063 = vshrl.u32 %v919, 15
        %v1064 = vshrl.u32 %v920, 15
        %v1065 = vshrl.u32 %v921, 15
        %v1066 = vshrl.u32 %v922, 15
        %v1067 = vshrl.u32 %v923, 15
        %v1068 = vshrl.u32 %v924, 15
        %v1069 = vshrl.u32 %v925, 15
        %v1070 = vshrl.u32 %v926, 15
        %v1071 = vshrl.u32 %v927, 15
        %v1072 = vshrl.u32 %v928, 15
        %v1073 = vshrl.u32 %v929, 15
        %v1074 = vshrl.u32 %v930, 15
        %v1075 = vshrl.u32 %v931, 15
        %v1076 = vshrl.u32 %v932, 15
        %v1077 = vshrl.u32 %v933, 15
        %v1078 = vshrl.u32 %v934, 15
        %v1079 = vshrl.u32 %v935, 15
        %v1080 = vshrl.u32 %v936, 15
        %v1081 = vshrl.u32 %v937, 15
        %v1082 = vshrl.u32 %v938, 15
        %v1083 = vshrl.u32 %v939, 15
        %v1084 = vshrl.u32 %v940, 15
        %v1085 = vshrl.u32 %v941, 15
        %v1086 = vshrl.u32 %v942, 15
        %v1087 = vshrl.u32 %v943, 15
        %v1088 = vshrl.u32 %v944, 15
        %v1089 = vshrl.u32 %v945, 15
        %v1090 = vshrl.u32 %v946, 15
        %v1091 = vshrl.u32 %v947, 15
        %v1092 = vshrl.u32 %v948, 15
        %v1093 = vshrl.u32 %v949, 15
        %v1094 = vshrl.u32 %v950, 15
        %v1095 = vshrl.u32 %v951, 15
        %v1096 = vshrl.u32 %v952, 15
        %v1097 = vshrl.u32 %v953, 15
        %v1098 = vshrl.u32 %v954, 15
        %v1099 = vshrl.u32 %v955, 15
        %v1100 = vshrl.u32 %v956, 15
        %v1101 = vshrl.u32 %v957, 15
        %v1102 = vshrl.u32 %v958, 15
        %v1103 = vshrl.u32 %v959, 15
        %v1104 = vshrl.u32 %v960, 15
        %v1105 = vshrl.u32 %v961, 15
        %v1106 = vshrl.u32 %v962, 15
        %v1107 = vshrl.u32 %v963, 15
        %v1108 = vshrl.u32 %v964, 15
        %v1109 = vshrl.u32 %v965, 15
        %v1110 = vshrl.u32 %v966, 15
        %v1111 = vshrl.u32 %v967, 15
        %v1112 = vshrl.u32 %v968, 15
        %v1113 = vshrl.u32 %v969, 15
        %v1114 = vshrl.u32 %v970, 15
        %v1115 = vshrl.u32 %v971, 15
        %v1116 = vshrl.u32 %v972, 15
        %v1117 = vshrl.u32 %v973, 15
        %v1118 = vshrl.u32 %v974, 15
        %v1119 = vshrl.u32 %v975, 15
        %v1120 = vshrl.u32 %v976, 15
        %v1121 = vshrl.u32 %v977, 15
        %v1122 = vshrl.u32 %v978, 15
        %v1123 = vshrl.u32 %v979, 15
        %v1124 = vshrl.u32 %v980, 15
        %v1125 = vshrl.u32 %v981, 15
        %v1126 = vshrl.u32 %v982, 15
        %v1127 = vshrl.u32 %v983, 15
        %v1128 = vshrl.u32 %v984, 15
        %v1129 = vshrl.u32 %v985, 15
        %v1130 = vshrl.u32 %v986, 15
        %v1131 = vshrl.u32 %v987, 15
        %v1132 = vshrl.u32 %v988, 15
        %v1133 = vshrl.u32 %v989, 15
        %v1134 = vshrl.u32 %v990, 15
        %v1135 = vshrl.u32 %v991, 15
        %v1136 = vshrl.u32 %v992, 15
        %v1137 = vshrl.u32 %v993, 15
        %v1138 = vshrl.u32 %v994, 15
        %v1139 = vshrl.u32 %v995, 15
        %v1140 = vshrl.u32 %v996, 15
        %v1141 = vshrl.u32 %v997, 15
        %v1142 = vshrl.u32 %v998, 15
        %v1143 = vshrl.u32 %v999, 15
        %v1144 = vshrl.u32 %v1000, 15
        %v1145 = vshrl.u32 %v1001, 15
        %v1146 = vshrl.u32 %v1002, 15
        %v1147 = vshrl.u32 %v1003, 15
        %v1148 = vshrl.u32 %v1004, 15
        %v1149 = vshrl.u32 %v1005, 15
        %v1150 = vshrl.u32 %v1006, 15
        %v1151 = vshrl.u32 %v1007, 15
        %v1152 = vshrl.u32 %v1008, 15
        %v1153 = vshrl.u32 %v1009, 15
        %v1154 = vshrl.u32 %v1010, 15
        %v1155 = vshrl.u32 %v1011, 15
        %v1156 = vshrl.u32 %v1012, 15
        %v1157 = vshrl.u32 %v1013, 15
        %v1158 = vxor.u32 %v870, %v1014
        %v1159 = vxor.u32 %v871, %v1015
        %v1160 = vxor.u32 %v872, %v1016
        %v1161 = vxor.u32 %v873, %v1017
        %v1162 = vxor.u32 %v874, %v1018
        %v1163 = vxor.u32 %v875, %v1019
        %v1164 = vxor.u32 %v876, %v1020
        %v1165 = vxor.u32 %v877, %v1021
        %v1166 = vxor.u32 %v878, %v1022
        %v1167 = vxor.u32 %v879, %v1023
        %v1168 = vxor.u32 %v880, %v1024
        %v1169 = vxor.u32 %v881, %v1025
        %v1170 = vxor.u32 %v882, %v1026
        %v1171 = vxor.u32 %v883, %v1027
        %v1172 = vxor.u32 %v884, %v1028
        %v1173 = vxor.u32 %v885, %v1029
        %v1174 = vxor.u32 %v886, %v1030
        %v1175 = vxor.u32 %v887, %v1031
        %v1176 = vxor.u32 %v888, %v1032
        %v1177 = vxor.u32 %v889, %v1033
        %v1178 = vxor.u32 %v890, %v1034
        %v1179 = vxor.u32 %v891, %v1035
        %v1180 = vxor.u32 %v892, %v1036
        %v1181 = vxor.u32 %v893, %v1037
        %v1182 = vxor.u32 %v894, %v1038
        %v1183 = vxor.u32 %v895, %v1039
        %v1184 = vxor.u32 %v896, %v1040
        %v1185 = vxor.u32 %v897, %v1041
        %v1186 = vxor.u32 %v898, %v1042
        %v1187 = vxor.u32 %v899, %v1043
        %v1188 = vxor.u32 %v900, %v1044
        %v1189 = vxor.u32 %v901, %v1045
        %v1190 = vxor.u32 %v902, %v1046
        %v1191 = vxor.u32 %v903, %v1047
        %v1192 = vxor.u32 %v904, %v1048
        %v1193 = vxor.u32 %v905, %v1049
        %v1194 = vxor.u32 %v906, %v1050
        %v1195 = vxor.u32 %v907, %v1051
        %v1196 = vxor.u32 %v908, %v1052
        %v1197 = vxor.u32 %v909, %v1053
        %v1198 = vxor.u32 %v910, %v1054
        %v1199 = vxor.u32 %v911, %v1055
        %v1200 = vxor.u32 %v912, %v1056
        %v1201 = vxor.u32 %v913, %v1057
        %v1202 = vxor.u32 %v914, %v1058
        %v1203 = vxor.u32 %v915, %v1059
        %v1204 = vxor.u32 %v916, %v1060
        %v1205 = vxor.u32 %v917, %v1061
        %v1206 = vxor.u32 %v918, %v1062
        %v1207 = vxor.u32 %v919, %v1063
        %v1208 = vxor.u32 %v920, %v1064
        %v1209 = vxor.u32 %v921, %v1065
        %v1210 = vxor.u32 %v922, %v1066
        %v1211 = vxor.u32 %v923, %v1067
        %v1212 = vxor.u32 %v924, %v1068
        %v1213 = vxor.u32 %v925, %v1069
        %v1214 = vxor.u32 %v926, %v1070
        %v1215 = vxor.u32 %v927, %v1071
        %v1216 = vxor.u32 %v928, %v1072
        %v1217 = vxor.u32 %v929, %v1073
        %v1218 = vxor.u32 %v930, %v1074
        %v1219 = vxor.u32 %v931, %v1075
        %v1220 = vxor.u32 %v932, %v1076
        %v1221 = vxor.u32 %v933, %v1077
        %v1222 = vxor.u32 %v934, %v1078
        %v1223 = vxor.u32 %v935, %v1079
        %v1224 = vxor.u32 %v936, %v1080
        %v1225 = vxor.u32 %v937, %v1081
        %v1226 = vxor.u32 %v938, %v1082
        %v1227 = vxor.u32 %v939, %v1083
        %v1228 = vxor.u32 %v940, %v1084
        %v1229 = vxor.u32 %v941, %v1085
        %v1230 = vxor.u32 %v942, %v1086
        %v1231 = vxor.u32 %v943, %v1087
        %v1232 = vxor.u32 %v944, %v1088
        %v1233 = vxor.u32 %v945, %v1089
        %v1234 = vxor.u32 %v946, %v1090
        %v1235 = vxor.u32 %v947, %v1091
        %v1236 = vxor.u32 %v948, %v1092
        %v1237 = vxor.u32 %v949, %v1093
        %v1238 = vxor.u32 %v950, %v1094
        %v1239 = vxor.u32 %v951, %v1095
        %v1240 = vxor.u32 %v952, %v1096
        %v1241 = vxor.u32 %v953, %v1097
        %v1242 = vxor.u32 %v954, %v1098
        %v1243 = vxor.u32 %v955, %v1099
        %v1244 = vxor.u32 %v956, %v1100
        %v1245 = vxor.u32 %v957, %v1101
        %v1246 = vxor.u32 %v958, %v1102
        %v1247 = vxor.u32 %v959, %v1103
        %v1248 = vxor.u32 %v960, %v1104
        %v1249 = vxor.u32 %v961, %v1105
        %v1250 = vxor.u32 %v962, %v1106
        %v1251 = vxor.u32 %v963, %v1107
        %v1252 = vxor.u32 %v964, %v1108
        %v1253 = vxor.u32 %v965, %v1109
        %v1254 = vxor.u32 %v966, %v1110
        %v1255 = vxor.u32 %v967, %v1111
        %v1256 = vxor.u32 %v968, %v1112
        %v1257 = vxor.u32 %v969, %v1113
        %v1258 = vxor.u32 %v970, %v1114
        %v1259 = vxor.u32 %v971, %v1115
        %v1260 = vxor.u32 %v972, %v1116
        %v1261 = vxor.u32 %v973, %v1117
        %v1262 = vxor.u32 %v974, %v1118
        %v1263 = vxor.u32 %v975, %v1119
        %v1264 = vxor.u32 %v976, %v1120
        %v1265 = vxor.u32 %v977, %v1121
        %v1266 = vxor.u32 %v978, %v1122
        %v1267 = vxor.u32 %v979, %v1123
        %v1268 = vxor.u32 %v980, %v1124
        %v1269 = vxor.u32 %v981, %v1125
        %v1270 = vxor.u32 %v982, %v1126
        %v1271 = vxor.u32 %v983, %v1127
        %v1272 = vxor.u32 %v984, %v1128
        %v1273 = vxor.u32 %v985, %v1129
        %v1274 = vxor.u32 %v986, %v1130
        %v1275 = vxor.u32 %v987, %v1131
        %v1276 = vxor.u32 %v988, %v1132
        %v1277 = vxor.u32 %v989, %v1133
        %v1278 = vxor.u32 %v990, %v1134
        %v1279 = vxor.u32 %v991, %v1135
        %v1280 = vxor.u32 %v992, %v1136
        %v1281 = vxor.u32 %v993, %v1137
        %v1282 = vxor.u32 %v994, %v1138
        %v1283 = vxor.u32 %v995, %v1139
        %v1284 = vxor.u32 %v996, %v1140
        %v1285 = vxor.u32 %v997, %v1141
        %v1286 = vxor.u32 %v998, %v1142
        %v1287 = vxor.u32 %v999, %v1143
        %v1288 = vxor.u32 %v1000, %v1144
        %v1289 = vxor.u32 %v1001, %v1145
        %v1290 = vxor.u32 %v1002, %v1146
        %v1291 = vxor.u32 %v1003, %v1147
        %v1292 = vxor.u32 %v1004, %v1148
        %v1293 = vxor.u32 %v1005, %v1149
        %v1294 = vxor.u32 %v1006, %v1150
        %v1295 = vxor.u32 %v1007, %v1151
        %v1296 = vxor.u32 %v1008, %v1152
        %v1297 = vxor.u32 %v1009, %v1153
        %v1298 = vxor.u32 %v1010, %v1154
        %v1299 = vxor.u32 %v1011, %v1155
        %v1300 = vxor.u32 %v1012, %v1156
        %v1301 = vxor.u32 %v1013, %v1157
        %v1302 = vmul.u32 %v1158, 2221713035
        %v1303 = vmul.u32 %v1159, 2221713035
        %v1304 = vmul.u32 %v1160, 2221713035
        %v1305 = vmul.u32 %v1161, 2221713035
        %v1306 = vmul.u32 %v1162, 2221713035
        %v1307 = vmul.u32 %v1163, 2221713035
        %v1308 = vmul.u32 %v1164, 2221713035
        %v1309 = vmul.u32 %v1165, 2221713035
        %v1310 = vmul.u32 %v1166, 2221713035
        %v1311 = vmul.u32 %v1167, 2221713035
        %v1312 = vmul.u32 %v1168, 2221713035
        %v1313 = vmul.u32 %v1169, 2221713035
        %v1314 = vmul.u32 %v1170, 2221713035
        %v1315 = vmul.u32 %v1171, 2221713035
        %v1316 = vmul.u32 %v1172, 2221713035
        %v1317 = vmul.u32 %v1173, 2221713035
        %v1318 = vmul.u32 %v1174, 2221713035
        %v1319 = vmul.u32 %v1175, 2221713035
        %v1320 = vmul.u32 %v1176, 2221713035
        %v1321 = vmul.u32 %v1177, 2221713035
        %v1322 = vmul.u32 %v1178, 2221713035
        %v1323 = vmul.u32 %v1179, 2221713035
        %v1324 = vmul.u32 %v1180, 2221713035
        %v1325 = vmul.u32 %v1181, 2221713035
        %v1326 = vmul.u32 %v1182, 2221713035
        %v1327 = vmul.u32 %v1183, 2221713035
        %v1328 = vmul.u32 %v1184, 2221713035
        %v1329 = vmul.u32 %v1185, 2221713035
        %v1330 = vmul.u32 %v1186, 2221713035
        %v1331 = vmul.u32 %v1187, 2221713035
        %v1332 = vmul.u32 %v1188, 2221713035
        %v1333 = vmul.u32 %v1189, 2221713035
        %v1334 = vmul.u32 %v1190, 2221713035
        %v1335 = vmul.u32 %v1191, 2221713035
        %v1336 = vmul.u32 %v1192, 2221713035
        %v1337 = vmul.u32 %v1193, 2221713035
        %v1338 = vmul.u32 %v1194, 2221713035
        %v1339 = vmul.u32 %v1195, 2221713035
        %v1340 = vmul.u32 %v1196, 2221713035
        %v1341 = vmul.u32 %v1197, 2221713035
        %v1342 = vmul.u32 %v1198, 2221713035
        %v1343 = vmul.u32 %v1199, 2221713035
        %v1344 = vmul.u32 %v1200, 2221713035
        %v1345 = vmul.u32 %v1201, 2221713035
        %v1346 = vmul.u32 %v1202, 2221713035
        %v1347 = vmul.u32 %v1203, 2221713035
        %v1348 = vmul.u32 %v1204, 2221713035
        %v1349 = vmul.u32 %v1205, 2221713035
        %v1350 = vmul.u32 %v1206, 2221713035
        %v1351 = vmul.u32 %v1207, 2221713035
        %v1352 = vmul.u32 %v1208, 2221713035
        %v1353 = vmul.u32 %v1209, 2221713035
        %v1354 = vmul.u32 %v1210, 2221713035
        %v1355 = vmul.u32 %v1211, 2221713035
        %v1356 = vmul.u32 %v1212, 2221713035
        %v1357 = vmul.u32 %v1213, 2221713035
        %v1358 = vmul.u32 %v1214, 2221713035
        %v1359 = vmul.u32 %v1215, 2221713035
        %v1360 = vmul.u32 %v1216, 2221713035
        %v1361 = vmul.u32 %v1217, 2221713035
        %v1362 = vmul.u32 %v1218, 2221713035
        %v1363 = vmul.u32 %v1219, 2221713035
        %v1364 = vmul.u32 %v1220, 2221713035
        %v1365 = vmul.u32 %v1221, 2221713035
        %v1366 = vmul.u32 %v1222, 2221713035
        %v1367 = vmul.u32 %v1223, 2221713035
        %v1368 = vmul.u32 %v1224, 2221713035
        %v1369 = vmul.u32 %v1225, 2221713035
        %v1370 = vmul.u32 %v1226, 2221713035
        %v1371 = vmul.u32 %v1227, 2221713035
        %v1372 = vmul.u32 %v1228, 2221713035
        %v1373 = vmul.u32 %v1229, 2221713035
        %v1374 = vmul.u32 %v1230, 2221713035
        %v1375 = vmul.u32 %v1231, 2221713035
        %v1376 = vmul.u32 %v1232, 2221713035
        %v1377 = vmul.u32 %v1233, 2221713035
        %v1378 = vmul.u32 %v1234, 2221713035
        %v1379 = vmul.u32 %v1235, 2221713035
        %v1380 = vmul.u32 %v1236, 2221713035
        %v1381 = vmul.u32 %v1237, 2221713035
        %v1382 = vmul.u32 %v1238, 2221713035
        %v1383 = vmul.u32 %v1239, 2221713035
        %v1384 = vmul.u32 %v1240, 2221713035
        %v1385 = vmul.u32 %v1241, 2221713035
        %v1386 = vmul.u32 %v1242, 2221713035
        %v1387 = vmul.u32 %v1243, 2221713035
        %v1388 = vmul.u32 %v1244, 2221713035
        %v1389 = vmul.u32 %v1245, 2221713035
        %v1390 = vmul.u32 %v1246, 2221713035
        %v1391 = vmul.u32 %v1247, 2221713035
        %v1392 = vmul.u32 %v1248, 2221713035
        %v1393 = vmul.u32 %v1249, 2221713035
        %v1394 = vmul.u32 %v1250, 2221713035
        %v1395 = vmul.u32 %v1251, 2221713035
        %v1396 = vmul.u32 %v1252, 2221713035
        %v1397 = vmul.u32 %v1253, 2221713035
        %v1398 = vmul.u32 %v1254, 2221713035
        %v1399 = vmul.u32 %v1255, 2221713035
        %v1400 = vmul.u32 %v1256, 2221713035
        %v1401 = vmul.u32 %v1257, 2221713035
        %v1402 = vmul.u32 %v1258, 2221713035
        %v1403 = vmul.u32 %v1259, 2221713035
        %v1404 = vmul.u32 %v1260, 2221713035
        %v1405 = vmul.u32 %v1261, 2221713035
        %v1406 = vmul.u32 %v1262, 2221713035
        %v1407 = vmul.u32 %v1263, 2221713035
        %v1408 = vmul.u32 %v1264, 2221713035
        %v1409 = vmul.u32 %v1265, 2221713035
        %v1410 = vmul.u32 %v1266, 2221713035
        %v1411 = vmul.u32 %v1267, 2221713035
        %v1412 = vmul.u32 %v1268, 2221713035
        %v1413 = vmul.u32 %v1269, 2221713035
        %v1414 = vmul.u32 %v1270, 2221713035
        %v1415 = vmul.u32 %v1271, 2221713035
        %v1416 = vmul.u32 %v1272, 2221713035
        %v1417 = vmul.u32 %v1273, 2221713035
        %v1418 = vmul.u32 %v1274, 2221713035
        %v1419 = vmul.u32 %v1275, 2221713035
        %v1420 = vmul.u32 %v1276, 2221713035
        %v1421 = vmul.u32 %v1277, 2221713035
        %v1422 = vmul.u32 %v1278, 2221713035
        %v1423 = vmul.u32 %v1279, 2221713035
        %v1424 = vmul.u32 %v1280, 2221713035
        %v1425 = vmul.u32 %v1281, 2221713035
        %v1426 = vmul.u32 %v1282, 2221713035
        %v1427 = vmul.u32 %v1283, 2221713035
        %v1428 = vmul.u32 %v1284, 2221713035
        %v1429 = vmul.u32 %v1285, 2221713035
        %v1430 = vmul.u32 %v1286, 2221713035
        %v1431 = vmul.u32 %v1287, 2221713035
        %v1432 = vmul.u32 %v1288, 2221713035
        %v1433 = vmul.u32 %v1289, 2221713035
        %v1434 = vmul.u32 %v1290, 2221713035
        %v1435 = vmul.u32 %v1291, 2221713035
        %v1436 = vmul.u32 %v1292, 2221713035
        %v1437 = vmul.u32 %v1293, 2221713035
        %v1438 = vmul.u32 %v1294, 2221713035
        %v1439 = vmul.u32 %v1295, 2221713035
        %v1440 = vmul.u32 %v1296, 2221713035
        %v1441 = vmul.u32 %v1297, 2221713035
        %v1442 = vmul.u32 %v1298, 2221713035
        %v1443 = vmul.u32 %v1299, 2221713035
        %v1444 = vmul.u32 %v1300, 2221713035
        %v1445 = vmul.u32 %v1301, 2221713035
        %v1446 = vshrl.u32 %v1302, 16
        %v1447 = vshrl.u32 %v1303, 16
        %v1448 = vshrl.u32 %v1304, 16
        %v1449 = vshrl.u32 %v1305, 16
        %v1450 = vshrl.u32 %v1306, 16
        %v1451 = vshrl.u32 %v1307, 16
        %v1452 = vshrl.u32 %v1308, 16
        %v1453 = vshrl.u32 %v1309, 16
        %v1454 = vshrl.u32 %v1310, 16
        %v1455 = vshrl.u32 %v1311, 16
        %v1456 = vshrl.u32 %v1312, 16
        %v1457 = vshrl.u32 %v1313, 16
        %v1458 = vshrl.u32 %v1314, 16
        %v1459 = vshrl.u32 %v1315, 16
        %v1460 = vshrl.u32 %v1316, 16
        %v1461 = vshrl.u32 %v1317, 16
        %v1462 = vshrl.u32 %v1318, 16
        %v1463 = vshrl.u32 %v1319, 16
        %v1464 = vshrl.u32 %v1320, 16
        %v1465 = vshrl.u32 %v1321, 16
        %v1466 = vshrl.u32 %v1322, 16
        %v1467 = vshrl.u32 %v1323, 16
        %v1468 = vshrl.u32 %v1324, 16
        %v1469 = vshrl.u32 %v1325, 16
        %v1470 = vshrl.u32 %v1326, 16
        %v1471 = vshrl.u32 %v1327, 16
        %v1472 = vshrl.u32 %v1328, 16
        %v1473 = vshrl.u32 %v1329, 16
        %v1474 = vshrl.u32 %v1330, 16
        %v1475 = vshrl.u32 %v1331, 16
        %v1476 = vshrl.u32 %v1332, 16
        %v1477 = vshrl.u32 %v1333, 16
        %v1478 = vshrl.u32 %v1334, 16
        %v1479 = vshrl.u32 %v1335, 16
        %v1480 = vshrl.u32 %v1336, 16
        %v1481 = vshrl.u32 %v1337, 16
        %v1482 = vshrl.u32 %v1338, 16
        %v1483 = vshrl.u32 %v1339, 16
        %v1484 = vshrl.u32 %v1340, 16
        %v1485 = vshrl.u32 %v1341, 16
        %v1486 = vshrl.u32 %v1342, 16
        %v1487 = vshrl.u32 %v1343, 16
        %v1488 = vshrl.u32 %v1344, 16
        %v1489 = vshrl.u32 %v1345, 16
        %v1490 = vshrl.u32 %v1346, 16
        %v1491 = vshrl.u32 %v1347, 16
        %v1492 = vshrl.u32 %v1348, 16
        %v1493 = vshrl.u32 %v1349, 16
        %v1494 = vshrl.u32 %v1350, 16
        %v1495 = vshrl.u32 %v1351, 16
        %v1496 = vshrl.u32 %v1352, 16
        %v1497 = vshrl.u32 %v1353, 16
        %v1498 = vshrl.u32 %v1354, 16
        %v1499 = vshrl.u32 %v1355, 16
        %v1500 = vshrl.u32 %v1356, 16
        %v1501 = vshrl.u32 %v1357, 16
        %v1502 = vshrl.u32 %v1358, 16
        %v1503 = vshrl.u32 %v1359, 16
        %v1504 = vshrl.u32 %v1360, 16
        %v1505 = vshrl.u32 %v1361, 16
        %v1506 = vshrl.u32 %v1362, 16
        %v1507 = vshrl.u32 %v1363, 16
        %v1508 = vshrl.u32 %v1364, 16
        %v1509 = vshrl.u32 %v1365, 16
        %v1510 = vshrl.u32 %v1366, 16
        %v1511 = vshrl.u32 %v1367, 16
        %v1512 = vshrl.u32 %v1368, 16
        %v1513 = vshrl.u32 %v1369, 16
        %v1514 = vshrl.u32 %v1370, 16
        %v1515 = vshrl.u32 %v1371, 16
        %v1516 = vshrl.u32 %v1372, 16
        %v1517 = vshrl.u32 %v1373, 16
        %v1518 = vshrl.u32 %v1374, 16
        %v1519 = vshrl.u32 %v1375, 16
        %v1520 = vshrl.u32 %v1376, 16
        %v1521 = vshrl.u32 %v1377, 16
        %v1522 = vshrl.u32 %v1378, 16
        %v1523 = vshrl.u32 %v1379, 16
        %v1524 = vshrl.u32 %v1380, 16
        %v1525 = vshrl.u32 %v1381, 16
        %v1526 = vshrl.u32 %v1382, 16
        %v1527 = vshrl.u32 %v1383, 16
        %v1528 = vshrl.u32 %v1384, 16
        %v1529 = vshrl.u32 %v1385, 16
        %v1530 = vshrl.u32 %v1386, 16
        %v1531 = vshrl.u32 %v1387, 16
        %v1532 = vshrl.u32 %v1388, 16
        %v1533 = vshrl.u32 %v1389, 16
        %v1534 = vshrl.u32 %v1390, 16
        %v1535 = vshrl.u32 %v1391, 16
        %v1536 = vshrl.u32 %v1392, 16
        %v1537 = vshrl.u32 %v1393, 16
        %v1538 = vshrl.u32 %v1394, 16
        %v1539 = vshrl.u32 %v1395, 16
        %v1540 = vshrl.u32 %v1396, 16
        %v1541 = vshrl.u32 %v1397, 16
        %v1542 = vshrl.u32 %v1398, 16
        %v1543 = vshrl.u32 %v1399, 16
        %v1544 = vshrl.u32 %v1400, 16
        %v1545 = vshrl.u32 %v1401, 16
        %v1546 = vshrl.u32 %v1402, 16
        %v1547 = vshrl.u32 %v1403, 16
        %v1548 = vshrl.u32 %v1404, 16
        %v1549 = vshrl.u32 %v1405, 16
        %v1550 = vshrl.u32 %v1406, 16
        %v1551 = vshrl.u32 %v1407, 16
        %v1552 = vshrl.u32 %v1408, 16
        %v1553 = vshrl.u32 %v1409, 16
        %v1554 = vshrl.u32 %v1410, 16
        %v1555 = vshrl.u32 %v1411, 16
        %v1556 = vshrl.u32 %v1412, 16
        %v1557 = vshrl.u32 %v1413, 16
        %v1558 = vshrl.u32 %v1414, 16
        %v1559 = vshrl.u32 %v1415, 16
        %v1560 = vshrl.u32 %v1416, 16
        %v1561 = vshrl.u32 %v1417, 16
        %v1562 = vshrl.u32 %v1418, 16
        %v1563 = vshrl.u32 %v1419, 16
        %v1564 = vshrl.u32 %v1420, 16
        %v1565 = vshrl.u32 %v1421, 16
        %v1566 = vshrl.u32 %v1422, 16
        %v1567 = vshrl.u32 %v1423, 16
        %v1568 = vshrl.u32 %v1424, 16
        %v1569 = vshrl.u32 %v1425, 16
        %v1570 = vshrl.u32 %v1426, 16
        %v1571 = vshrl.u32 %v1427, 16
        %v1572 = vshrl.u32 %v1428, 16
        %v1573 = vshrl.u32 %v1429, 16
        %v1574 = vshrl.u32 %v1430, 16
        %v1575 = vshrl.u32 %v1431, 16
        %v1576 = vshrl.u32 %v1432, 16
        %v1577 = vshrl.u32 %v1433, 16
        %v1578 = vshrl.u32 %v1434, 16
        %v1579 = vshrl.u32 %v1435, 16
        %v1580 = vshrl.u32 %v1436, 16
        %v1581 = vshrl.u32 %v1437, 16
        %v1582 = vshrl.u32 %v1438, 16
        %v1583 = vshrl.u32 %v1439, 16
        %v1584 = vshrl.u32 %v1440, 16
        %v1585 = vshrl.u32 %v1441, 16
        %v1586 = vshrl.u32 %v1442, 16
        %v1587 = vshrl.u32 %v1443, 16
        %v1588 = vshrl.u32 %v1444, 16
        %v1589 = vshrl.u32 %v1445, 16
        %v1590 = vxor.u32 %v1302, %v1446
        %v1591 = vxor.u32 %v1303, %v1447
        %v1592 = vxor.u32 %v1304, %v1448
        %v1593 = vxor.u32 %v1305, %v1449
        %v1594 = vxor.u32 %v1306, %v1450
        %v1595 = vxor.u32 %v1307, %v1451
        %v1596 = vxor.u32 %v1308, %v1452
        %v1597 = vxor.u32 %v1309, %v1453
        %v1598 = vxor.u32 %v1310, %v1454
        %v1599 = vxor.u32 %v1311, %v1455
        %v1600 = vxor.u32 %v1312, %v1456
        %v1601 = vxor.u32 %v1313, %v1457
        %v1602 = vxor.u32 %v1314, %v1458
        %v1603 = vxor.u32 %v1315, %v1459
        %v1604 = vxor.u32 %v1316, %v1460
        %v1605 = vxor.u32 %v1317, %v1461
        %v1606 = vxor.u32 %v1318, %v1462
        %v1607 = vxor.u32 %v1319, %v1463
        %v1608 = vxor.u32 %v1320, %v1464
        %v1609 = vxor.u32 %v1321, %v1465
        %v1610 = vxor.u32 %v1322, %v1466
        %v1611 = vxor.u32 %v1323, %v1467
        %v1612 = vxor.u32 %v1324, %v1468
        %v1613 = vxor.u32 %v1325, %v1469
        %v1614 = vxor.u32 %v1326, %v1470
        %v1615 = vxor.u32 %v1327, %v1471
        %v1616 = vxor.u32 %v1328, %v1472
        %v1617 = vxor.u32 %v1329, %v1473
        %v1618 = vxor.u32 %v1330, %v1474
        %v1619 = vxor.u32 %v1331, %v1475
        %v1620 = vxor.u32 %v1332, %v1476
        %v1621 = vxor.u32 %v1333, %v1477
        %v1622 = vxor.u32 %v1334, %v1478
        %v1623 = vxor.u32 %v1335, %v1479
        %v1624 = vxor.u32 %v1336, %v1480
        %v1625 = vxor.u32 %v1337, %v1481
        %v1626 = vxor.u32 %v1338, %v1482
        %v1627 = vxor.u32 %v1339, %v1483
        %v1628 = vxor.u32 %v1340, %v1484
        %v1629 = vxor.u32 %v1341, %v1485
        %v1630 = vxor.u32 %v1342, %v1486
        %v1631 = vxor.u32 %v1343, %v1487
        %v1632 = vxor.u32 %v1344, %v1488
        %v1633 = vxor.u32 %v1345, %v1489
        %v1634 = vxor.u32 %v1346, %v1490
        %v1635 = vxor.u32 %v1347, %v1491
        %v1636 = vxor.u32 %v1348, %v1492
        %v1637 = vxor.u32 %v1349, %v1493
        %v1638 = vxor.u32 %v1350, %v1494
        %v1639 = vxor.u32 %v1351, %v1495
        %v1640 = vxor.u32 %v1352, %v1496
        %v1641 = vxor.u32 %v1353, %v1497
        %v1642 = vxor.u32 %v1354, %v1498
        %v1643 = vxor.u32 %v1355, %v1499
        %v1644 = vxor.u32 %v1356, %v1500
        %v1645 = vxor.u32 %v1357, %v1501
        %v1646 = vxor.u32 %v1358, %v1502
        %v1647 = vxor.u32 %v1359, %v1503
        %v1648 = vxor.u32 %v1360, %v1504
        %v1649 = vxor.u32 %v1361, %v1505
        %v1650 = vxor.u32 %v1362, %v1506
        %v1651 = vxor.u32 %v1363, %v1507
        %v1652 = vxor.u32 %v1364, %v1508
        %v1653 = vxor.u32 %v1365, %v1509
        %v1654 = vxor.u32 %v1366, %v1510
        %v1655 = vxor.u32 %v1367, %v1511
        %v1656 = vxor.u32 %v1368, %v1512
        %v1657 = vxor.u32 %v1369, %v1513
        %v1658 = vxor.u32 %v1370, %v1514
        %v1659 = vxor.u32 %v1371, %v1515
        %v1660 = vxor.u32 %v1372, %v1516
        %v1661 = vxor.u32 %v1373, %v1517
        %v1662 = vxor.u32 %v1374, %v1518
        %v1663 = vxor.u32 %v1375, %v1519
        %v1664 = vxor.u32 %v1376, %v1520
        %v1665 = vxor.u32 %v1377, %v1521
        %v1666 = vxor.u32 %v1378, %v1522
        %v1667 = vxor.u32 %v1379, %v1523
        %v1668 = vxor.u32 %v1380, %v1524
        %v1669 = vxor.u32 %v1381, %v1525
        %v1670 = vxor.u32 %v1382, %v1526
        %v1671 = vxor.u32 %v1383, %v1527
        %v1672 = vxor.u32 %v1384, %v1528
        %v1673 = vxor.u32 %v1385, %v1529
        %v1674 = vxor.u32 %v1386, %v1530
        %v1675 = vxor.u32 %v1387, %v1531
        %v1676 = vxor.u32 %v1388, %v1532
        %v1677 = vxor.u32 %v1389, %v1533
        %v1678 = vxor.u32 %v1390, %v1534
        %v1679 = vxor.u32 %v1391, %v1535
        %v1680 = vxor.u32 %v1392, %v1536
        %v1681 = vxor.u32 %v1393, %v1537
        %v1682 = vxor.u32 %v1394, %v1538
        %v1683 = vxor.u32 %v1395, %v1539
        %v1684 = vxor.u32 %v1396, %v1540
        %v1685 = vxor.u32 %v1397, %v1541
        %v1686 = vxor.u32 %v1398, %v1542
        %v1687 = vxor.u32 %v1399, %v1543
        %v1688 = vxor.u32 %v1400, %v1544
        %v1689 = vxor.u32 %v1401, %v1545
        %v1690 = vxor.u32 %v1402, %v1546
        %v1691 = vxor.u32 %v1403, %v1547
        %v1692 = vxor.u32 %v1404, %v1548
        %v1693 = vxor.u32 %v1405, %v1549
        %v1694 = vxor.u32 %v1406, %v1550
        %v1695 = vxor.u32 %v1407, %v1551
        %v1696 = vxor.u32 %v1408, %v1552
        %v1697 = vxor.u32 %v1409, %v1553
        %v1698 = vxor.u32 %v1410, %v1554
        %v1699 = vxor.u32 %v1411, %v1555
        %v1700 = vxor.u32 %v1412, %v1556
        %v1701 = vxor.u32 %v1413, %v1557
        %v1702 = vxor.u32 %v1414, %v1558
        %v1703 = vxor.u32 %v1415, %v1559
        %v1704 = vxor.u32 %v1416, %v1560
        %v1705 = vxor.u32 %v1417, %v1561
        %v1706 = vxor.u32 %v1418, %v1562
        %v1707 = vxor.u32 %v1419, %v1563
        %v1708 = vxor.u32 %v1420, %v1564
        %v1709 = vxor.u32 %v1421, %v1565
        %v1710 = vxor.u32 %v1422, %v1566
        %v1711 = vxor.u32 %v1423, %v1567
        %v1712 = vxor.u32 %v1424, %v1568
        %v1713 = vxor.u32 %v1425, %v1569
        %v1714 = vxor.u32 %v1426, %v1570
        %v1715 = vxor.u32 %v1427, %v1571
        %v1716 = vxor.u32 %v1428, %v1572
        %v1717 = vxor.u32 %v1429, %v1573
        %v1718 = vxor.u32 %v1430, %v1574
        %v1719 = vxor.u32 %v1431, %v1575
        %v1720 = vxor.u32 %v1432, %v1576
        %v1721 = vxor.u32 %v1433, %v1577
        %v1722 = vxor.u32 %v1434, %v1578
        %v1723 = vxor.u32 %v1435, %v1579
        %v1724 = vxor.u32 %v1436, %v1580
        %v1725 = vxor.u32 %v1437, %v1581
        %v1726 = vxor.u32 %v1438, %v1582
        %v1727 = vxor.u32 %v1439, %v1583
        %v1728 = vxor.u32 %v1440, %v1584
        %v1729 = vxor.u32 %v1441, %v1585
        %v1730 = vxor.u32 %v1442, %v1586
        %v1731 = vxor.u32 %v1443, %v1587
        %v1732 = vxor.u32 %v1444, %v1588
        %v1733 = vxor.u32 %v1445, %v1589
        %v1734 = vshrl.u32 %v1590, 8
        %v1735 = vshrl.u32 %v1591, 8
        %v1736 = vshrl.u32 %v1592, 8
        %v1737 = vshrl.u32 %v1593, 8
        %v1738 = vshrl.u32 %v1594, 8
        %v1739 = vshrl.u32 %v1595, 8
        %v1740 = vshrl.u32 %v1596, 8
        %v1741 = vshrl.u32 %v1597, 8
        %v1742 = vshrl.u32 %v1598, 8
        %v1743 = vshrl.u32 %v1599, 8
        %v1744 = vshrl.u32 %v1600, 8
        %v1745 = vshrl.u32 %v1601, 8
        %v1746 = vshrl.u32 %v1602, 8
        %v1747 = vshrl.u32 %v1603, 8
        %v1748 = vshrl.u32 %v1604, 8
        %v1749 = vshrl.u32 %v1605, 8
        %v1750 = vshrl.u32 %v1606, 8
        %v1751 = vshrl.u32 %v1607, 8
        %v1752 = vshrl.u32 %v1608, 8
        %v1753 = vshrl.u32 %v1609, 8
        %v1754 = vshrl.u32 %v1610, 8
        %v1755 = vshrl.u32 %v1611, 8
        %v1756 = vshrl.u32 %v1612, 8
        %v1757 = vshrl.u32 %v1613, 8
        %v1758 = vshrl.u32 %v1614, 8
        %v1759 = vshrl.u32 %v1615, 8
        %v1760 = vshrl.u32 %v1616, 8
        %v1761 = vshrl.u32 %v1617, 8
        %v1762 = vshrl.u32 %v1618, 8
        %v1763 = vshrl.u32 %v1619, 8
        %v1764 = vshrl.u32 %v1620, 8
        %v1765 = vshrl.u32 %v1621, 8
        %v1766 = vshrl.u32 %v1622, 8
        %v1767 = vshrl.u32 %v1623, 8
        %v1768 = vshrl.u32 %v1624, 8
        %v1769 = vshrl.u32 %v1625, 8
        %v1770 = vshrl.u32 %v1626, 8
        %v1771 = vshrl.u32 %v1627, 8
        %v1772 = vshrl.u32 %v1628, 8
        %v1773 = vshrl.u32 %v1629, 8
        %v1774 = vshrl.u32 %v1630, 8
        %v1775 = vshrl.u32 %v1631, 8
        %v1776 = vshrl.u32 %v1632, 8
        %v1777 = vshrl.u32 %v1633, 8
        %v1778 = vshrl.u32 %v1634, 8
        %v1779 = vshrl.u32 %v1635, 8
        %v1780 = vshrl.u32 %v1636, 8
        %v1781 = vshrl.u32 %v1637, 8
        %v1782 = vshrl.u32 %v1638, 8
        %v1783 = vshrl.u32 %v1639, 8
        %v1784 = vshrl.u32 %v1640, 8
        %v1785 = vshrl.u32 %v1641, 8
        %v1786 = vshrl.u32 %v1642, 8
        %v1787 = vshrl.u32 %v1643, 8
        %v1788 = vshrl.u32 %v1644, 8
        %v1789 = vshrl.u32 %v1645, 8
        %v1790 = vshrl.u32 %v1646, 8
        %v1791 = vshrl.u32 %v1647, 8
        %v1792 = vshrl.u32 %v1648, 8
        %v1793 = vshrl.u32 %v1649, 8
        %v1794 = vshrl.u32 %v1650, 8
        %v1795 = vshrl.u32 %v1651, 8
        %v1796 = vshrl.u32 %v1652, 8
        %v1797 = vshrl.u32 %v1653, 8
        %v1798 = vshrl.u32 %v1654, 8
        %v1799 = vshrl.u32 %v1655, 8
        %v1800 = vshrl.u32 %v1656, 8
        %v1801 = vshrl.u32 %v1657, 8
        %v1802 = vshrl.u32 %v1658, 8
        %v1803 = vshrl.u32 %v1659, 8
        %v1804 = vshrl.u32 %v1660, 8
        %v1805 = vshrl.u32 %v1661, 8
        %v1806 = vshrl.u32 %v1662, 8
        %v1807 = vshrl.u32 %v1663, 8
        %v1808 = vshrl.u32 %v1664, 8
        %v1809 = vshrl.u32 %v1665, 8
        %v1810 = vshrl.u32 %v1666, 8
        %v1811 = vshrl.u32 %v1667, 8
        %v1812 = vshrl.u32 %v1668, 8
        %v1813 = vshrl.u32 %v1669, 8
        %v1814 = vshrl.u32 %v1670, 8
        %v1815 = vshrl.u32 %v1671, 8
        %v1816 = vshrl.u32 %v1672, 8
        %v1817 = vshrl.u32 %v1673, 8
        %v1818 = vshrl.u32 %v1674, 8
        %v1819 = vshrl.u32 %v1675, 8
        %v1820 = vshrl.u32 %v1676, 8
        %v1821 = vshrl.u32 %v1677, 8
        %v1822 = vshrl.u32 %v1678, 8
        %v1823 = vshrl.u32 %v1679, 8
        %v1824 = vshrl.u32 %v1680, 8
        %v1825 = vshrl.u32 %v1681, 8
        %v1826 = vshrl.u32 %v1682, 8
        %v1827 = vshrl.u32 %v1683, 8
        %v1828 = vshrl.u32 %v1684, 8
        %v1829 = vshrl.u32 %v1685, 8
        %v1830 = vshrl.u32 %v1686, 8
        %v1831 = vshrl.u32 %v1687, 8
        %v1832 = vshrl.u32 %v1688, 8
        %v1833 = vshrl.u32 %v1689, 8
        %v1834 = vshrl.u32 %v1690, 8
        %v1835 = vshrl.u32 %v1691, 8
        %v1836 = vshrl.u32 %v1692, 8
        %v1837 = vshrl.u32 %v1693, 8
        %v1838 = vshrl.u32 %v1694, 8
        %v1839 = vshrl.u32 %v1695, 8
        %v1840 = vshrl.u32 %v1696, 8
        %v1841 = vshrl.u32 %v1697, 8
        %v1842 = vshrl.u32 %v1698, 8
        %v1843 = vshrl.u32 %v1699, 8
        %v1844 = vshrl.u32 %v1700, 8
        %v1845 = vshrl.u32 %v1701, 8
        %v1846 = vshrl.u32 %v1702, 8
        %v1847 = vshrl.u32 %v1703, 8
        %v1848 = vshrl.u32 %v1704, 8
        %v1849 = vshrl.u32 %v1705, 8
        %v1850 = vshrl.u32 %v1706, 8
        %v1851 = vshrl.u32 %v1707, 8
        %v1852 = vshrl.u32 %v1708, 8
        %v1853 = vshrl.u32 %v1709, 8
        %v1854 = vshrl.u32 %v1710, 8
        %v1855 = vshrl.u32 %v1711, 8
        %v1856 = vshrl.u32 %v1712, 8
        %v1857 = vshrl.u32 %v1713, 8
        %v1858 = vshrl.u32 %v1714, 8
        %v1859 = vshrl.u32 %v1715, 8
        %v1860 = vshrl.u32 %v1716, 8
        %v1861 = vshrl.u32 %v1717, 8
        %v1862 = vshrl.u32 %v1718, 8
        %v1863 = vshrl.u32 %v1719, 8
        %v1864 = vshrl.u32 %v1720, 8
        %v1865 = vshrl.u32 %v1721, 8
        %v1866 = vshrl.u32 %v1722, 8
        %v1867 = vshrl.u32 %v1723, 8
        %v1868 = vshrl.u32 %v1724, 8
        %v1869 = vshrl.u32 %v1725, 8
        %v1870 = vshrl.u32 %v1726, 8
        %v1871 = vshrl.u32 %v1727, 8
        %v1872 = vshrl.u32 %v1728, 8
        %v1873 = vshrl.u32 %v1729, 8
        %v1874 = vshrl.u32 %v1730, 8
        %v1875 = vshrl.u32 %v1731, 8
        %v1876 = vshrl.u32 %v1732, 8
        %v1877 = vshrl.u32 %v1733, 8
        %v1878 = vcvt.s32.f32 %v1734
        %v1879 = vcvt.s32.f32 %v1735
        %v1880 = vcvt.s32.f32 %v1736
        %v1881 = vcvt.s32.f32 %v1737
        %v1882 = vcvt.s32.f32 %v1738
        %v1883 = vcvt.s32.f32 %v1739
        %v1884 = vcvt.s32.f32 %v1740
        %v1885 = vcvt.s32.f32 %v1741
        %v1886 = vcvt.s32.f32 %v1742
        %v1887 = vcvt.s32.f32 %v1743
        %v1888 = vcvt.s32.f32 %v1744
        %v1889 = vcvt.s32.f32 %v1745
        %v1890 = vcvt.s32.f32 %v1746
        %v1891 = vcvt.s32.f32 %v1747
        %v1892 = vcvt.s32.f32 %v1748
        %v1893 = vcvt.s32.f32 %v1749
        %v1894 = vcvt.s32.f32 %v1750
        %v1895 = vcvt.s32.f32 %v1751
        %v1896 = vcvt.s32.f32 %v1752
        %v1897 = vcvt.s32.f32 %v1753
        %v1898 = vcvt.s32.f32 %v1754
        %v1899 = vcvt.s32.f32 %v1755
        %v1900 = vcvt.s32.f32 %v1756
        %v1901 = vcvt.s32.f32 %v1757
        %v1902 = vcvt.s32.f32 %v1758
        %v1903 = vcvt.s32.f32 %v1759
        %v1904 = vcvt.s32.f32 %v1760
        %v1905 = vcvt.s32.f32 %v1761
        %v1906 = vcvt.s32.f32 %v1762
        %v1907 = vcvt.s32.f32 %v1763
        %v1908 = vcvt.s32.f32 %v1764
        %v1909 = vcvt.s32.f32 %v1765
        %v1910 = vcvt.s32.f32 %v1766
        %v1911 = vcvt.s32.f32 %v1767
        %v1912 = vcvt.s32.f32 %v1768
        %v1913 = vcvt.s32.f32 %v1769
        %v1914 = vcvt.s32.f32 %v1770
        %v1915 = vcvt.s32.f32 %v1771
        %v1916 = vcvt.s32.f32 %v1772
        %v1917 = vcvt.s32.f32 %v1773
        %v1918 = vcvt.s32.f32 %v1774
        %v1919 = vcvt.s32.f32 %v1775
        %v1920 = vcvt.s32.f32 %v1776
        %v1921 = vcvt.s32.f32 %v1777
        %v1922 = vcvt.s32.f32 %v1778
        %v1923 = vcvt.s32.f32 %v1779
        %v1924 = vcvt.s32.f32 %v1780
        %v1925 = vcvt.s32.f32 %v1781
        %v1926 = vcvt.s32.f32 %v1782
        %v1927 = vcvt.s32.f32 %v1783
        %v1928 = vcvt.s32.f32 %v1784
        %v1929 = vcvt.s32.f32 %v1785
        %v1930 = vcvt.s32.f32 %v1786
        %v1931 = vcvt.s32.f32 %v1787
        %v1932 = vcvt.s32.f32 %v1788
        %v1933 = vcvt.s32.f32 %v1789
        %v1934 = vcvt.s32.f32 %v1790
        %v1935 = vcvt.s32.f32 %v1791
        %v1936 = vcvt.s32.f32 %v1792
        %v1937 = vcvt.s32.f32 %v1793
        %v1938 = vcvt.s32.f32 %v1794
        %v1939 = vcvt.s32.f32 %v1795
        %v1940 = vcvt.s32.f32 %v1796
        %v1941 = vcvt.s32.f32 %v1797
        %v1942 = vcvt.s32.f32 %v1798
        %v1943 = vcvt.s32.f32 %v1799
        %v1944 = vcvt.s32.f32 %v1800
        %v1945 = vcvt.s32.f32 %v1801
        %v1946 = vcvt.s32.f32 %v1802
        %v1947 = vcvt.s32.f32 %v1803
        %v1948 = vcvt.s32.f32 %v1804
        %v1949 = vcvt.s32.f32 %v1805
        %v1950 = vcvt.s32.f32 %v1806
        %v1951 = vcvt.s32.f32 %v1807
        %v1952 = vcvt.s32.f32 %v1808
        %v1953 = vcvt.s32.f32 %v1809
        %v1954 = vcvt.s32.f32 %v1810
        %v1955 = vcvt.s32.f32 %v1811
        %v1956 = vcvt.s32.f32 %v1812
        %v1957 = vcvt.s32.f32 %v1813
        %v1958 = vcvt.s32.f32 %v1814
        %v1959 = vcvt.s32.f32 %v1815
        %v1960 = vcvt.s32.f32 %v1816
        %v1961 = vcvt.s32.f32 %v1817
        %v1962 = vcvt.s32.f32 %v1818
        %v1963 = vcvt.s32.f32 %v1819
        %v1964 = vcvt.s32.f32 %v1820
        %v1965 = vcvt.s32.f32 %v1821
        %v1966 = vcvt.s32.f32 %v1822
        %v1967 = vcvt.s32.f32 %v1823
        %v1968 = vcvt.s32.f32 %v1824
        %v1969 = vcvt.s32.f32 %v1825
        %v1970 = vcvt.s32.f32 %v1826
        %v1971 = vcvt.s32.f32 %v1827
        %v1972 = vcvt.s32.f32 %v1828
        %v1973 = vcvt.s32.f32 %v1829
        %v1974 = vcvt.s32.f32 %v1830
        %v1975 = vcvt.s32.f32 %v1831
        %v1976 = vcvt.s32.f32 %v1832
        %v1977 = vcvt.s32.f32 %v1833
        %v1978 = vcvt.s32.f32 %v1834
        %v1979 = vcvt.s32.f32 %v1835
        %v1980 = vcvt.s32.f32 %v1836
        %v1981 = vcvt.s32.f32 %v1837
        %v1982 = vcvt.s32.f32 %v1838
        %v1983 = vcvt.s32.f32 %v1839
        %v1984 = vcvt.s32.f32 %v1840
        %v1985 = vcvt.s32.f32 %v1841
        %v1986 = vcvt.s32.f32 %v1842
        %v1987 = vcvt.s32.f32 %v1843
        %v1988 = vcvt.s32.f32 %v1844
        %v1989 = vcvt.s32.f32 %v1845
        %v1990 = vcvt.s32.f32 %v1846
        %v1991 = vcvt.s32.f32 %v1847
        %v1992 = vcvt.s32.f32 %v1848
        %v1993 = vcvt.s32.f32 %v1849
        %v1994 = vcvt.s32.f32 %v1850
        %v1995 = vcvt.s32.f32 %v1851
        %v1996 = vcvt.s32.f32 %v1852
        %v1997 = vcvt.s32.f32 %v1853
        %v1998 = vcvt.s32.f32 %v1854
        %v1999 = vcvt.s32.f32 %v1855
        %v2000 = vcvt.s32.f32 %v1856
        %v2001 = vcvt.s32.f32 %v1857
        %v2002 = vcvt.s32.f32 %v1858
        %v2003 = vcvt.s32.f32 %v1859
        %v2004 = vcvt.s32.f32 %v1860
        %v2005 = vcvt.s32.f32 %v1861
        %v2006 = vcvt.s32.f32 %v1862
        %v2007 = vcvt.s32.f32 %v1863
        %v2008 = vcvt.s32.f32 %v1864
        %v2009 = vcvt.s32.f32 %v1865
        %v2010 = vcvt.s32.f32 %v1866
        %v2011 = vcvt.s32.f32 %v1867
        %v2012 = vcvt.s32.f32 %v1868
        %v2013 = vcvt.s32.f32 %v1869
        %v2014 = vcvt.s32.f32 %v1870
        %v2015 = vcvt.s32.f32 %v1871
        %v2016 = vcvt.s32.f32 %v1872
        %v2017 = vcvt.s32.f32 %v1873
        %v2018 = vcvt.s32.f32 %v1874
        %v2019 = vcvt.s32.f32 %v1875
        %v2020 = vcvt.s32.f32 %v1876
        %v2021 = vcvt.s32.f32 %v1877
        %v2022 = vmul.f32 %v1878, 5.9604645e-08
        %v2023 = vmul.f32 %v1879, 5.9604645e-08
        %v2024 = vmul.f32 %v1880, 5.9604645e-08
        %v2025 = vmul.f32 %v1881, 5.9604645e-08
        %v2026 = vmul.f32 %v1882, 5.9604645e-08
        %v2027 = vmul.f32 %v1883, 5.9604645e-08
        %v2028 = vmul.f32 %v1884, 5.9604645e-08
        %v2029 = vmul.f32 %v1885, 5.9604645e-08
        %v2030 = vmul.f32 %v1886, 5.9604645e-08
        %v2031 = vmul.f32 %v1887, 5.9604645e-08
        %v2032 = vmul.f32 %v1888, 5.9604645e-08
        %v2033 = vmul.f32 %v1889, 5.9604645e-08
        %v2034 = vmul.f32 %v1890, 5.9604645e-08
        %v2035 = vmul.f32 %v1891, 5.9604645e-08
        %v2036 = vmul.f32 %v1892, 5.9604645e-08
        %v2037 = vmul.f32 %v1893, 5.9604645e-08
        %v2038 = vmul.f32 %v1894, 5.9604645e-08
        %v2039 = vmul.f32 %v1895, 5.9604645e-08
        %v2040 = vmul.f32 %v1896, 5.9604645e-08
        %v2041 = vmul.f32 %v1897, 5.9604645e-08
        %v2042 = vmul.f32 %v1898, 5.9604645e-08
        %v2043 = vmul.f32 %v1899, 5.9604645e-08
        %v2044 = vmul.f32 %v1900, 5.9604645e-08
        %v2045 = vmul.f32 %v1901, 5.9604645e-08
        %v2046 = vmul.f32 %v1902, 5.9604645e-08
        %v2047 = vmul.f32 %v1903, 5.9604645e-08
        %v2048 = vmul.f32 %v1904, 5.9604645e-08
        %v2049 = vmul.f32 %v1905, 5.9604645e-08
        %v2050 = vmul.f32 %v1906, 5.9604645e-08
        %v2051 = vmul.f32 %v1907, 5.9604645e-08
        %v2052 = vmul.f32 %v1908, 5.9604645e-08
        %v2053 = vmul.f32 %v1909, 5.9604645e-08
        %v2054 = vmul.f32 %v1910, 5.9604645e-08
        %v2055 = vmul.f32 %v1911, 5.9604645e-08
        %v2056 = vmul.f32 %v1912, 5.9604645e-08
        %v2057 = vmul.f32 %v1913, 5.9604645e-08
        %v2058 = vmul.f32 %v1914, 5.9604645e-08
        %v2059 = vmul.f32 %v1915, 5.9604645e-08
        %v2060 = vmul.f32 %v1916, 5.9604645e-08
        %v2061 = vmul.f32 %v1917, 5.9604645e-08
        %v2062 = vmul.f32 %v1918, 5.9604645e-08
        %v2063 = vmul.f32 %v1919, 5.9604645e-08
        %v2064 = vmul.f32 %v1920, 5.9604645e-08
        %v2065 = vmul.f32 %v1921, 5.9604645e-08
        %v2066 = vmul.f32 %v1922, 5.9604645e-08
        %v2067 = vmul.f32 %v1923, 5.9604645e-08
        %v2068 = vmul.f32 %v1924, 5.9604645e-08
        %v2069 = vmul.f32 %v1925, 5.9604645e-08
        %v2070 = vmul.f32 %v1926, 5.9604645e-08
        %v2071 = vmul.f32 %v1927, 5.9604645e-08
        %v2072 = vmul.f32 %v1928, 5.9604645e-08
        %v2073 = vmul.f32 %v1929, 5.9604645e-08
        %v2074 = vmul.f32 %v1930, 5.9604645e-08
        %v2075 = vmul.f32 %v1931, 5.9604645e-08
        %v2076 = vmul.f32 %v1932, 5.9604645e-08
        %v2077 = vmul.f32 %v1933, 5.9604645e-08
        %v2078 = vmul.f32 %v1934, 5.9604645e-08
        %v2079 = vmul.f32 %v1935, 5.9604645e-08
        %v2080 = vmul.f32 %v1936, 5.9604645e-08
        %v2081 = vmul.f32 %v1937, 5.9604645e-08
        %v2082 = vmul.f32 %v1938, 5.9604645e-08
        %v2083 = vmul.f32 %v1939, 5.9604645e-08
        %v2084 = vmul.f32 %v1940, 5.9604645e-08
        %v2085 = vmul.f32 %v1941, 5.9604645e-08
        %v2086 = vmul.f32 %v1942, 5.9604645e-08
        %v2087 = vmul.f32 %v1943, 5.9604645e-08
        %v2088 = vmul.f32 %v1944, 5.9604645e-08
        %v2089 = vmul.f32 %v1945, 5.9604645e-08
        %v2090 = vmul.f32 %v1946, 5.9604645e-08
        %v2091 = vmul.f32 %v1947, 5.9604645e-08
        %v2092 = vmul.f32 %v1948, 5.9604645e-08
        %v2093 = vmul.f32 %v1949, 5.9604645e-08
        %v2094 = vmul.f32 %v1950, 5.9604645e-08
        %v2095 = vmul.f32 %v1951, 5.9604645e-08
        %v2096 = vmul.f32 %v1952, 5.9604645e-08
        %v2097 = vmul.f32 %v1953, 5.9604645e-08
        %v2098 = vmul.f32 %v1954, 5.9604645e-08
        %v2099 = vmul.f32 %v1955, 5.9604645e-08
        %v2100 = vmul.f32 %v1956, 5.9604645e-08
        %v2101 = vmul.f32 %v1957, 5.9604645e-08
        %v2102 = vmul.f32 %v1958, 5.9604645e-08
        %v2103 = vmul.f32 %v1959, 5.9604645e-08
        %v2104 = vmul.f32 %v1960, 5.9604645e-08
        %v2105 = vmul.f32 %v1961, 5.9604645e-08
        %v2106 = vmul.f32 %v1962, 5.9604645e-08
        %v2107 = vmul.f32 %v1963, 5.9604645e-08
        %v2108 = vmul.f32 %v1964, 5.9604645e-08
        %v2109 = vmul.f32 %v1965, 5.9604645e-08
        %v2110 = vmul.f32 %v1966, 5.9604645e-08
        %v2111 = vmul.f32 %v1967, 5.9604645e-08
        %v2112 = vmul.f32 %v1968, 5.9604645e-08
        %v2113 = vmul.f32 %v1969, 5.9604645e-08
        %v2114 = vmul.f32 %v1970, 5.9604645e-08
        %v2115 = vmul.f32 %v1971, 5.9604645e-08
        %v2116 = vmul.f32 %v1972, 5.9604645e-08
        %v2117 = vmul.f32 %v1973, 5.9604645e-08
        %v2118 = vmul.f32 %v1974, 5.9604645e-08
        %v2119 = vmul.f32 %v1975, 5.9604645e-08
        %v2120 = vmul.f32 %v1976, 5.9604645e-08
        %v2121 = vmul.f32 %v1977, 5.9604645e-08
        %v2122 = vmul.f32 %v1978, 5.9604645e-08
        %v2123 = vmul.f32 %v1979, 5.9604645e-08
        %v2124 = vmul.f32 %v1980, 5.9604645e-08
        %v2125 = vmul.f32 %v1981, 5.9604645e-08
        %v2126 = vmul.f32 %v1982, 5.9604645e-08
        %v2127 = vmul.f32 %v1983, 5.9604645e-08
        %v2128 = vmul.f32 %v1984, 5.9604645e-08
        %v2129 = vmul.f32 %v1985, 5.9604645e-08
        %v2130 = vmul.f32 %v1986, 5.9604645e-08
        %v2131 = vmul.f32 %v1987, 5.9604645e-08
        %v2132 = vmul.f32 %v1988, 5.9604645e-08
        %v2133 = vmul.f32 %v1989, 5.9604645e-08
        %v2134 = vmul.f32 %v1990, 5.9604645e-08
        %v2135 = vmul.f32 %v1991, 5.9604645e-08
        %v2136 = vmul.f32 %v1992, 5.9604645e-08
        %v2137 = vmul.f32 %v1993, 5.9604645e-08
        %v2138 = vmul.f32 %v1994, 5.9604645e-08
        %v2139 = vmul.f32 %v1995, 5.9604645e-08
        %v2140 = vmul.f32 %v1996, 5.9604645e-08
        %v2141 = vmul.f32 %v1997, 5.9604645e-08
        %v2142 = vmul.f32 %v1998, 5.9604645e-08
        %v2143 = vmul.f32 %v1999, 5.9604645e-08
        %v2144 = vmul.f32 %v2000, 5.9604645e-08
        %v2145 = vmul.f32 %v2001, 5.9604645e-08
        %v2146 = vmul.f32 %v2002, 5.9604645e-08
        %v2147 = vmul.f32 %v2003, 5.9604645e-08
        %v2148 = vmul.f32 %v2004, 5.9604645e-08
        %v2149 = vmul.f32 %v2005, 5.9604645e-08
        %v2150 = vmul.f32 %v2006, 5.9604645e-08
        %v2151 = vmul.f32 %v2007, 5.9604645e-08
        %v2152 = vmul.f32 %v2008, 5.9604645e-08
        %v2153 = vmul.f32 %v2009, 5.9604645e-08
        %v2154 = vmul.f32 %v2010, 5.9604645e-08
        %v2155 = vmul.f32 %v2011, 5.9604645e-08
        %v2156 = vmul.f32 %v2012, 5.9604645e-08
        %v2157 = vmul.f32 %v2013, 5.9604645e-08
        %v2158 = vmul.f32 %v2014, 5.9604645e-08
        %v2159 = vmul.f32 %v2015, 5.9604645e-08
        %v2160 = vmul.f32 %v2016, 5.9604645e-08
        %v2161 = vmul.f32 %v2017, 5.9604645e-08
        %v2162 = vmul.f32 %v2018, 5.9604645e-08
        %v2163 = vmul.f32 %v2019, 5.9604645e-08
        %v2164 = vmul.f32 %v2020, 5.9604645e-08
        %v2165 = vmul.f32 %v2021, 5.9604645e-08
        %vm2166 = vcmp.ge.f32.partialorder %v2022, 0.1
        %vm2167 = vcmp.ge.f32.partialorder %v2023, 0.1
        %vm2168 = vcmp.ge.f32.partialorder %v2024, 0.1
        %vm2169 = vcmp.ge.f32.partialorder %v2025, 0.1
        %vm2170 = vcmp.ge.f32.partialorder %v2026, 0.1
        %vm2171 = vcmp.ge.f32.partialorder %v2027, 0.1
        %vm2172 = vcmp.ge.f32.partialorder %v2028, 0.1
        %vm2173 = vcmp.ge.f32.partialorder %v2029, 0.1
        %vm2174 = vcmp.ge.f32.partialorder %v2030, 0.1
        %vm2175 = vcmp.ge.f32.partialorder %v2031, 0.1
        %vm2176 = vcmp.ge.f32.partialorder %v2032, 0.1
        %vm2177 = vcmp.ge.f32.partialorder %v2033, 0.1
        %vm2178 = vcmp.ge.f32.partialorder %v2034, 0.1
        %vm2179 = vcmp.ge.f32.partialorder %v2035, 0.1
        %vm2180 = vcmp.ge.f32.partialorder %v2036, 0.1
        %vm2181 = vcmp.ge.f32.partialorder %v2037, 0.1
        %vm2182 = vcmp.ge.f32.partialorder %v2038, 0.1
        %vm2183 = vcmp.ge.f32.partialorder %v2039, 0.1
        %vm2184 = vcmp.ge.f32.partialorder %v2040, 0.1
        %vm2185 = vcmp.ge.f32.partialorder %v2041, 0.1
        %vm2186 = vcmp.ge.f32.partialorder %v2042, 0.1
        %vm2187 = vcmp.ge.f32.partialorder %v2043, 0.1
        %vm2188 = vcmp.ge.f32.partialorder %v2044, 0.1
        %vm2189 = vcmp.ge.f32.partialorder %v2045, 0.1
        %vm2190 = vcmp.ge.f32.partialorder %v2046, 0.1
        %vm2191 = vcmp.ge.f32.partialorder %v2047, 0.1
        %vm2192 = vcmp.ge.f32.partialorder %v2048, 0.1
        %vm2193 = vcmp.ge.f32.partialorder %v2049, 0.1
        %vm2194 = vcmp.ge.f32.partialorder %v2050, 0.1
        %vm2195 = vcmp.ge.f32.partialorder %v2051, 0.1
        %vm2196 = vcmp.ge.f32.partialorder %v2052, 0.1
        %vm2197 = vcmp.ge.f32.partialorder %v2053, 0.1
        %vm2198 = vcmp.ge.f32.partialorder %v2054, 0.1
        %vm2199 = vcmp.ge.f32.partialorder %v2055, 0.1
        %vm2200 = vcmp.ge.f32.partialorder %v2056, 0.1
        %vm2201 = vcmp.ge.f32.partialorder %v2057, 0.1
        %vm2202 = vcmp.ge.f32.partialorder %v2058, 0.1
        %vm2203 = vcmp.ge.f32.partialorder %v2059, 0.1
        %vm2204 = vcmp.ge.f32.partialorder %v2060, 0.1
        %vm2205 = vcmp.ge.f32.partialorder %v2061, 0.1
        %vm2206 = vcmp.ge.f32.partialorder %v2062, 0.1
        %vm2207 = vcmp.ge.f32.partialorder %v2063, 0.1
        %vm2208 = vcmp.ge.f32.partialorder %v2064, 0.1
        %vm2209 = vcmp.ge.f32.partialorder %v2065, 0.1
        %vm2210 = vcmp.ge.f32.partialorder %v2066, 0.1
        %vm2211 = vcmp.ge.f32.partialorder %v2067, 0.1
        %vm2212 = vcmp.ge.f32.partialorder %v2068, 0.1
        %vm2213 = vcmp.ge.f32.partialorder %v2069, 0.1
        %vm2214 = vcmp.ge.f32.partialorder %v2070, 0.1
        %vm2215 = vcmp.ge.f32.partialorder %v2071, 0.1
        %vm2216 = vcmp.ge.f32.partialorder %v2072, 0.1
        %vm2217 = vcmp.ge.f32.partialorder %v2073, 0.1
        %vm2218 = vcmp.ge.f32.partialorder %v2074, 0.1
        %vm2219 = vcmp.ge.f32.partialorder %v2075, 0.1
        %vm2220 = vcmp.ge.f32.partialorder %v2076, 0.1
        %vm2221 = vcmp.ge.f32.partialorder %v2077, 0.1
        %vm2222 = vcmp.ge.f32.partialorder %v2078, 0.1
        %vm2223 = vcmp.ge.f32.partialorder %v2079, 0.1
        %vm2224 = vcmp.ge.f32.partialorder %v2080, 0.1
        %vm2225 = vcmp.ge.f32.partialorder %v2081, 0.1
        %vm2226 = vcmp.ge.f32.partialorder %v2082, 0.1
        %vm2227 = vcmp.ge.f32.partialorder %v2083, 0.1
        %vm2228 = vcmp.ge.f32.partialorder %v2084, 0.1
        %vm2229 = vcmp.ge.f32.partialorder %v2085, 0.1
        %vm2230 = vcmp.ge.f32.partialorder %v2086, 0.1
        %vm2231 = vcmp.ge.f32.partialorder %v2087, 0.1
        %vm2232 = vcmp.ge.f32.partialorder %v2088, 0.1
        %vm2233 = vcmp.ge.f32.partialorder %v2089, 0.1
        %vm2234 = vcmp.ge.f32.partialorder %v2090, 0.1
        %vm2235 = vcmp.ge.f32.partialorder %v2091, 0.1
        %vm2236 = vcmp.ge.f32.partialorder %v2092, 0.1
        %vm2237 = vcmp.ge.f32.partialorder %v2093, 0.1
        %vm2238 = vcmp.ge.f32.partialorder %v2094, 0.1
        %vm2239 = vcmp.ge.f32.partialorder %v2095, 0.1
        %vm2240 = vcmp.ge.f32.partialorder %v2096, 0.1
        %vm2241 = vcmp.ge.f32.partialorder %v2097, 0.1
        %vm2242 = vcmp.ge.f32.partialorder %v2098, 0.1
        %vm2243 = vcmp.ge.f32.partialorder %v2099, 0.1
        %vm2244 = vcmp.ge.f32.partialorder %v2100, 0.1
        %vm2245 = vcmp.ge.f32.partialorder %v2101, 0.1
        %vm2246 = vcmp.ge.f32.partialorder %v2102, 0.1
        %vm2247 = vcmp.ge.f32.partialorder %v2103, 0.1
        %vm2248 = vcmp.ge.f32.partialorder %v2104, 0.1
        %vm2249 = vcmp.ge.f32.partialorder %v2105, 0.1
        %vm2250 = vcmp.ge.f32.partialorder %v2106, 0.1
        %vm2251 = vcmp.ge.f32.partialorder %v2107, 0.1
        %vm2252 = vcmp.ge.f32.partialorder %v2108, 0.1
        %vm2253 = vcmp.ge.f32.partialorder %v2109, 0.1
        %vm2254 = vcmp.ge.f32.partialorder %v2110, 0.1
        %vm2255 = vcmp.ge.f32.partialorder %v2111, 0.1
        %vm2256 = vcmp.ge.f32.partialorder %v2112, 0.1
        %vm2257 = vcmp.ge.f32.partialorder %v2113, 0.1
        %vm2258 = vcmp.ge.f32.partialorder %v2114, 0.1
        %vm2259 = vcmp.ge.f32.partialorder %v2115, 0.1
        %vm2260 = vcmp.ge.f32.partialorder %v2116, 0.1
        %vm2261 = vcmp.ge.f32.partialorder %v2117, 0.1
        %vm2262 = vcmp.ge.f32.partialorder %v2118, 0.1
        %vm2263 = vcmp.ge.f32.partialorder %v2119, 0.1
        %vm2264 = vcmp.ge.f32.partialorder %v2120, 0.1
        %vm2265 = vcmp.ge.f32.partialorder %v2121, 0.1
        %vm2266 = vcmp.ge.f32.partialorder %v2122, 0.1
        %vm2267 = vcmp.ge.f32.partialorder %v2123, 0.1
        %vm2268 = vcmp.ge.f32.partialorder %v2124, 0.1
        %vm2269 = vcmp.ge.f32.partialorder %v2125, 0.1
        %vm2270 = vcmp.ge.f32.partialorder %v2126, 0.1
        %vm2271 = vcmp.ge.f32.partialorder %v2127, 0.1
        %vm2272 = vcmp.ge.f32.partialorder %v2128, 0.1
        %vm2273 = vcmp.ge.f32.partialorder %v2129, 0.1
        %vm2274 = vcmp.ge.f32.partialorder %v2130, 0.1
        %vm2275 = vcmp.ge.f32.partialorder %v2131, 0.1
        %vm2276 = vcmp.ge.f32.partialorder %v2132, 0.1
        %vm2277 = vcmp.ge.f32.partialorder %v2133, 0.1
        %vm2278 = vcmp.ge.f32.partialorder %v2134, 0.1
        %vm2279 = vcmp.ge.f32.partialorder %v2135, 0.1
        %vm2280 = vcmp.ge.f32.partialorder %v2136, 0.1
        %vm2281 = vcmp.ge.f32.partialorder %v2137, 0.1
        %vm2282 = vcmp.ge.f32.partialorder %v2138, 0.1
        %vm2283 = vcmp.ge.f32.partialorder %v2139, 0.1
        %vm2284 = vcmp.ge.f32.partialorder %v2140, 0.1
        %vm2285 = vcmp.ge.f32.partialorder %v2141, 0.1
        %vm2286 = vcmp.ge.f32.partialorder %v2142, 0.1
        %vm2287 = vcmp.ge.f32.partialorder %v2143, 0.1
        %vm2288 = vcmp.ge.f32.partialorder %v2144, 0.1
        %vm2289 = vcmp.ge.f32.partialorder %v2145, 0.1
        %vm2290 = vcmp.ge.f32.partialorder %v2146, 0.1
        %vm2291 = vcmp.ge.f32.partialorder %v2147, 0.1
        %vm2292 = vcmp.ge.f32.partialorder %v2148, 0.1
        %vm2293 = vcmp.ge.f32.partialorder %v2149, 0.1
        %vm2294 = vcmp.ge.f32.partialorder %v2150, 0.1
        %vm2295 = vcmp.ge.f32.partialorder %v2151, 0.1
        %vm2296 = vcmp.ge.f32.partialorder %v2152, 0.1
        %vm2297 = vcmp.ge.f32.partialorder %v2153, 0.1
        %vm2298 = vcmp.ge.f32.partialorder %v2154, 0.1
        %vm2299 = vcmp.ge.f32.partialorder %v2155, 0.1
        %vm2300 = vcmp.ge.f32.partialorder %v2156, 0.1
        %vm2301 = vcmp.ge.f32.partialorder %v2157, 0.1
        %vm2302 = vcmp.ge.f32.partialorder %v2158, 0.1
        %vm2303 = vcmp.ge.f32.partialorder %v2159, 0.1
        %vm2304 = vcmp.ge.f32.partialorder %v2160, 0.1
        %vm2305 = vcmp.ge.f32.partialorder %v2161, 0.1
        %vm2306 = vcmp.ge.f32.partialorder %v2162, 0.1
        %vm2307 = vcmp.ge.f32.partialorder %v2163, 0.1
        %vm2308 = vcmp.ge.f32.partialorder %v2164, 0.1
        %vm2309 = vcmp.ge.f32.partialorder %v2165, 0.1
        %v2310 = vld [vmem:[%s171] sm:$0xff]
        %v2311 = vld [vmem:[%s171 + $0x8] sm:$0xff]
        %v2312 = vld [vmem:[%s171 + $0x10] sm:$0xff]
        %v2313 = vld [vmem:[%s171 + $0x18] sm:$0xff]
        %v2314 = vld [vmem:[%s171 + $0x20] sm:$0xff]
        %v2315 = vld [vmem:[%s171 + $0x28] sm:$0xff]
        %v2316 = vld [vmem:[%s171 + $0x30] sm:$0xff]
        %v2317 = vld [vmem:[%s171 + $0x38] sm:$0xff]
        %v2318 = vld [vmem:[%s171 + $0x40] sm:$0xff]
        %v2319 = vld [vmem:[%s171 + $0x48] sm:$0xff]
        %v2320 = vld [vmem:[%s171 + $0x50] sm:$0xff]
        %v2321 = vld [vmem:[%s171 + $0x58] sm:$0xff]
        %v2322 = vld [vmem:[%s171 + $0x60] sm:$0xff]
        %v2323 = vld [vmem:[%s171 + $0x68] sm:$0xff]
        %v2324 = vld [vmem:[%s171 + $0x70] sm:$0xff]
        %v2325 = vld [vmem:[%s171 + $0x78] sm:$0xff]
        %v2326 = vld [vmem:[%s171 + $0x80] sm:$0xff]
        %v2327 = vld [vmem:[%s171 + $0x88] sm:$0xff]
        %v2328 = vld [vmem:[%s171 + $0x90] sm:$0xff]
        %v2329 = vld [vmem:[%s171 + $0x98] sm:$0xff]
        %v2330 = vld [vmem:[%s171 + $0xa0] sm:$0xff]
        %v2331 = vld [vmem:[%s171 + $0xa8] sm:$0xff]
        %v2332 = vld [vmem:[%s171 + $0xb0] sm:$0xff]
        %v2333 = vld [vmem:[%s171 + $0xb8] sm:$0xff]
        %v2334 = vld [vmem:[%s171 + $0xc0] sm:$0xff]
        %v2335 = vld [vmem:[%s171 + $0xc8] sm:$0xff]
        %v2336 = vld [vmem:[%s171 + $0xd0] sm:$0xff]
        %v2337 = vld [vmem:[%s171 + $0xd8] sm:$0xff]
        %v2338 = vld [vmem:[%s171 + $0xe0] sm:$0xff]
        %v2339 = vld [vmem:[%s171 + $0xe8] sm:$0xff]
        %v2340 = vld [vmem:[%s171 + $0xf0] sm:$0xff]
        %v2341 = vld [vmem:[%s171 + $0xf8] sm:$0xff]
        %v2342 = vld [vmem:[%s171 + $0x100] sm:$0xff]
        %v2343 = vld [vmem:[%s171 + $0x108] sm:$0xff]
        %v2344 = vld [vmem:[%s171 + $0x110] sm:$0xff]
        %v2345 = vld [vmem:[%s171 + $0x118] sm:$0xff]
        %v2346 = vld [vmem:[%s171 + $0x120] sm:$0xff]
        %v2347 = vld [vmem:[%s171 + $0x128] sm:$0xff]
        %v2348 = vld [vmem:[%s171 + $0x130] sm:$0xff]
        %v2349 = vld [vmem:[%s171 + $0x138] sm:$0xff]
        %v2350 = vld [vmem:[%s171 + $0x140] sm:$0xff]
        %v2351 = vld [vmem:[%s171 + $0x148] sm:$0xff]
        %v2352 = vld [vmem:[%s171 + $0x150] sm:$0xff]
        %v2353 = vld [vmem:[%s171 + $0x158] sm:$0xff]
        %v2354 = vld [vmem:[%s171 + $0x160] sm:$0xff]
        %v2355 = vld [vmem:[%s171 + $0x168] sm:$0xff]
        %v2356 = vld [vmem:[%s171 + $0x170] sm:$0xff]
        %v2357 = vld [vmem:[%s171 + $0x178] sm:$0xff]
        %v2358 = vld [vmem:[%s171 + $0x180] sm:$0xff]
        %v2359 = vld [vmem:[%s171 + $0x188] sm:$0xff]
        %v2360 = vld [vmem:[%s171 + $0x190] sm:$0xff]
        %v2361 = vld [vmem:[%s171 + $0x198] sm:$0xff]
        %v2362 = vld [vmem:[%s171 + $0x1a0] sm:$0xff]
        %v2363 = vld [vmem:[%s171 + $0x1a8] sm:$0xff]
        %v2364 = vld [vmem:[%s171 + $0x1b0] sm:$0xff]
        %v2365 = vld [vmem:[%s171 + $0x1b8] sm:$0xff]
        %v2366 = vld [vmem:[%s171 + $0x1c0] sm:$0xff]
        %v2367 = vld [vmem:[%s171 + $0x1c8] sm:$0xff]
        %v2368 = vld [vmem:[%s171 + $0x1d0] sm:$0xff]
        %v2369 = vld [vmem:[%s171 + $0x1d8] sm:$0xff]
        %v2370 = vld [vmem:[%s171 + $0x1e0] sm:$0xff]
        %v2371 = vld [vmem:[%s171 + $0x1e8] sm:$0xff]
        %v2372 = vld [vmem:[%s171 + $0x1f0] sm:$0xff]
        %v2373 = vld [vmem:[%s171 + $0x1f8] sm:$0xff]
        %v2374 = vld [vmem:[%s171 + $0x200] sm:$0xff]
        %v2375 = vld [vmem:[%s171 + $0x208] sm:$0xff]
        %v2376 = vld [vmem:[%s171 + $0x210] sm:$0xff]
        %v2377 = vld [vmem:[%s171 + $0x218] sm:$0xff]
        %v2378 = vld [vmem:[%s171 + $0x220] sm:$0xff]
        %v2379 = vld [vmem:[%s171 + $0x228] sm:$0xff]
        %v2380 = vld [vmem:[%s171 + $0x230] sm:$0xff]
        %v2381 = vld [vmem:[%s171 + $0x238] sm:$0xff]
        %v2382 = vld [vmem:[%s171 + $0x240] sm:$0xff]
        %v2383 = vld [vmem:[%s171 + $0x248] sm:$0xff]
        %v2384 = vld [vmem:[%s171 + $0x250] sm:$0xff]
        %v2385 = vld [vmem:[%s171 + $0x258] sm:$0xff]
        %v2386 = vld [vmem:[%s171 + $0x260] sm:$0xff]
        %v2387 = vld [vmem:[%s171 + $0x268] sm:$0xff]
        %v2388 = vld [vmem:[%s171 + $0x270] sm:$0xff]
        %v2389 = vld [vmem:[%s171 + $0x278] sm:$0xff]
        %v2390 = vld [vmem:[%s171 + $0x280] sm:$0xff]
        %v2391 = vld [vmem:[%s171 + $0x288] sm:$0xff]
        %v2392 = vld [vmem:[%s171 + $0x290] sm:$0xff]
        %v2393 = vld [vmem:[%s171 + $0x298] sm:$0xff]
        %v2394 = vld [vmem:[%s171 + $0x2a0] sm:$0xff]
        %v2395 = vld [vmem:[%s171 + $0x2a8] sm:$0xff]
        %v2396 = vld [vmem:[%s171 + $0x2b0] sm:$0xff]
        %v2397 = vld [vmem:[%s171 + $0x2b8] sm:$0xff]
        %v2398 = vld [vmem:[%s171 + $0x2c0] sm:$0xff]
        %v2399 = vld [vmem:[%s171 + $0x2c8] sm:$0xff]
        %v2400 = vld [vmem:[%s171 + $0x2d0] sm:$0xff]
        %v2401 = vld [vmem:[%s171 + $0x2d8] sm:$0xff]
        %v2402 = vld [vmem:[%s171 + $0x2e0] sm:$0xff]
        %v2403 = vld [vmem:[%s171 + $0x2e8] sm:$0xff]
        %v2404 = vld [vmem:[%s171 + $0x2f0] sm:$0xff]
        %v2405 = vld [vmem:[%s171 + $0x2f8] sm:$0xff]
        %v2406 = vld [vmem:[%s171 + $0x300] sm:$0xff]
        %v2407 = vld [vmem:[%s171 + $0x308] sm:$0xff]
        %v2408 = vld [vmem:[%s171 + $0x310] sm:$0xff]
        %v2409 = vld [vmem:[%s171 + $0x318] sm:$0xff]
        %v2410 = vld [vmem:[%s171 + $0x320] sm:$0xff]
        %v2411 = vld [vmem:[%s171 + $0x328] sm:$0xff]
        %v2412 = vld [vmem:[%s171 + $0x330] sm:$0xff]
        %v2413 = vld [vmem:[%s171 + $0x338] sm:$0xff]
        %v2414 = vld [vmem:[%s171 + $0x340] sm:$0xff]
        %v2415 = vld [vmem:[%s171 + $0x348] sm:$0xff]
        %v2416 = vld [vmem:[%s171 + $0x350] sm:$0xff]
        %v2417 = vld [vmem:[%s171 + $0x358] sm:$0xff]
        %v2418 = vld [vmem:[%s171 + $0x360] sm:$0xff]
        %v2419 = vld [vmem:[%s171 + $0x368] sm:$0xff]
        %v2420 = vld [vmem:[%s171 + $0x370] sm:$0xff]
        %v2421 = vld [vmem:[%s171 + $0x378] sm:$0xff]
        %v2422 = vld [vmem:[%s171 + $0x380] sm:$0xff]
        %v2423 = vld [vmem:[%s171 + $0x388] sm:$0xff]
        %v2424 = vld [vmem:[%s171 + $0x390] sm:$0xff]
        %v2425 = vld [vmem:[%s171 + $0x398] sm:$0xff]
        %v2426 = vld [vmem:[%s171 + $0x3a0] sm:$0xff]
        %v2427 = vld [vmem:[%s171 + $0x3a8] sm:$0xff]
        %v2428 = vld [vmem:[%s171 + $0x3b0] sm:$0xff]
        %v2429 = vld [vmem:[%s171 + $0x3b8] sm:$0xff]
        %v2430 = vld [vmem:[%s171 + $0x3c0] sm:$0xff]
        %v2431 = vld [vmem:[%s171 + $0x3c8] sm:$0xff]
        %v2432 = vld [vmem:[%s171 + $0x3d0] sm:$0xff]
        %v2433 = vld [vmem:[%s171 + $0x3d8] sm:$0xff]
        %v2434 = vld [vmem:[%s171 + $0x3e0] sm:$0xff]
        %v2435 = vld [vmem:[%s171 + $0x3e8] sm:$0xff]
        %v2436 = vld [vmem:[%s171 + $0x3f0] sm:$0xff]
        %v2437 = vld [vmem:[%s171 + $0x3f8] sm:$0xff]
        %v2438 = vld [vmem:[%s171 + $0x400] sm:$0xff]
        %v2439 = vld [vmem:[%s171 + $0x408] sm:$0xff]
        %v2440 = vld [vmem:[%s171 + $0x410] sm:$0xff]
        %v2441 = vld [vmem:[%s171 + $0x418] sm:$0xff]
        %v2442 = vld [vmem:[%s171 + $0x420] sm:$0xff]
        %v2443 = vld [vmem:[%s171 + $0x428] sm:$0xff]
        %v2444 = vld [vmem:[%s171 + $0x430] sm:$0xff]
        %v2445 = vld [vmem:[%s171 + $0x438] sm:$0xff]
        %v2446 = vld [vmem:[%s171 + $0x440] sm:$0xff]
        %v2447 = vld [vmem:[%s171 + $0x448] sm:$0xff]
        %v2448 = vld [vmem:[%s171 + $0x450] sm:$0xff]
        %v2449 = vld [vmem:[%s171 + $0x458] sm:$0xff]
        %v2450 = vld [vmem:[%s171 + $0x460] sm:$0xff]
        %v2451 = vld [vmem:[%s171 + $0x468] sm:$0xff]
        %v2452 = vld [vmem:[%s171 + $0x470] sm:$0xff]
        %v2453 = vld [vmem:[%s171 + $0x478] sm:$0xff]
        %v2454 = vmul.f32 %v2310, 1.1111112
        %v2455 = vmul.f32 %v2311, 1.1111112
        %v2456 = vmul.f32 %v2312, 1.1111112
        %v2457 = vmul.f32 %v2313, 1.1111112
        %v2458 = vmul.f32 %v2314, 1.1111112
        %v2459 = vmul.f32 %v2315, 1.1111112
        %v2460 = vmul.f32 %v2316, 1.1111112
        %v2461 = vmul.f32 %v2317, 1.1111112
        %v2462 = vmul.f32 %v2318, 1.1111112
        %v2463 = vmul.f32 %v2319, 1.1111112
        %v2464 = vmul.f32 %v2320, 1.1111112
        %v2465 = vmul.f32 %v2321, 1.1111112
        %v2466 = vmul.f32 %v2322, 1.1111112
        %v2467 = vmul.f32 %v2323, 1.1111112
        %v2468 = vmul.f32 %v2324, 1.1111112
        %v2469 = vmul.f32 %v2325, 1.1111112
        %v2470 = vmul.f32 %v2326, 1.1111112
        %v2471 = vmul.f32 %v2327, 1.1111112
        %v2472 = vmul.f32 %v2328, 1.1111112
        %v2473 = vmul.f32 %v2329, 1.1111112
        %v2474 = vmul.f32 %v2330, 1.1111112
        %v2475 = vmul.f32 %v2331, 1.1111112
        %v2476 = vmul.f32 %v2332, 1.1111112
        %v2477 = vmul.f32 %v2333, 1.1111112
        %v2478 = vmul.f32 %v2334, 1.1111112
        %v2479 = vmul.f32 %v2335, 1.1111112
        %v2480 = vmul.f32 %v2336, 1.1111112
        %v2481 = vmul.f32 %v2337, 1.1111112
        %v2482 = vmul.f32 %v2338, 1.1111112
        %v2483 = vmul.f32 %v2339, 1.1111112
        %v2484 = vmul.f32 %v2340, 1.1111112
        %v2485 = vmul.f32 %v2341, 1.1111112
        %v2486 = vmul.f32 %v2342, 1.1111112
        %v2487 = vmul.f32 %v2343, 1.1111112
        %v2488 = vmul.f32 %v2344, 1.1111112
        %v2489 = vmul.f32 %v2345, 1.1111112
        %v2490 = vmul.f32 %v2346, 1.1111112
        %v2491 = vmul.f32 %v2347, 1.1111112
        %v2492 = vmul.f32 %v2348, 1.1111112
        %v2493 = vmul.f32 %v2349, 1.1111112
        %v2494 = vmul.f32 %v2350, 1.1111112
        %v2495 = vmul.f32 %v2351, 1.1111112
        %v2496 = vmul.f32 %v2352, 1.1111112
        %v2497 = vmul.f32 %v2353, 1.1111112
        %v2498 = vmul.f32 %v2354, 1.1111112
        %v2499 = vmul.f32 %v2355, 1.1111112
        %v2500 = vmul.f32 %v2356, 1.1111112
        %v2501 = vmul.f32 %v2357, 1.1111112
        %v2502 = vmul.f32 %v2358, 1.1111112
        %v2503 = vmul.f32 %v2359, 1.1111112
        %v2504 = vmul.f32 %v2360, 1.1111112
        %v2505 = vmul.f32 %v2361, 1.1111112
        %v2506 = vmul.f32 %v2362, 1.1111112
        %v2507 = vmul.f32 %v2363, 1.1111112
        %v2508 = vmul.f32 %v2364, 1.1111112
        %v2509 = vmul.f32 %v2365, 1.1111112
        %v2510 = vmul.f32 %v2366, 1.1111112
        %v2511 = vmul.f32 %v2367, 1.1111112
        %v2512 = vmul.f32 %v2368, 1.1111112
        %v2513 = vmul.f32 %v2369, 1.1111112
        %v2514 = vmul.f32 %v2370, 1.1111112
        %v2515 = vmul.f32 %v2371, 1.1111112
        %v2516 = vmul.f32 %v2372, 1.1111112
        %v2517 = vmul.f32 %v2373, 1.1111112
        %v2518 = vmul.f32 %v2374, 1.1111112
        %v2519 = vmul.f32 %v2375, 1.1111112
        %v2520 = vmul.f32 %v2376, 1.1111112
        %v2521 = vmul.f32 %v2377, 1.1111112
        %v2522 = vmul.f32 %v2378, 1.1111112
        %v2523 = vmul.f32 %v2379, 1.1111112
        %v2524 = vmul.f32 %v2380, 1.1111112
        %v2525 = vmul.f32 %v2381, 1.1111112
        %v2526 = vmul.f32 %v2382, 1.1111112
        %v2527 = vmul.f32 %v2383, 1.1111112
        %v2528 = vmul.f32 %v2384, 1.1111112
        %v2529 = vmul.f32 %v2385, 1.1111112
        %v2530 = vmul.f32 %v2386, 1.1111112
        %v2531 = vmul.f32 %v2387, 1.1111112
        %v2532 = vmul.f32 %v2388, 1.1111112
        %v2533 = vmul.f32 %v2389, 1.1111112
        %v2534 = vmul.f32 %v2390, 1.1111112
        %v2535 = vmul.f32 %v2391, 1.1111112
        %v2536 = vmul.f32 %v2392, 1.1111112
        %v2537 = vmul.f32 %v2393, 1.1111112
        %v2538 = vmul.f32 %v2394, 1.1111112
        %v2539 = vmul.f32 %v2395, 1.1111112
        %v2540 = vmul.f32 %v2396, 1.1111112
        %v2541 = vmul.f32 %v2397, 1.1111112
        %v2542 = vmul.f32 %v2398, 1.1111112
        %v2543 = vmul.f32 %v2399, 1.1111112
        %v2544 = vmul.f32 %v2400, 1.1111112
        %v2545 = vmul.f32 %v2401, 1.1111112
        %v2546 = vmul.f32 %v2402, 1.1111112
        %v2547 = vmul.f32 %v2403, 1.1111112
        %v2548 = vmul.f32 %v2404, 1.1111112
        %v2549 = vmul.f32 %v2405, 1.1111112
        %v2550 = vmul.f32 %v2406, 1.1111112
        %v2551 = vmul.f32 %v2407, 1.1111112
        %v2552 = vmul.f32 %v2408, 1.1111112
        %v2553 = vmul.f32 %v2409, 1.1111112
        %v2554 = vmul.f32 %v2410, 1.1111112
        %v2555 = vmul.f32 %v2411, 1.1111112
        %v2556 = vmul.f32 %v2412, 1.1111112
        %v2557 = vmul.f32 %v2413, 1.1111112
        %v2558 = vmul.f32 %v2414, 1.1111112
        %v2559 = vmul.f32 %v2415, 1.1111112
        %v2560 = vmul.f32 %v2416, 1.1111112
        %v2561 = vmul.f32 %v2417, 1.1111112
        %v2562 = vmul.f32 %v2418, 1.1111112
        %v2563 = vmul.f32 %v2419, 1.1111112
        %v2564 = vmul.f32 %v2420, 1.1111112
        %v2565 = vmul.f32 %v2421, 1.1111112
        %v2566 = vmul.f32 %v2422, 1.1111112
        %v2567 = vmul.f32 %v2423, 1.1111112
        %v2568 = vmul.f32 %v2424, 1.1111112
        %v2569 = vmul.f32 %v2425, 1.1111112
        %v2570 = vmul.f32 %v2426, 1.1111112
        %v2571 = vmul.f32 %v2427, 1.1111112
        %v2572 = vmul.f32 %v2428, 1.1111112
        %v2573 = vmul.f32 %v2429, 1.1111112
        %v2574 = vmul.f32 %v2430, 1.1111112
        %v2575 = vmul.f32 %v2431, 1.1111112
        %v2576 = vmul.f32 %v2432, 1.1111112
        %v2577 = vmul.f32 %v2433, 1.1111112
        %v2578 = vmul.f32 %v2434, 1.1111112
        %v2579 = vmul.f32 %v2435, 1.1111112
        %v2580 = vmul.f32 %v2436, 1.1111112
        %v2581 = vmul.f32 %v2437, 1.1111112
        %v2582 = vmul.f32 %v2438, 1.1111112
        %v2583 = vmul.f32 %v2439, 1.1111112
        %v2584 = vmul.f32 %v2440, 1.1111112
        %v2585 = vmul.f32 %v2441, 1.1111112
        %v2586 = vmul.f32 %v2442, 1.1111112
        %v2587 = vmul.f32 %v2443, 1.1111112
        %v2588 = vmul.f32 %v2444, 1.1111112
        %v2589 = vmul.f32 %v2445, 1.1111112
        %v2590 = vmul.f32 %v2446, 1.1111112
        %v2591 = vmul.f32 %v2447, 1.1111112
        %v2592 = vmul.f32 %v2448, 1.1111112
        %v2593 = vmul.f32 %v2449, 1.1111112
        %v2594 = vmul.f32 %v2450, 1.1111112
        %v2595 = vmul.f32 %v2451, 1.1111112
        %v2596 = vmul.f32 %v2452, 1.1111112
        %v2597 = vmul.f32 %v2453, 1.1111112
        %v2598 = vsel %vm2166, %v2454, 0.0
        %v2599 = vsel %vm2167, %v2455, 0.0
        %v2600 = vsel %vm2168, %v2456, 0.0
        %v2601 = vsel %vm2169, %v2457, 0.0
        %v2602 = vsel %vm2170, %v2458, 0.0
        %v2603 = vsel %vm2171, %v2459, 0.0
        %v2604 = vsel %vm2172, %v2460, 0.0
        %v2605 = vsel %vm2173, %v2461, 0.0
        %v2606 = vsel %vm2174, %v2462, 0.0
        %v2607 = vsel %vm2175, %v2463, 0.0
        %v2608 = vsel %vm2176, %v2464, 0.0
        %v2609 = vsel %vm2177, %v2465, 0.0
        %v2610 = vsel %vm2178, %v2466, 0.0
        %v2611 = vsel %vm2179, %v2467, 0.0
        %v2612 = vsel %vm2180, %v2468, 0.0
        %v2613 = vsel %vm2181, %v2469, 0.0
        %v2614 = vsel %vm2182, %v2470, 0.0
        %v2615 = vsel %vm2183, %v2471, 0.0
        %v2616 = vsel %vm2184, %v2472, 0.0
        %v2617 = vsel %vm2185, %v2473, 0.0
        %v2618 = vsel %vm2186, %v2474, 0.0
        %v2619 = vsel %vm2187, %v2475, 0.0
        %v2620 = vsel %vm2188, %v2476, 0.0
        %v2621 = vsel %vm2189, %v2477, 0.0
        %v2622 = vsel %vm2190, %v2478, 0.0
        %v2623 = vsel %vm2191, %v2479, 0.0
        %v2624 = vsel %vm2192, %v2480, 0.0
        %v2625 = vsel %vm2193, %v2481, 0.0
        %v2626 = vsel %vm2194, %v2482, 0.0
        %v2627 = vsel %vm2195, %v2483, 0.0
        %v2628 = vsel %vm2196, %v2484, 0.0
        %v2629 = vsel %vm2197, %v2485, 0.0
        %v2630 = vsel %vm2198, %v2486, 0.0
        %v2631 = vsel %vm2199, %v2487, 0.0
        %v2632 = vsel %vm2200, %v2488, 0.0
        %v2633 = vsel %vm2201, %v2489, 0.0
        %v2634 = vsel %vm2202, %v2490, 0.0
        %v2635 = vsel %vm2203, %v2491, 0.0
        %v2636 = vsel %vm2204, %v2492, 0.0
        %v2637 = vsel %vm2205, %v2493, 0.0
        %v2638 = vsel %vm2206, %v2494, 0.0
        %v2639 = vsel %vm2207, %v2495, 0.0
        %v2640 = vsel %vm2208, %v2496, 0.0
        %v2641 = vsel %vm2209, %v2497, 0.0
        %v2642 = vsel %vm2210, %v2498, 0.0
        %v2643 = vsel %vm2211, %v2499, 0.0
        %v2644 = vsel %vm2212, %v2500, 0.0
        %v2645 = vsel %vm2213, %v2501, 0.0
        %v2646 = vsel %vm2214, %v2502, 0.0
        %v2647 = vsel %vm2215, %v2503, 0.0
        %v2648 = vsel %vm2216, %v2504, 0.0
        %v2649 = vsel %vm2217, %v2505, 0.0
        %v2650 = vsel %vm2218, %v2506, 0.0
        %v2651 = vsel %vm2219, %v2507, 0.0
        %v2652 = vsel %vm2220, %v2508, 0.0
        %v2653 = vsel %vm2221, %v2509, 0.0
        %v2654 = vsel %vm2222, %v2510, 0.0
        %v2655 = vsel %vm2223, %v2511, 0.0
        %v2656 = vsel %vm2224, %v2512, 0.0
        %v2657 = vsel %vm2225, %v2513, 0.0
        %v2658 = vsel %vm2226, %v2514, 0.0
        %v2659 = vsel %vm2227, %v2515, 0.0
        %v2660 = vsel %vm2228, %v2516, 0.0
        %v2661 = vsel %vm2229, %v2517, 0.0
        %v2662 = vsel %vm2230, %v2518, 0.0
        %v2663 = vsel %vm2231, %v2519, 0.0
        %v2664 = vsel %vm2232, %v2520, 0.0
        %v2665 = vsel %vm2233, %v2521, 0.0
        %v2666 = vsel %vm2234, %v2522, 0.0
        %v2667 = vsel %vm2235, %v2523, 0.0
        %v2668 = vsel %vm2236, %v2524, 0.0
        %v2669 = vsel %vm2237, %v2525, 0.0
        %v2670 = vsel %vm2238, %v2526, 0.0
        %v2671 = vsel %vm2239, %v2527, 0.0
        %v2672 = vsel %vm2240, %v2528, 0.0
        %v2673 = vsel %vm2241, %v2529, 0.0
        %v2674 = vsel %vm2242, %v2530, 0.0
        %v2675 = vsel %vm2243, %v2531, 0.0
        %v2676 = vsel %vm2244, %v2532, 0.0
        %v2677 = vsel %vm2245, %v2533, 0.0
        %v2678 = vsel %vm2246, %v2534, 0.0
        %v2679 = vsel %vm2247, %v2535, 0.0
        %v2680 = vsel %vm2248, %v2536, 0.0
        %v2681 = vsel %vm2249, %v2537, 0.0
        %v2682 = vsel %vm2250, %v2538, 0.0
        %v2683 = vsel %vm2251, %v2539, 0.0
        %v2684 = vsel %vm2252, %v2540, 0.0
        %v2685 = vsel %vm2253, %v2541, 0.0
        %v2686 = vsel %vm2254, %v2542, 0.0
        %v2687 = vsel %vm2255, %v2543, 0.0
        %v2688 = vsel %vm2256, %v2544, 0.0
        %v2689 = vsel %vm2257, %v2545, 0.0
        %v2690 = vsel %vm2258, %v2546, 0.0
        %v2691 = vsel %vm2259, %v2547, 0.0
        %v2692 = vsel %vm2260, %v2548, 0.0
        %v2693 = vsel %vm2261, %v2549, 0.0
        %v2694 = vsel %vm2262, %v2550, 0.0
        %v2695 = vsel %vm2263, %v2551, 0.0
        %v2696 = vsel %vm2264, %v2552, 0.0
        %v2697 = vsel %vm2265, %v2553, 0.0
        %v2698 = vsel %vm2266, %v2554, 0.0
        %v2699 = vsel %vm2267, %v2555, 0.0
        %v2700 = vsel %vm2268, %v2556, 0.0
        %v2701 = vsel %vm2269, %v2557, 0.0
        %v2702 = vsel %vm2270, %v2558, 0.0
        %v2703 = vsel %vm2271, %v2559, 0.0
        %v2704 = vsel %vm2272, %v2560, 0.0
        %v2705 = vsel %vm2273, %v2561, 0.0
        %v2706 = vsel %vm2274, %v2562, 0.0
        %v2707 = vsel %vm2275, %v2563, 0.0
        %v2708 = vsel %vm2276, %v2564, 0.0
        %v2709 = vsel %vm2277, %v2565, 0.0
        %v2710 = vsel %vm2278, %v2566, 0.0
        %v2711 = vsel %vm2279, %v2567, 0.0
        %v2712 = vsel %vm2280, %v2568, 0.0
        %v2713 = vsel %vm2281, %v2569, 0.0
        %v2714 = vsel %vm2282, %v2570, 0.0
        %v2715 = vsel %vm2283, %v2571, 0.0
        %v2716 = vsel %vm2284, %v2572, 0.0
        %v2717 = vsel %vm2285, %v2573, 0.0
        %v2718 = vsel %vm2286, %v2574, 0.0
        %v2719 = vsel %vm2287, %v2575, 0.0
        %v2720 = vsel %vm2288, %v2576, 0.0
        %v2721 = vsel %vm2289, %v2577, 0.0
        %v2722 = vsel %vm2290, %v2578, 0.0
        %v2723 = vsel %vm2291, %v2579, 0.0
        %v2724 = vsel %vm2292, %v2580, 0.0
        %v2725 = vsel %vm2293, %v2581, 0.0
        %v2726 = vsel %vm2294, %v2582, 0.0
        %v2727 = vsel %vm2295, %v2583, 0.0
        %v2728 = vsel %vm2296, %v2584, 0.0
        %v2729 = vsel %vm2297, %v2585, 0.0
        %v2730 = vsel %vm2298, %v2586, 0.0
        %v2731 = vsel %vm2299, %v2587, 0.0
        %v2732 = vsel %vm2300, %v2588, 0.0
        %v2733 = vsel %vm2301, %v2589, 0.0
        %v2734 = vsel %vm2302, %v2590, 0.0
        %v2735 = vsel %vm2303, %v2591, 0.0
        %v2736 = vsel %vm2304, %v2592, 0.0
        %v2737 = vsel %vm2305, %v2593, 0.0
        %v2738 = vsel %vm2306, %v2594, 0.0
        %v2739 = vsel %vm2307, %v2595, 0.0
        %v2740 = vsel %vm2308, %v2596, 0.0
        %v2741 = vsel %vm2309, %v2597, 0.0
        %v2742 = vld [vmem:[%s180] sm:$0xff]
        %v2743 = vld [vmem:[%s180 + $0x8] sm:$0xff]
        %v2744 = vld [vmem:[%s180 + $0x10] sm:$0xff]
        %v2745 = vld [vmem:[%s180 + $0x18] sm:$0xff]
        %v2746 = vld [vmem:[%s180 + $0x20] sm:$0xff]
        %v2747 = vld [vmem:[%s180 + $0x28] sm:$0xff]
        %v2748 = vld [vmem:[%s180 + $0x30] sm:$0xff]
        %v2749 = vld [vmem:[%s180 + $0x38] sm:$0xff]
        %v2750 = vld [vmem:[%s180 + $0x40] sm:$0xff]
        %v2751 = vld [vmem:[%s180 + $0x48] sm:$0xff]
        %v2752 = vld [vmem:[%s180 + $0x50] sm:$0xff]
        %v2753 = vld [vmem:[%s180 + $0x58] sm:$0xff]
        %v2754 = vld [vmem:[%s180 + $0x60] sm:$0xff]
        %v2755 = vld [vmem:[%s180 + $0x68] sm:$0xff]
        %v2756 = vld [vmem:[%s180 + $0x70] sm:$0xff]
        %v2757 = vld [vmem:[%s180 + $0x78] sm:$0xff]
        %v2758 = vld [vmem:[%s180 + $0x80] sm:$0xff]
        %v2759 = vld [vmem:[%s180 + $0x88] sm:$0xff]
        %v2760 = vld [vmem:[%s180 + $0x90] sm:$0xff]
        %v2761 = vld [vmem:[%s180 + $0x98] sm:$0xff]
        %v2762 = vld [vmem:[%s180 + $0xa0] sm:$0xff]
        %v2763 = vld [vmem:[%s180 + $0xa8] sm:$0xff]
        %v2764 = vld [vmem:[%s180 + $0xb0] sm:$0xff]
        %v2765 = vld [vmem:[%s180 + $0xb8] sm:$0xff]
        %v2766 = vld [vmem:[%s180 + $0xc0] sm:$0xff]
        %v2767 = vld [vmem:[%s180 + $0xc8] sm:$0xff]
        %v2768 = vld [vmem:[%s180 + $0xd0] sm:$0xff]
        %v2769 = vld [vmem:[%s180 + $0xd8] sm:$0xff]
        %v2770 = vld [vmem:[%s180 + $0xe0] sm:$0xff]
        %v2771 = vld [vmem:[%s180 + $0xe8] sm:$0xff]
        %v2772 = vld [vmem:[%s180 + $0xf0] sm:$0xff]
        %v2773 = vld [vmem:[%s180 + $0xf8] sm:$0xff]
        %v2774 = vld [vmem:[%s180 + $0x100] sm:$0xff]
        %v2775 = vld [vmem:[%s180 + $0x108] sm:$0xff]
        %v2776 = vld [vmem:[%s180 + $0x110] sm:$0xff]
        %v2777 = vld [vmem:[%s180 + $0x118] sm:$0xff]
        %v2778 = vld [vmem:[%s180 + $0x120] sm:$0xff]
        %v2779 = vld [vmem:[%s180 + $0x128] sm:$0xff]
        %v2780 = vld [vmem:[%s180 + $0x130] sm:$0xff]
        %v2781 = vld [vmem:[%s180 + $0x138] sm:$0xff]
        %v2782 = vld [vmem:[%s180 + $0x140] sm:$0xff]
        %v2783 = vld [vmem:[%s180 + $0x148] sm:$0xff]
        %v2784 = vld [vmem:[%s180 + $0x150] sm:$0xff]
        %v2785 = vld [vmem:[%s180 + $0x158] sm:$0xff]
        %v2786 = vld [vmem:[%s180 + $0x160] sm:$0xff]
        %v2787 = vld [vmem:[%s180 + $0x168] sm:$0xff]
        %v2788 = vld [vmem:[%s180 + $0x170] sm:$0xff]
        %v2789 = vld [vmem:[%s180 + $0x178] sm:$0xff]
        %v2790 = vld [vmem:[%s180 + $0x180] sm:$0xff]
        %v2791 = vld [vmem:[%s180 + $0x188] sm:$0xff]
        %v2792 = vld [vmem:[%s180 + $0x190] sm:$0xff]
        %v2793 = vld [vmem:[%s180 + $0x198] sm:$0xff]
        %v2794 = vld [vmem:[%s180 + $0x1a0] sm:$0xff]
        %v2795 = vld [vmem:[%s180 + $0x1a8] sm:$0xff]
        %v2796 = vld [vmem:[%s180 + $0x1b0] sm:$0xff]
        %v2797 = vld [vmem:[%s180 + $0x1b8] sm:$0xff]
        %v2798 = vld [vmem:[%s180 + $0x1c0] sm:$0xff]
        %v2799 = vld [vmem:[%s180 + $0x1c8] sm:$0xff]
        %v2800 = vld [vmem:[%s180 + $0x1d0] sm:$0xff]
        %v2801 = vld [vmem:[%s180 + $0x1d8] sm:$0xff]
        %v2802 = vld [vmem:[%s180 + $0x1e0] sm:$0xff]
        %v2803 = vld [vmem:[%s180 + $0x1e8] sm:$0xff]
        %v2804 = vld [vmem:[%s180 + $0x1f0] sm:$0xff]
        %v2805 = vld [vmem:[%s180 + $0x1f8] sm:$0xff]
        %v2806 = vld [vmem:[%s180 + $0x200] sm:$0xff]
        %v2807 = vld [vmem:[%s180 + $0x208] sm:$0xff]
        %v2808 = vld [vmem:[%s180 + $0x210] sm:$0xff]
        %v2809 = vld [vmem:[%s180 + $0x218] sm:$0xff]
        %v2810 = vld [vmem:[%s180 + $0x220] sm:$0xff]
        %v2811 = vld [vmem:[%s180 + $0x228] sm:$0xff]
        %v2812 = vld [vmem:[%s180 + $0x230] sm:$0xff]
        %v2813 = vld [vmem:[%s180 + $0x238] sm:$0xff]
        %v2814 = vld [vmem:[%s180 + $0x240] sm:$0xff]
        %v2815 = vld [vmem:[%s180 + $0x248] sm:$0xff]
        %v2816 = vld [vmem:[%s180 + $0x250] sm:$0xff]
        %v2817 = vld [vmem:[%s180 + $0x258] sm:$0xff]
        %v2818 = vld [vmem:[%s180 + $0x260] sm:$0xff]
        %v2819 = vld [vmem:[%s180 + $0x268] sm:$0xff]
        %v2820 = vld [vmem:[%s180 + $0x270] sm:$0xff]
        %v2821 = vld [vmem:[%s180 + $0x278] sm:$0xff]
        %v2822 = vld [vmem:[%s180 + $0x280] sm:$0xff]
        %v2823 = vld [vmem:[%s180 + $0x288] sm:$0xff]
        %v2824 = vld [vmem:[%s180 + $0x290] sm:$0xff]
        %v2825 = vld [vmem:[%s180 + $0x298] sm:$0xff]
        %v2826 = vld [vmem:[%s180 + $0x2a0] sm:$0xff]
        %v2827 = vld [vmem:[%s180 + $0x2a8] sm:$0xff]
        %v2828 = vld [vmem:[%s180 + $0x2b0] sm:$0xff]
        %v2829 = vld [vmem:[%s180 + $0x2b8] sm:$0xff]
        %v2830 = vld [vmem:[%s180 + $0x2c0] sm:$0xff]
        %v2831 = vld [vmem:[%s180 + $0x2c8] sm:$0xff]
        %v2832 = vld [vmem:[%s180 + $0x2d0] sm:$0xff]
        %v2833 = vld [vmem:[%s180 + $0x2d8] sm:$0xff]
        %v2834 = vld [vmem:[%s180 + $0x2e0] sm:$0xff]
        %v2835 = vld [vmem:[%s180 + $0x2e8] sm:$0xff]
        %v2836 = vld [vmem:[%s180 + $0x2f0] sm:$0xff]
        %v2837 = vld [vmem:[%s180 + $0x2f8] sm:$0xff]
        %v2838 = vld [vmem:[%s180 + $0x300] sm:$0xff]
        %v2839 = vld [vmem:[%s180 + $0x308] sm:$0xff]
        %v2840 = vld [vmem:[%s180 + $0x310] sm:$0xff]
        %v2841 = vld [vmem:[%s180 + $0x318] sm:$0xff]
        %v2842 = vld [vmem:[%s180 + $0x320] sm:$0xff]
        %v2843 = vld [vmem:[%s180 + $0x328] sm:$0xff]
        %v2844 = vld [vmem:[%s180 + $0x330] sm:$0xff]
        %v2845 = vld [vmem:[%s180 + $0x338] sm:$0xff]
        %v2846 = vld [vmem:[%s180 + $0x340] sm:$0xff]
        %v2847 = vld [vmem:[%s180 + $0x348] sm:$0xff]
        %v2848 = vld [vmem:[%s180 + $0x350] sm:$0xff]
        %v2849 = vld [vmem:[%s180 + $0x358] sm:$0xff]
        %v2850 = vld [vmem:[%s180 + $0x360] sm:$0xff]
        %v2851 = vld [vmem:[%s180 + $0x368] sm:$0xff]
        %v2852 = vld [vmem:[%s180 + $0x370] sm:$0xff]
        %v2853 = vld [vmem:[%s180 + $0x378] sm:$0xff]
        %v2854 = vld [vmem:[%s180 + $0x380] sm:$0xff]
        %v2855 = vld [vmem:[%s180 + $0x388] sm:$0xff]
        %v2856 = vld [vmem:[%s180 + $0x390] sm:$0xff]
        %v2857 = vld [vmem:[%s180 + $0x398] sm:$0xff]
        %v2858 = vld [vmem:[%s180 + $0x3a0] sm:$0xff]
        %v2859 = vld [vmem:[%s180 + $0x3a8] sm:$0xff]
        %v2860 = vld [vmem:[%s180 + $0x3b0] sm:$0xff]
        %v2861 = vld [vmem:[%s180 + $0x3b8] sm:$0xff]
        %v2862 = vld [vmem:[%s180 + $0x3c0] sm:$0xff]
        %v2863 = vld [vmem:[%s180 + $0x3c8] sm:$0xff]
        %v2864 = vld [vmem:[%s180 + $0x3d0] sm:$0xff]
        %v2865 = vld [vmem:[%s180 + $0x3d8] sm:$0xff]
        %v2866 = vld [vmem:[%s180 + $0x3e0] sm:$0xff]
        %v2867 = vld [vmem:[%s180 + $0x3e8] sm:$0xff]
        %v2868 = vld [vmem:[%s180 + $0x3f0] sm:$0xff]
        %v2869 = vld [vmem:[%s180 + $0x3f8] sm:$0xff]
        %v2870 = vld [vmem:[%s180 + $0x400] sm:$0xff]
        %v2871 = vld [vmem:[%s180 + $0x408] sm:$0xff]
        %v2872 = vld [vmem:[%s180 + $0x410] sm:$0xff]
        %v2873 = vld [vmem:[%s180 + $0x418] sm:$0xff]
        %v2874 = vld [vmem:[%s180 + $0x420] sm:$0xff]
        %v2875 = vld [vmem:[%s180 + $0x428] sm:$0xff]
        %v2876 = vld [vmem:[%s180 + $0x430] sm:$0xff]
        %v2877 = vld [vmem:[%s180 + $0x438] sm:$0xff]
        %v2878 = vld [vmem:[%s180 + $0x440] sm:$0xff]
        %v2879 = vld [vmem:[%s180 + $0x448] sm:$0xff]
        %v2880 = vld [vmem:[%s180 + $0x450] sm:$0xff]
        %v2881 = vld [vmem:[%s180 + $0x458] sm:$0xff]
        %v2882 = vld [vmem:[%s180 + $0x460] sm:$0xff]
        %v2883 = vld [vmem:[%s180 + $0x468] sm:$0xff]
        %v2884 = vld [vmem:[%s180 + $0x470] sm:$0xff]
        %v2885 = vld [vmem:[%s180 + $0x478] sm:$0xff]
        %v2886 = vadd.f32 %v2598, %v2742
        %v2887 = vadd.f32 %v2599, %v2743
        %v2888 = vadd.f32 %v2600, %v2744
        %v2889 = vadd.f32 %v2601, %v2745
        %v2890 = vadd.f32 %v2602, %v2746
        %v2891 = vadd.f32 %v2603, %v2747
        %v2892 = vadd.f32 %v2604, %v2748
        %v2893 = vadd.f32 %v2605, %v2749
        %v2894 = vadd.f32 %v2606, %v2750
        %v2895 = vadd.f32 %v2607, %v2751
        %v2896 = vadd.f32 %v2608, %v2752
        %v2897 = vadd.f32 %v2609, %v2753
        %v2898 = vadd.f32 %v2610, %v2754
        %v2899 = vadd.f32 %v2611, %v2755
        %v2900 = vadd.f32 %v2612, %v2756
        %v2901 = vadd.f32 %v2613, %v2757
        %v2902 = vadd.f32 %v2614, %v2758
        %v2903 = vadd.f32 %v2615, %v2759
        %v2904 = vadd.f32 %v2616, %v2760
        %v2905 = vadd.f32 %v2617, %v2761
        %v2906 = vadd.f32 %v2618, %v2762
        %v2907 = vadd.f32 %v2619, %v2763
        %v2908 = vadd.f32 %v2620, %v2764
        %v2909 = vadd.f32 %v2621, %v2765
        %v2910 = vadd.f32 %v2622, %v2766
        %v2911 = vadd.f32 %v2623, %v2767
        %v2912 = vadd.f32 %v2624, %v2768
        %v2913 = vadd.f32 %v2625, %v2769
        %v2914 = vadd.f32 %v2626, %v2770
        %v2915 = vadd.f32 %v2627, %v2771
        %v2916 = vadd.f32 %v2628, %v2772
        %v2917 = vadd.f32 %v2629, %v2773
        %v2918 = vadd.f32 %v2630, %v2774
        %v2919 = vadd.f32 %v2631, %v2775
        %v2920 = vadd.f32 %v2632, %v2776
        %v2921 = vadd.f32 %v2633, %v2777
        %v2922 = vadd.f32 %v2634, %v2778
        %v2923 = vadd.f32 %v2635, %v2779
        %v2924 = vadd.f32 %v2636, %v2780
        %v2925 = vadd.f32 %v2637, %v2781
        %v2926 = vadd.f32 %v2638, %v2782
        %v2927 = vadd.f32 %v2639, %v2783
        %v2928 = vadd.f32 %v2640, %v2784
        %v2929 = vadd.f32 %v2641, %v2785
        %v2930 = vadd.f32 %v2642, %v2786
        %v2931 = vadd.f32 %v2643, %v2787
        %v2932 = vadd.f32 %v2644, %v2788
        %v2933 = vadd.f32 %v2645, %v2789
        %v2934 = vadd.f32 %v2646, %v2790
        %v2935 = vadd.f32 %v2647, %v2791
        %v2936 = vadd.f32 %v2648, %v2792
        %v2937 = vadd.f32 %v2649, %v2793
        %v2938 = vadd.f32 %v2650, %v2794
        %v2939 = vadd.f32 %v2651, %v2795
        %v2940 = vadd.f32 %v2652, %v2796
        %v2941 = vadd.f32 %v2653, %v2797
        %v2942 = vadd.f32 %v2654, %v2798
        %v2943 = vadd.f32 %v2655, %v2799
        %v2944 = vadd.f32 %v2656, %v2800
        %v2945 = vadd.f32 %v2657, %v2801
        %v2946 = vadd.f32 %v2658, %v2802
        %v2947 = vadd.f32 %v2659, %v2803
        %v2948 = vadd.f32 %v2660, %v2804
        %v2949 = vadd.f32 %v2661, %v2805
        %v2950 = vadd.f32 %v2662, %v2806
        %v2951 = vadd.f32 %v2663, %v2807
        %v2952 = vadd.f32 %v2664, %v2808
        %v2953 = vadd.f32 %v2665, %v2809
        %v2954 = vadd.f32 %v2666, %v2810
        %v2955 = vadd.f32 %v2667, %v2811
        %v2956 = vadd.f32 %v2668, %v2812
        %v2957 = vadd.f32 %v2669, %v2813
        %v2958 = vadd.f32 %v2670, %v2814
        %v2959 = vadd.f32 %v2671, %v2815
        %v2960 = vadd.f32 %v2672, %v2816
        %v2961 = vadd.f32 %v2673, %v2817
        %v2962 = vadd.f32 %v2674, %v2818
        %v2963 = vadd.f32 %v2675, %v2819
        %v2964 = vadd.f32 %v2676, %v2820
        %v2965 = vadd.f32 %v2677, %v2821
        %v2966 = vadd.f32 %v2678, %v2822
        %v2967 = vadd.f32 %v2679, %v2823
        %v2968 = vadd.f32 %v2680, %v2824
        %v2969 = vadd.f32 %v2681, %v2825
        %v2970 = vadd.f32 %v2682, %v2826
        %v2971 = vadd.f32 %v2683, %v2827
        %v2972 = vadd.f32 %v2684, %v2828
        %v2973 = vadd.f32 %v2685, %v2829
        %v2974 = vadd.f32 %v2686, %v2830
        %v2975 = vadd.f32 %v2687, %v2831
        %v2976 = vadd.f32 %v2688, %v2832
        %v2977 = vadd.f32 %v2689, %v2833
        %v2978 = vadd.f32 %v2690, %v2834
        %v2979 = vadd.f32 %v2691, %v2835
        %v2980 = vadd.f32 %v2692, %v2836
        %v2981 = vadd.f32 %v2693, %v2837
        %v2982 = vadd.f32 %v2694, %v2838
        %v2983 = vadd.f32 %v2695, %v2839
        %v2984 = vadd.f32 %v2696, %v2840
        %v2985 = vadd.f32 %v2697, %v2841
        %v2986 = vadd.f32 %v2698, %v2842
        %v2987 = vadd.f32 %v2699, %v2843
        %v2988 = vadd.f32 %v2700, %v2844
        %v2989 = vadd.f32 %v2701, %v2845
        %v2990 = vadd.f32 %v2702, %v2846
        %v2991 = vadd.f32 %v2703, %v2847
        %v2992 = vadd.f32 %v2704, %v2848
        %v2993 = vadd.f32 %v2705, %v2849
        %v2994 = vadd.f32 %v2706, %v2850
        %v2995 = vadd.f32 %v2707, %v2851
        %v2996 = vadd.f32 %v2708, %v2852
        %v2997 = vadd.f32 %v2709, %v2853
        %v2998 = vadd.f32 %v2710, %v2854
        %v2999 = vadd.f32 %v2711, %v2855
        %v3000 = vadd.f32 %v2712, %v2856
        %v3001 = vadd.f32 %v2713, %v2857
        %v3002 = vadd.f32 %v2714, %v2858
        %v3003 = vadd.f32 %v2715, %v2859
        %v3004 = vadd.f32 %v2716, %v2860
        %v3005 = vadd.f32 %v2717, %v2861
        %v3006 = vadd.f32 %v2718, %v2862
        %v3007 = vadd.f32 %v2719, %v2863
        %v3008 = vadd.f32 %v2720, %v2864
        %v3009 = vadd.f32 %v2721, %v2865
        %v3010 = vadd.f32 %v2722, %v2866
        %v3011 = vadd.f32 %v2723, %v2867
        %v3012 = vadd.f32 %v2724, %v2868
        %v3013 = vadd.f32 %v2725, %v2869
        %v3014 = vadd.f32 %v2726, %v2870
        %v3015 = vadd.f32 %v2727, %v2871
        %v3016 = vadd.f32 %v2728, %v2872
        %v3017 = vadd.f32 %v2729, %v2873
        %v3018 = vadd.f32 %v2730, %v2874
        %v3019 = vadd.f32 %v2731, %v2875
        %v3020 = vadd.f32 %v2732, %v2876
        %v3021 = vadd.f32 %v2733, %v2877
        %v3022 = vadd.f32 %v2734, %v2878
        %v3023 = vadd.f32 %v2735, %v2879
        %v3024 = vadd.f32 %v2736, %v2880
        %v3025 = vadd.f32 %v2737, %v2881
        %v3026 = vadd.f32 %v2738, %v2882
        %v3027 = vadd.f32 %v2739, %v2883
        %v3028 = vadd.f32 %v2740, %v2884
        %v3029 = vadd.f32 %v2741, %v2885
        %3030 = vst [vmem:[%s205] sm:$0xff] %v2886
        %3031 = vst [vmem:[%s205 + $0x8] sm:$0xff] %v2887
        %3032 = vst [vmem:[%s205 + $0x10] sm:$0xff] %v2888
        %3033 = vst [vmem:[%s205 + $0x18] sm:$0xff] %v2889
        %3034 = vst [vmem:[%s205 + $0x20] sm:$0xff] %v2890
        %3035 = vst [vmem:[%s205 + $0x28] sm:$0xff] %v2891
        %3036 = vst [vmem:[%s205 + $0x30] sm:$0xff] %v2892
        %3037 = vst [vmem:[%s205 + $0x38] sm:$0xff] %v2893
        %3038 = vst [vmem:[%s205 + $0x40] sm:$0xff] %v2894
        %3039 = vst [vmem:[%s205 + $0x48] sm:$0xff] %v2895
        %3040 = vst [vmem:[%s205 + $0x50] sm:$0xff] %v2896
        %3041 = vst [vmem:[%s205 + $0x58] sm:$0xff] %v2897
        %3042 = vst [vmem:[%s205 + $0x60] sm:$0xff] %v2898
        %3043 = vst [vmem:[%s205 + $0x68] sm:$0xff] %v2899
        %3044 = vst [vmem:[%s205 + $0x70] sm:$0xff] %v2900
        %3045 = vst [vmem:[%s205 + $0x78] sm:$0xff] %v2901
        %3046 = vst [vmem:[%s205 + $0x80] sm:$0xff] %v2902
        %3047 = vst [vmem:[%s205 + $0x88] sm:$0xff] %v2903
        %3048 = vst [vmem:[%s205 + $0x90] sm:$0xff] %v2904
        %3049 = vst [vmem:[%s205 + $0x98] sm:$0xff] %v2905
        %3050 = vst [vmem:[%s205 + $0xa0] sm:$0xff] %v2906
        %3051 = vst [vmem:[%s205 + $0xa8] sm:$0xff] %v2907
        %3052 = vst [vmem:[%s205 + $0xb0] sm:$0xff] %v2908
        %3053 = vst [vmem:[%s205 + $0xb8] sm:$0xff] %v2909
        %3054 = vst [vmem:[%s205 + $0xc0] sm:$0xff] %v2910
        %3055 = vst [vmem:[%s205 + $0xc8] sm:$0xff] %v2911
        %3056 = vst [vmem:[%s205 + $0xd0] sm:$0xff] %v2912
        %3057 = vst [vmem:[%s205 + $0xd8] sm:$0xff] %v2913
        %3058 = vst [vmem:[%s205 + $0xe0] sm:$0xff] %v2914
        %3059 = vst [vmem:[%s205 + $0xe8] sm:$0xff] %v2915
        %3060 = vst [vmem:[%s205 + $0xf0] sm:$0xff] %v2916
        %3061 = vst [vmem:[%s205 + $0xf8] sm:$0xff] %v2917
        %3062 = vst [vmem:[%s205 + $0x100] sm:$0xff] %v2918
        %3063 = vst [vmem:[%s205 + $0x108] sm:$0xff] %v2919
        %3064 = vst [vmem:[%s205 + $0x110] sm:$0xff] %v2920
        %3065 = vst [vmem:[%s205 + $0x118] sm:$0xff] %v2921
        %3066 = vst [vmem:[%s205 + $0x120] sm:$0xff] %v2922
        %3067 = vst [vmem:[%s205 + $0x128] sm:$0xff] %v2923
        %3068 = vst [vmem:[%s205 + $0x130] sm:$0xff] %v2924
        %3069 = vst [vmem:[%s205 + $0x138] sm:$0xff] %v2925
        %3070 = vst [vmem:[%s205 + $0x140] sm:$0xff] %v2926
        %3071 = vst [vmem:[%s205 + $0x148] sm:$0xff] %v2927
        %3072 = vst [vmem:[%s205 + $0x150] sm:$0xff] %v2928
        %3073 = vst [vmem:[%s205 + $0x158] sm:$0xff] %v2929
        %3074 = vst [vmem:[%s205 + $0x160] sm:$0xff] %v2930
        %3075 = vst [vmem:[%s205 + $0x168] sm:$0xff] %v2931
        %3076 = vst [vmem:[%s205 + $0x170] sm:$0xff] %v2932
        %3077 = vst [vmem:[%s205 + $0x178] sm:$0xff] %v2933
        %3078 = vst [vmem:[%s205 + $0x180] sm:$0xff] %v2934
        %3079 = vst [vmem:[%s205 + $0x188] sm:$0xff] %v2935
        %3080 = vst [vmem:[%s205 + $0x190] sm:$0xff] %v2936
        %3081 = vst [vmem:[%s205 + $0x198] sm:$0xff] %v2937
        %3082 = vst [vmem:[%s205 + $0x1a0] sm:$0xff] %v2938
        %3083 = vst [vmem:[%s205 + $0x1a8] sm:$0xff] %v2939
        %3084 = vst [vmem:[%s205 + $0x1b0] sm:$0xff] %v2940
        %3085 = vst [vmem:[%s205 + $0x1b8] sm:$0xff] %v2941
        %3086 = vst [vmem:[%s205 + $0x1c0] sm:$0xff] %v2942
        %3087 = vst [vmem:[%s205 + $0x1c8] sm:$0xff] %v2943
        %3088 = vst [vmem:[%s205 + $0x1d0] sm:$0xff] %v2944
        %3089 = vst [vmem:[%s205 + $0x1d8] sm:$0xff] %v2945
        %3090 = vst [vmem:[%s205 + $0x1e0] sm:$0xff] %v2946
        %3091 = vst [vmem:[%s205 + $0x1e8] sm:$0xff] %v2947
        %3092 = vst [vmem:[%s205 + $0x1f0] sm:$0xff] %v2948
        %3093 = vst [vmem:[%s205 + $0x1f8] sm:$0xff] %v2949
        %3094 = vst [vmem:[%s205 + $0x200] sm:$0xff] %v2950
        %3095 = vst [vmem:[%s205 + $0x208] sm:$0xff] %v2951
        %3096 = vst [vmem:[%s205 + $0x210] sm:$0xff] %v2952
        %3097 = vst [vmem:[%s205 + $0x218] sm:$0xff] %v2953
        %3098 = vst [vmem:[%s205 + $0x220] sm:$0xff] %v2954
        %3099 = vst [vmem:[%s205 + $0x228] sm:$0xff] %v2955
        %3100 = vst [vmem:[%s205 + $0x230] sm:$0xff] %v2956
        %3101 = vst [vmem:[%s205 + $0x238] sm:$0xff] %v2957
        %3102 = vst [vmem:[%s205 + $0x240] sm:$0xff] %v2958
        %3103 = vst [vmem:[%s205 + $0x248] sm:$0xff] %v2959
        %3104 = vst [vmem:[%s205 + $0x250] sm:$0xff] %v2960
        %3105 = vst [vmem:[%s205 + $0x258] sm:$0xff] %v2961
        %3106 = vst [vmem:[%s205 + $0x260] sm:$0xff] %v2962
        %3107 = vst [vmem:[%s205 + $0x268] sm:$0xff] %v2963
        %3108 = vst [vmem:[%s205 + $0x270] sm:$0xff] %v2964
        %3109 = vst [vmem:[%s205 + $0x278] sm:$0xff] %v2965
        %3110 = vst [vmem:[%s205 + $0x280] sm:$0xff] %v2966
        %3111 = vst [vmem:[%s205 + $0x288] sm:$0xff] %v2967
        %3112 = vst [vmem:[%s205 + $0x290] sm:$0xff] %v2968
        %3113 = vst [vmem:[%s205 + $0x298] sm:$0xff] %v2969
        %3114 = vst [vmem:[%s205 + $0x2a0] sm:$0xff] %v2970
        %3115 = vst [vmem:[%s205 + $0x2a8] sm:$0xff] %v2971
        %3116 = vst [vmem:[%s205 + $0x2b0] sm:$0xff] %v2972
        %3117 = vst [vmem:[%s205 + $0x2b8] sm:$0xff] %v2973
        %3118 = vst [vmem:[%s205 + $0x2c0] sm:$0xff] %v2974
        %3119 = vst [vmem:[%s205 + $0x2c8] sm:$0xff] %v2975
        %3120 = vst [vmem:[%s205 + $0x2d0] sm:$0xff] %v2976
        %3121 = vst [vmem:[%s205 + $0x2d8] sm:$0xff] %v2977
        %3122 = vst [vmem:[%s205 + $0x2e0] sm:$0xff] %v2978
        %3123 = vst [vmem:[%s205 + $0x2e8] sm:$0xff] %v2979
        %3124 = vst [vmem:[%s205 + $0x2f0] sm:$0xff] %v2980
        %3125 = vst [vmem:[%s205 + $0x2f8] sm:$0xff] %v2981
        %3126 = vst [vmem:[%s205 + $0x300] sm:$0xff] %v2982
        %3127 = vst [vmem:[%s205 + $0x308] sm:$0xff] %v2983
        %3128 = vst [vmem:[%s205 + $0x310] sm:$0xff] %v2984
        %3129 = vst [vmem:[%s205 + $0x318] sm:$0xff] %v2985
        %3130 = vst [vmem:[%s205 + $0x320] sm:$0xff] %v2986
        %3131 = vst [vmem:[%s205 + $0x328] sm:$0xff] %v2987
        %3132 = vst [vmem:[%s205 + $0x330] sm:$0xff] %v2988
        %3133 = vst [vmem:[%s205 + $0x338] sm:$0xff] %v2989
        %3134 = vst [vmem:[%s205 + $0x340] sm:$0xff] %v2990
        %3135 = vst [vmem:[%s205 + $0x348] sm:$0xff] %v2991
        %3136 = vst [vmem:[%s205 + $0x350] sm:$0xff] %v2992
        %3137 = vst [vmem:[%s205 + $0x358] sm:$0xff] %v2993
        %3138 = vst [vmem:[%s205 + $0x360] sm:$0xff] %v2994
        %3139 = vst [vmem:[%s205 + $0x368] sm:$0xff] %v2995
        %3140 = vst [vmem:[%s205 + $0x370] sm:$0xff] %v2996
        %3141 = vst [vmem:[%s205 + $0x378] sm:$0xff] %v2997
        %3142 = vst [vmem:[%s205 + $0x380] sm:$0xff] %v2998
        %3143 = vst [vmem:[%s205 + $0x388] sm:$0xff] %v2999
        %3144 = vst [vmem:[%s205 + $0x390] sm:$0xff] %v3000
        %3145 = vst [vmem:[%s205 + $0x398] sm:$0xff] %v3001
        %3146 = vst [vmem:[%s205 + $0x3a0] sm:$0xff] %v3002
        %3147 = vst [vmem:[%s205 + $0x3a8] sm:$0xff] %v3003
        %3148 = vst [vmem:[%s205 + $0x3b0] sm:$0xff] %v3004
        %3149 = vst [vmem:[%s205 + $0x3b8] sm:$0xff] %v3005
        %3150 = vst [vmem:[%s205 + $0x3c0] sm:$0xff] %v3006
        %3151 = vst [vmem:[%s205 + $0x3c8] sm:$0xff] %v3007
        %3152 = vst [vmem:[%s205 + $0x3d0] sm:$0xff] %v3008
        %3153 = vst [vmem:[%s205 + $0x3d8] sm:$0xff] %v3009
        %3154 = vst [vmem:[%s205 + $0x3e0] sm:$0xff] %v3010
        %3155 = vst [vmem:[%s205 + $0x3e8] sm:$0xff] %v3011
        %3156 = vst [vmem:[%s205 + $0x3f0] sm:$0xff] %v3012
        %3157 = vst [vmem:[%s205 + $0x3f8] sm:$0xff] %v3013
        %3158 = vst [vmem:[%s205 + $0x400] sm:$0xff] %v3014
        %3159 = vst [vmem:[%s205 + $0x408] sm:$0xff] %v3015
        %3160 = vst [vmem:[%s205 + $0x410] sm:$0xff] %v3016
        %3161 = vst [vmem:[%s205 + $0x418] sm:$0xff] %v3017
        %3162 = vst [vmem:[%s205 + $0x420] sm:$0xff] %v3018
        %3163 = vst [vmem:[%s205 + $0x428] sm:$0xff] %v3019
        %3164 = vst [vmem:[%s205 + $0x430] sm:$0xff] %v3020
        %3165 = vst [vmem:[%s205 + $0x438] sm:$0xff] %v3021
        %3166 = vst [vmem:[%s205 + $0x440] sm:$0xff] %v3022
        %3167 = vst [vmem:[%s205 + $0x448] sm:$0xff] %v3023
        %3168 = vst [vmem:[%s205 + $0x450] sm:$0xff] %v3024
        %3169 = vst [vmem:[%s205 + $0x458] sm:$0xff] %v3025
        %3170 = vst [vmem:[%s205 + $0x460] sm:$0xff] %v3026
        %3171 = vst [vmem:[%s205 + $0x468] sm:$0xff] %v3027
        %3172 = vst [vmem:[%s205 + $0x470] sm:$0xff] %v3028
        %3173 = vst [vmem:[%s205 + $0x478] sm:$0xff] %v3029
        %s3174 = sand.u32 %s84, 1
        %s3175 = scalar_lea.sflag [#allocation6], %s3174
        %s3176 = sand.u32 %s84, 1
        %s3177 = smul.addr %s3176, 1152
        %s3178 = scalar_lea.vmem [#allocation9], %s3177
        // Predicated region
        $region37: #{tpu_custom_call.1} parent=27 // pred_check
          %p3179 = pneg %p94
        $region38: #{tpu_custom_call.1} parent=27 // pred_check_branch
          %3181 = sbr.rel (%p3179) target = $region40
        $region39: #{tpu_custom_call.1} parent=27 // pred_region
          %s3182 = smul.u32 24, %s24
          %s3184 = ssub.s32 18432, 18432
          %3185 = vsyncadd %s3175, %s3184
          %s3186 = smul.addr %s3182, 6
          %s3187 = smul.addr %s3186, 128
          %s3188 = scalar_lea.hbm %s3, %s3187
          %s3189 = sshll.u32 %s3178, 4
          %s3190 = int_to_ptr.vmem [resolvable:$true] %s3189
          %3195 = dma.vmem_to_hbm [thread:$0]  %s3190, 18432, %s3188, %s3175, 768, 768, 48
        $region40: #{tpu_custom_call.1} parent=27 // pred_fallthru
          _
      $region28: #{tpu_custom_call.1} parent=5 // pred_fallthru
        _
      %p3196 = scmp.le.s32.totalorder 2, %s19
      // Predicated region
      $region41: #{tpu_custom_call.1} parent=5 // pred_check
        %p3197 = pneg %p3196
      $region42: #{tpu_custom_call.1} parent=5 // pred_check_branch
        %3199 = sbr.rel (%p3197) target = $region44
      $region43: #{tpu_custom_call.1} parent=5 // pred_region
        %s3200 = ssub.s32 %s19, 2
        // Predicated region
        $region45: #{tpu_custom_call.1} parent=43 // pred_check
          %p3201 = pneg %p100
        $region46: #{tpu_custom_call.1} parent=43 // pred_check_branch
          %3203 = sbr.rel (%p3201) target = $region48
        $region47: #{tpu_custom_call.1} parent=43 // pred_region
          %s3204 = sand.u32 %s85, 1
          %s3205 = scalar_lea.sflag [#allocation6], %s3204
          %s3206 = sand.u32 %s85, 1
          %s3207 = smul.addr %s3206, 1152
          %s3208 = scalar_lea.vmem [#allocation9], %s3207
          %3209 = dma.done %s3205, 18432
        $region48: #{tpu_custom_call.1} parent=43 // pred_fallthru
          _
      $region44: #{tpu_custom_call.1} parent=5 // pred_fallthru
        _
    $region6: #{tpu_custom_call.1} parent=1 // loop_footer
      %s23 = sadd.s32 1, %s19
    $region7: #{tpu_custom_call.1} parent=1 // loop_footer_branch
      %18 = sbr.rel target = $region3
    $region8: #{tpu_custom_call.1} parent=1 // loop_exit
      _
    %3210 = vsyncpa [#allocation5], 1
    %s3211 = scalar_lea.sflag [#allocation5], 1
    %3212 = vsyncpa %s3211, 1
    %3213 = vsyncpa [#allocation8], 1
    %s3214 = scalar_lea.sflag [#allocation8], 1
    %3215 = vsyncpa %s3214, 1
    %3216 = vsyncpa [#allocation6], 1
    %s3217 = scalar_lea.sflag [#allocation6], 1
    %3218 = vsyncpa %s3217, 1

</llo_original>
